<compile_context>
chip_gen: v7x
topology: tpu7x:2x2x1
jax: 0.10.0
libtpu: 0.0.40
codegen_flags: <defaults>
</compile_context>

<pallas_src>
import functools

import jax
import jax.numpy as jnp
from jax import lax
from jax.experimental import pallas as pl
from jax.experimental.pallas import tpu as pltpu

LANE = 128


def _round_up(n, m):
    return ((n + m - 1) // m) * m


def _vmem_limit(step_bytes):
    # Derived from the actual per-step footprint (+ headroom), clamped to stay
    # inside the smallest physical VMEM (64 MiB on v7x).
    want = 2 * int(step_bytes) + (4 << 20)
    return int(max(16 << 20, min(want, 60 << 20)))


# ----------------------------- kernel helpers ------------------------------ #

def _conv3x3_im2col(a_bf, pad_ref, w_ref, stride):
    """3x3 conv, padding=1, on one NHWC image as ONE bf16 im2col matmul.

    a_bf:    (H, W, C)      bf16 activation
    pad_ref: (H+2, W+2, C)  bf16 VMEM scratch; only the 1-px halo is zeroed
    w_ref:   (9*C, Cout)    bf16 weights flattened in (kh, kw, cin) order
    returns: (Ho*Wo, Cout)  f32 (MXU accumulates in f32)
    """
    H, W, C = a_bf.shape
    Ho = (H - 1) // stride + 1
    Wo = (W - 1) // stride + 1

    # Zero only the 1-pixel halo (4 thin stores); interior stored once.
    # Re-zeroed every grid step so the "parallel" grid axis stays megacore-safe
    # (scratch is per-core; no cross-step reuse assumptions).
    zrow = jnp.zeros((1, W + 2, C), jnp.bfloat16)
    zcol = jnp.zeros((H + 2, 1, C), jnp.bfloat16)
    pad_ref[0:1, :, :] = zrow
    pad_ref[H + 1:H + 2, :, :] = zrow
    pad_ref[:, 0:1, :] = zcol
    pad_ref[:, W + 1:W + 2, :] = zcol
    pad_ref[1:H + 1, 1:W + 1, :] = a_bf
    ap = pad_ref[...]

    # im2col: 9 contiguous shifted taps concatenated along the channel (lane)
    # axis (C padded to a multiple of 128 by the wrapper -> pure vreg
    # stacking); the whole conv is a single K = 9*C MXU matmul.
    taps = [ap[kh:kh + H, kw:kw + W, :] for kh in range(3) for kw in range(3)]
    patches = jnp.concatenate(taps, axis=-1)                 # (H, W, 9C) bf16
    if stride > 1:
        # TODO(synk): stride>1 path (one post-concat subsample) not exercised
        # by the toy configs below.
        patches = patches[::stride, ::stride, :]
    lhs = patches.reshape(Ho * Wo, 9 * C)
    return jnp.dot(lhs, w_ref[...], preferred_element_type=jnp.float32)


# --------------------------------- kernels ---------------------------------- #

def wrn_kernel_a(x_ref, s1_ref, t1_ref, w1_ref, ws_ref, *refs,
                 stride, compute_res):
    """bn1-apply + relu, 3x3 conv1 (stride), optional 1x1 shortcut, BN2 partial
    sums.  One image (one grid step) per invocation."""
    if compute_res:
        h1_ref, res_ref, sum_ref, ssq_ref, pad_ref = refs
    else:
        h1_ref, sum_ref, ssq_ref, pad_ref = refs
        res_ref = None

    x = x_ref[0]                                             # (H, W, Cin) f32
    a1 = jnp.maximum(x * s1_ref[...] + t1_ref[...], 0.0)     # bn1 + relu
    a1_bf = a1.astype(jnp.bfloat16)
    H, W, C = a1_bf.shape
    Ho = (H - 1) // stride + 1
    Wo = (W - 1) // stride + 1
    Cout = w1_ref.shape[-1]

    # 1x1-conv shortcut on a1 (only when planes/stride change); issued right
    # after a1 so it doesn't extend a1's live range across conv1.
    if compute_res:
        a1_s = a1_bf if stride == 1 else a1_bf[::stride, ::stride, :]
        res = jnp.dot(a1_s.reshape(Ho * Wo, C), ws_ref[...],
                      preferred_element_type=jnp.float32)
        res_ref[0] = res.reshape(Ho, Wo, Cout)

    # layer1: 3x3 conv (stride), one im2col matmul.
    h1 = _conv3x3_im2col(a1_bf, pad_ref, w1_ref, stride)     # (Ho*Wo, Cout) f32

    # BN2 partial batch statistics (per-image; finalized in the wrapper).
    sum_ref[0, :, :] = jnp.sum(h1, axis=0, keepdims=True)
    ssq_ref[0, :, :] = jnp.sum(h1 * h1, axis=0, keepdims=True)

    h1_ref[0] = h1.reshape(Ho, Wo, Cout)


def wrn_kernel_b(h1_ref, s2_ref, t2_ref, w2_ref, res_ref, o_ref, pad_ref):
    """BN2-apply + relu, 3x3 conv2 (stride 1), residual add."""
    h1 = h1_ref[0]                                           # (Ho, Wo, C) f32
    a2 = jnp.maximum(h1 * s2_ref[...] + t2_ref[...], 0.0).astype(jnp.bfloat16)
    Ho, Wo, C = a2.shape

    h2 = _conv3x3_im2col(a2, pad_ref, w2_ref, 1)             # (Ho*Wo, C) f32

    # Residual read deferred until just before the add (short live range; the
    # block is already resident in VMEM).
    o_ref[0] = res_ref[0] + h2.reshape(Ho, Wo, C)


# --------------------------------- wrapper ---------------------------------- #

def wrn_basic_block(x_nchw, params, *, stride, eps=1e-5):
    """WRNBasicBlock.forward (is_transposed=False).  x_nchw: (N,Cin,H,W) f32.
    Returns NCHW.  BatchNorm2d evaluated in training mode (batch stats)."""
    x = jnp.transpose(x_nchw, (0, 2, 3, 1)).astype(jnp.float32)   # NHWC
    N, H, W, Cin = x.shape
    Cout = params["w1"].shape[-1]
    use_shortcut = (Cin == Cout) and (stride == 1)
    Ho = (H - 1) // stride + 1
    Wo = (W - 1) // stride + 1
    Cin_p = _round_up(Cin, LANE)
    Cout_p = _round_up(Cout, LANE)

    # BN1 batch stats on the unpadded x (tiny XLA reduction), fused into a
    # per-channel scale/shift.  Variance clamped to >= 0 (cancellation guard).
    mean1 = jnp.mean(x, axis=(0, 1, 2))
    var1 = jnp.maximum(
        jnp.mean(jnp.square(x), axis=(0, 1, 2)) - jnp.square(mean1), 0.0)
    scale1 = params["g1"] * lax.rsqrt(var1 + eps)
    shift1 = params["b1"] - mean1 * scale1

    def pad_last(v, c):
        return jnp.pad(v, [(0, 0)] * (v.ndim - 1) + [(0, c - v.shape[-1])])

    # Lane-align channels; zero padding is exactly absorbed (padded gammas and
    # weight rows/cols are zero, so padded lanes stay identically zero).
    x_p = pad_last(x, Cin_p)
    s1 = pad_last(scale1, Cin_p).reshape(1, Cin_p)
    t1 = pad_last(shift1, Cin_p).reshape(1, Cin_p)

    w1 = jnp.pad(params["w1"],
                 ((0, 0), (0, 0), (0, Cin_p - Cin), (0, Cout_p - Cout)))
    w1 = w1.reshape(9 * Cin_p, Cout_p).astype(jnp.bfloat16)
    w2 = jnp.pad(params["w2"],
                 ((0, 0), (0, 0), (0, Cout_p - Cout), (0, Cout_p - Cout)))
    w2 = w2.reshape(9 * Cout_p, Cout_p).astype(jnp.bfloat16)
    ws = jnp.pad(params["ws"],
                 ((0, 0), (0, 0), (0, Cin_p - Cin), (0, Cout_p - Cout)))
    ws = ws.reshape(Cin_p, Cout_p).astype(jnp.bfloat16)

    img4 = lambda i: (i, 0, 0, 0)
    rep2 = lambda i: (0, 0)

    # -------- kernel A: bn1+relu, conv1, shortcut, BN2 partial sums ---------
    bytes_a = (2 * (H * W * Cin_p * 4 + 2 * Ho * Wo * Cout_p * 4)
               + 9 * Cin_p * Cout_p * 2 + Cin_p * Cout_p * 2
               + (H + 2) * (W + 2) * Cin_p * 2 + H * W * 9 * Cin_p * 2)
    flops_a = 2 * N * Ho * Wo * 9 * Cin_p * Cout_p
    if not use_shortcut:
        flops_a += 2 * N * Ho * Wo * Cin_p * Cout_p

    out_shape_a = [jax.ShapeDtypeStruct((N, Ho, Wo, Cout_p), jnp.float32)]
    out_specs_a = [pl.BlockSpec((1, Ho, Wo, Cout_p), img4)]
    if not use_shortcut:
        out_shape_a.append(jax.ShapeDtypeStruct((N, Ho, Wo, Cout_p),
                                                jnp.float32))
        out_specs_a.append(pl.BlockSpec((1, Ho, Wo, Cout_p), img4))
    out_shape_a += [jax.ShapeDtypeStruct((N, 1, Cout_p), jnp.float32)] * 2
    out_specs_a += [pl.BlockSpec((1, 1, Cout_p), lambda i: (i, 0, 0))] * 2

    kernel_a = functools.partial(wrn_kernel_a, stride=stride,
                                 compute_res=not use_shortcut)
    a_out = pl.pallas_call(
        kernel_a,
        grid=(N,),
        out_shape=tuple(out_shape_a),
        in_specs=[
            pl.BlockSpec((1, H, W, Cin_p), img4),
            pl.BlockSpec((1, Cin_p), rep2),
            pl.BlockSpec((1, Cin_p), rep2),
            pl.BlockSpec((9 * Cin_p, Cout_p), rep2),
            pl.BlockSpec((Cin_p, Cout_p), rep2),
        ],
        out_specs=tuple(out_specs_a),
        scratch_shapes=[pltpu.VMEM((H + 2, W + 2, Cin_p), jnp.bfloat16)],
        compiler_params=pltpu.CompilerParams(
            dimension_semantics=("parallel",),      # shard images across TCs
            vmem_limit_bytes=_vmem_limit(bytes_a)),
        cost_estimate=pl.CostEstimate(flops=int(flops_a), transcendentals=0,
                                      bytes_accessed=int(N * bytes_a)),
    )(x_p, s1, t1, w1, ws)

    if use_shortcut:
        h1, sum2, ssq2 = a_out
        res = x_p                                   # identity residual (f32)
    else:
        h1, res, sum2, ssq2 = a_out

    # -------- BN2 finalize: tiny XLA ops on the (N, 1, C) partial sums ------
    cnt = float(N * Ho * Wo)
    mean2 = jnp.sum(sum2, axis=0) / cnt                            # (1, Cp)
    var2 = jnp.maximum(jnp.sum(ssq2, axis=0) / cnt - jnp.square(mean2), 0.0)
    g2 = pad_last(params["g2"], Cout_p).reshape(1, Cout_p)
    b2 = pad_last(params["b2"], Cout_p).reshape(1, Cout_p)
    scale2 = g2 * lax.rsqrt(var2 + eps)
    shift2 = b2 - mean2 * scale2

    # -------- kernel B: bn2+relu, conv2, residual add -----------------------
    bytes_b = (2 * 3 * Ho * Wo * Cout_p * 4 + 9 * Cout_p * Cout_p * 2
               + (Ho + 2) * (Wo + 2) * Cout_p * 2 + Ho * Wo * 9 * Cout_p * 2)
    flops_b = 2 * N * Ho * Wo * 9 * Cout_p * Cout_p

    out_nhwc = pl.pallas_call(
        wrn_kernel_b,
        grid=(N,),
        out_shape=jax.ShapeDtypeStruct((N, Ho, Wo, Cout_p), jnp.float32),
        in_specs=[
            pl.BlockSpec((1, Ho, Wo, Cout_p), img4),
            pl.BlockSpec((1, Cout_p), rep2),
            pl.BlockSpec((1, Cout_p), rep2),
            pl.BlockSpec((9 * Cout_p, Cout_p), rep2),
            pl.BlockSpec((1, Ho, Wo, Cout_p), img4),
        ],
        out_specs=pl.BlockSpec((1, Ho, Wo, Cout_p), img4),
        scratch_shapes=[pltpu.VMEM((Ho + 2, Wo + 2, Cout_p), jnp.bfloat16)],
        compiler_params=pltpu.CompilerParams(
            dimension_semantics=("parallel",),
            vmem_limit_bytes=_vmem_limit(bytes_b)),
        cost_estimate=pl.CostEstimate(flops=int(flops_b), transcendentals=0,
                                      bytes_accessed=int(N * bytes_b)),
    )(h1, scale2, shift2, w2, res)

    out = out_nhwc[:, :, :, :Cout]                  # drop channel padding
    return jnp.transpose(out, (0, 3, 1, 2))         # back to NCHW


# ---------------------------- pure-JAX reference ---------------------------- #

def wrn_basic_block_ref(x_nchw, params, *, stride, eps=1e-5):
    x = jnp.transpose(x_nchw, (0, 2, 3, 1)).astype(jnp.float32)
    Cin = x.shape[-1]
    Cout = params["w1"].shape[-1]
    use_shortcut = (Cin == Cout) and (stride == 1)

    def bn_relu(v, g, b):
        m = jnp.mean(v, axis=(0, 1, 2))
        var = jnp.mean((v - m) ** 2, axis=(0, 1, 2))
        return jnp.maximum((v - m) * lax.rsqrt(var + eps) * g + b, 0.0)

    dn = lax.conv_dimension_numbers(x.shape, params["w1"].shape,
                                    ("NHWC", "HWIO", "NHWC"))
    a1 = bn_relu(x, params["g1"], params["b1"])
    h1 = lax.conv_general_dilated(a1, params["w1"], (stride, stride),
                                  ((1, 1), (1, 1)), dimension_numbers=dn)
    a2 = bn_relu(h1, params["g2"], params["b2"])
    h2 = lax.conv_general_dilated(a2, params["w2"], (1, 1),
                                  ((1, 1), (1, 1)), dimension_numbers=dn)
    if use_shortcut:
        res = x
    else:
        res = lax.conv_general_dilated(a1, params["ws"], (stride, stride),
                                       ((0, 0), (0, 0)), dimension_numbers=dn)
    return jnp.transpose(res + h2, (0, 3, 1, 2))


# ---------------------------------- main ------------------------------------ #

def _make_params(key, cin, cout):
    ks = jax.random.split(key, 7)
    return dict(
        g1=1.0 + 0.1 * jax.random.normal(ks[0], (cin,), jnp.float32),
        b1=0.1 * jax.random.normal(ks[1], (cin,), jnp.float32),
        w1=0.1 * jax.random.normal(ks[2], (3, 3, cin, cout), jnp.float32),
        g2=1.0 + 0.1 * jax.random.normal(ks[3], (cout,), jnp.float32),
        b2=0.1 * jax.random.normal(ks[4], (cout,), jnp.float32),
        w2=0.1 * jax.random.normal(ks[5], (3, 3, cout, cout), jnp.float32),
        ws=0.1 * jax.random.normal(ks[6], (1, 1, cin, cout), jnp.float32),
    )


if __name__ == "__main__":
    key = jax.random.PRNGKey(0)

    # (in_planes, out_planes, stride): identity-shortcut case and
    # 1x1-conv-shortcut case (channel change).
    configs = [(4, 4, 1), (4, 8, 1)]

    for cin, cout, stride in configs:
        key, kx, kp = jax.random.split(key, 3)
        x = jax.random.normal(kx, (2, cin, 16, 16), jnp.float32)   # NCHW
        params = _make_params(kp, cin, cout)

        out = jax.block_until_ready(wrn_basic_block(x, params, stride=stride))
        ref = wrn_basic_block_ref(x, params, stride=stride)

        assert out.shape == ref.shape, (out.shape, ref.shape)
        # bf16 MXU inputs (f32 accumulation) vs an all-f32 reference.
        err = float(jnp.max(jnp.abs(out - ref)))
        assert jnp.allclose(out, ref, atol=5e-2, rtol=5e-2), ("mismatch", err)

    print("KERNEL_OK")
</pallas_src>

<mosaic_0001>
module attributes {stable_mosaic.version = 11 : i64} {
  func.func @wrn_kernel_a(%arg0: i32, %arg1: memref<1x16x16x128xf32, #tpu.memory_space<vmem>>, %arg2: memref<1x128xf32, #tpu.memory_space<vmem>>, %arg3: memref<1x128xf32, #tpu.memory_space<vmem>>, %arg4: memref<1152x128xbf16, #tpu.memory_space<vmem>>, %arg5: memref<128x128xbf16, #tpu.memory_space<vmem>>, %arg6: memref<1x16x16x128xf32, #tpu.memory_space<vmem>>, %arg7: memref<1x1x128xf32, #tpu.memory_space<vmem>>, %arg8: memref<1x1x128xf32, #tpu.memory_space<vmem>>, %arg9: memref<18x18x128xbf16, #tpu.memory_space<vmem>>) attributes {dimension_semantics = [#tpu.dimension_semantics<parallel>], iteration_bounds = array<i64: 2>, scalar_prefetch = 0 : i64, scratch_operands = 1 : i64, tpu.core_type = #tpu.core_type<tc>, window_params = [{transform_indices = @transform_0, window_bounds = array<i64: 1, 16, 16, 128>}, {pipeline_mode = #tpu.pipeline_mode<synchronous>, transform_indices = @transform_1, window_bounds = array<i64: 1, 128>}, {pipeline_mode = #tpu.pipeline_mode<synchronous>, transform_indices = @transform_2, window_bounds = array<i64: 1, 128>}, {pipeline_mode = #tpu.pipeline_mode<synchronous>, transform_indices = @transform_3, window_bounds = array<i64: 1152, 128>}, {pipeline_mode = #tpu.pipeline_mode<synchronous>, transform_indices = @transform_4, window_bounds = array<i64: 128, 128>}, {transform_indices = @transform_5, window_bounds = array<i64: 1, 16, 16, 128>}, {transform_indices = @transform_6, window_bounds = array<i64: 1, 1, 128>}, {transform_indices = @transform_7, window_bounds = array<i64: 1, 1, 128>}]} {
    %c0 = arith.constant 0 : index
    %c0_0 = arith.constant 0 : index
    %c0_1 = arith.constant 0 : index
    %c0_2 = arith.constant 0 : index
    %0 = vector.load %arg1[%c0, %c0_0, %c0_1, %c0_2] : memref<1x16x16x128xf32, #tpu.memory_space<vmem>>, vector<1x16x16x128xf32>
    %1 = vector.shape_cast %0 : vector<1x16x16x128xf32> to vector<16x16x128xf32>
    %c0_3 = arith.constant 0 : index
    %c0_4 = arith.constant 0 : index
    %2 = vector.load %arg2[%c0_3, %c0_4] : memref<1x128xf32, #tpu.memory_space<vmem>>, vector<1x128xf32>
    %3 = vector.shape_cast %2 : vector<1x128xf32> to vector<1x1x128xf32>
    %4 = vector.broadcast %3 : vector<1x1x128xf32> to vector<16x16x128xf32>
    %5 = arith.mulf %1, %4 : vector<16x16x128xf32>
    %c0_5 = arith.constant 0 : index
    %c0_6 = arith.constant 0 : index
    %6 = vector.load %arg3[%c0_5, %c0_6] : memref<1x128xf32, #tpu.memory_space<vmem>>, vector<1x128xf32>
    %7 = vector.shape_cast %6 : vector<1x128xf32> to vector<1x1x128xf32>
    %8 = vector.broadcast %7 : vector<1x1x128xf32> to vector<16x16x128xf32>
    %9 = arith.addf %5, %8 : vector<16x16x128xf32>
    %cst = arith.constant 0.000000e+00 : f32
    %10 = vector.broadcast %cst : f32 to vector<16x16x128xf32>
    %11 = arith.maximumf %9, %10 : vector<16x16x128xf32>
    %12 = arith.truncf %11 : vector<16x16x128xf32> to vector<16x16x128xbf16>
    %cst_7 = arith.constant 0.000000e+00 : bf16
    %13 = vector.broadcast %cst_7 : bf16 to vector<1x18x128xbf16>
    %cst_8 = arith.constant 0.000000e+00 : bf16
    %14 = vector.broadcast %cst_8 : bf16 to vector<18x1x128xbf16>
    %c0_9 = arith.constant 0 : index
    %c0_10 = arith.constant 0 : index
    %c0_11 = arith.constant 0 : index
    %15 = vector.load %arg9[%c0_9, %c0_10, %c0_11] : memref<18x18x128xbf16, #tpu.memory_space<vmem>>, vector<1x18x128xbf16>
    tpu.vector_store %arg9[%c0_9, %c0_10, %c0_11], %13 {strides = array<i32>} : memref<18x18x128xbf16, #tpu.memory_space<vmem>>, vector<1x18x128xbf16>,
    %c17 = arith.constant 17 : index
    %c0_12 = arith.constant 0 : index
    %c0_13 = arith.constant 0 : index
    %16 = vector.load %arg9[%c17, %c0_12, %c0_13] : memref<18x18x128xbf16, #tpu.memory_space<vmem>>, vector<1x18x128xbf16>
    tpu.vector_store %arg9[%c17, %c0_12, %c0_13], %13 {strides = array<i32>} : memref<18x18x128xbf16, #tpu.memory_space<vmem>>, vector<1x18x128xbf16>,
    %c0_14 = arith.constant 0 : index
    %c0_15 = arith.constant 0 : index
    %c0_16 = arith.constant 0 : index
    %17 = vector.load %arg9[%c0_14, %c0_15, %c0_16] : memref<18x18x128xbf16, #tpu.memory_space<vmem>>, vector<18x1x128xbf16>
    tpu.vector_store %arg9[%c0_14, %c0_15, %c0_16], %14 {strides = array<i32>} : memref<18x18x128xbf16, #tpu.memory_space<vmem>>, vector<18x1x128xbf16>,
    %c0_17 = arith.constant 0 : index
    %c17_18 = arith.constant 17 : index
    %c0_19 = arith.constant 0 : index
    %18 = vector.load %arg9[%c0_17, %c17_18, %c0_19] : memref<18x18x128xbf16, #tpu.memory_space<vmem>>, vector<18x1x128xbf16>
    tpu.vector_store %arg9[%c0_17, %c17_18, %c0_19], %14 {strides = array<i32>} : memref<18x18x128xbf16, #tpu.memory_space<vmem>>, vector<18x1x128xbf16>,
    %c1 = arith.constant 1 : index
    %c1_20 = arith.constant 1 : index
    %c0_21 = arith.constant 0 : index
    %19 = vector.load %arg9[%c1, %c1_20, %c0_21] : memref<18x18x128xbf16, #tpu.memory_space<vmem>>, vector<16x16x128xbf16>
    tpu.vector_store %arg9[%c1, %c1_20, %c0_21], %12 {strides = array<i32>} : memref<18x18x128xbf16, #tpu.memory_space<vmem>>, vector<16x16x128xbf16>,
    %c0_22 = arith.constant 0 : index
    %c0_23 = arith.constant 0 : index
    %c0_24 = arith.constant 0 : index
    %20 = vector.load %arg9[%c0_22, %c0_23, %c0_24] : memref<18x18x128xbf16, #tpu.memory_space<vmem>>, vector<18x18x128xbf16>
    %21 = vector.extract_strided_slice %20 {offsets = [0, 0, 0], sizes = [16, 16, 128], strides = [1, 1, 1]} : vector<18x18x128xbf16> to vector<16x16x128xbf16>
    %22 = vector.extract_strided_slice %20 {offsets = [0, 1, 0], sizes = [16, 16, 128], strides = [1, 1, 1]} : vector<18x18x128xbf16> to vector<16x16x128xbf16>
    %23 = vector.extract_strided_slice %20 {offsets = [0, 2, 0], sizes = [16, 16, 128], strides = [1, 1, 1]} : vector<18x18x128xbf16> to vector<16x16x128xbf16>
    %24 = vector.extract_strided_slice %20 {offsets = [1, 0, 0], sizes = [16, 16, 128], strides = [1, 1, 1]} : vector<18x18x128xbf16> to vector<16x16x128xbf16>
    %25 = vector.extract_strided_slice %20 {offsets = [1, 1, 0], sizes = [16, 16, 128], strides = [1, 1, 1]} : vector<18x18x128xbf16> to vector<16x16x128xbf16>
    %26 = vector.extract_strided_slice %20 {offsets = [1, 2, 0], sizes = [16, 16, 128], strides = [1, 1, 1]} : vector<18x18x128xbf16> to vector<16x16x128xbf16>
    %27 = vector.extract_strided_slice %20 {offsets = [2, 0, 0], sizes = [16, 16, 128], strides = [1, 1, 1]} : vector<18x18x128xbf16> to vector<16x16x128xbf16>
    %28 = vector.extract_strided_slice %20 {offsets = [2, 1, 0], sizes = [16, 16, 128], strides = [1, 1, 1]} : vector<18x18x128xbf16> to vector<16x16x128xbf16>
    %29 = vector.extract_strided_slice %20 {offsets = [2, 2, 0], sizes = [16, 16, 128], strides = [1, 1, 1]} : vector<18x18x128xbf16> to vector<16x16x128xbf16>
    %30 = tpu.concatenate %21, %22, %23, %24, %25, %26, %27, %28, %29 in 2 : vector<16x16x128xbf16>, vector<16x16x128xbf16>, vector<16x16x128xbf16>, vector<16x16x128xbf16>, vector<16x16x128xbf16>, vector<16x16x128xbf16>, vector<16x16x128xbf16>, vector<16x16x128xbf16>, vector<16x16x128xbf16> -> vector<16x16x1152xbf16>
    %31 = vector.shape_cast %30 : vector<16x16x1152xbf16> to vector<256x1152xbf16>
    %c0_25 = arith.constant 0 : index
    %c0_26 = arith.constant 0 : index
    %32 = vector.load %arg4[%c0_25, %c0_26] : memref<1152x128xbf16, #tpu.memory_space<vmem>>, vector<1152x128xbf16>
    %cst_27 = arith.constant dense<0.000000e+00> : vector<256x128xf32>
    %33 = tpu.matmul %31, %32, %cst_27 {dimension_numbers = #tpu.dot_dimension_numbers<[1], [0], [0], [1], [0, 0, 1, 1], [], []>} : vector<256x1152xbf16>, vector<1152x128xbf16>, vector<256x128xf32> -> vector<256x128xf32>
    %cst_28 = arith.constant dense<0.000000e+00> : vector<128xf32>
    %34 = vector.multi_reduction <add>, %33, %cst_28 [0] : vector<256x128xf32> to vector<128xf32>
    %35 = vector.shape_cast %34 : vector<128xf32> to vector<1x128xf32>
    %c0_29 = arith.constant 0 : index
    %c0_30 = arith.constant 0 : index
    %c0_31 = arith.constant 0 : index
    %36 = vector.load %arg7[%c0_29, %c0_30, %c0_31] : memref<1x1x128xf32, #tpu.memory_space<vmem>>, vector<1x1x128xf32>
    %37 = vector.shape_cast %36 : vector<1x1x128xf32> to vector<1x128xf32>
    %38 = vector.shape_cast %35 : vector<1x128xf32> to vector<1x1x128xf32>
    tpu.vector_store %arg7[%c0_29, %c0_30, %c0_31], %38 {strides = array<i32>} : memref<1x1x128xf32, #tpu.memory_space<vmem>>, vector<1x1x128xf32>,
    %39 = arith.mulf %33, %33 : vector<256x128xf32>
    %cst_32 = arith.constant dense<0.000000e+00> : vector<128xf32>
    %40 = vector.multi_reduction <add>, %39, %cst_32 [0] : vector<256x128xf32> to vector<128xf32>
    %41 = vector.shape_cast %40 : vector<128xf32> to vector<1x128xf32>
    %c0_33 = arith.constant 0 : index
    %c0_34 = arith.constant 0 : index
    %c0_35 = arith.constant 0 : index
    %42 = vector.load %arg8[%c0_33, %c0_34, %c0_35] : memref<1x1x128xf32, #tpu.memory_space<vmem>>, vector<1x1x128xf32>
    %43 = vector.shape_cast %42 : vector<1x1x128xf32> to vector<1x128xf32>
    %44 = vector.shape_cast %41 : vector<1x128xf32> to vector<1x1x128xf32>
    tpu.vector_store %arg8[%c0_33, %c0_34, %c0_35], %44 {strides = array<i32>} : memref<1x1x128xf32, #tpu.memory_space<vmem>>, vector<1x1x128xf32>,
    %45 = vector.shape_cast %33 : vector<256x128xf32> to vector<16x16x128xf32>
    %c0_36 = arith.constant 0 : index
    %c0_37 = arith.constant 0 : index
    %c0_38 = arith.constant 0 : index
    %c0_39 = arith.constant 0 : index
    %46 = vector.load %arg6[%c0_36, %c0_37, %c0_38, %c0_39] : memref<1x16x16x128xf32, #tpu.memory_space<vmem>>, vector<1x16x16x128xf32>
    %47 = vector.shape_cast %46 : vector<1x16x16x128xf32> to vector<16x16x128xf32>
    %48 = vector.shape_cast %45 : vector<16x16x128xf32> to vector<1x16x16x128xf32>
    tpu.vector_store %arg6[%c0_36, %c0_37, %c0_38, %c0_39], %48 {strides = array<i32>} : memref<1x16x16x128xf32, #tpu.memory_space<vmem>>, vector<1x16x16x128xf32>,
    return
  }
  func.func @transform_0(%arg0: i32) -> (i32, i32, i32, i32) {
    %c0_i32 = arith.constant 0 : i32
    %c0_i32_0 = arith.constant 0 : i32
    %c0_i32_1 = arith.constant 0 : i32
    %c0_i32_2 = arith.constant 0 : i32
    return %arg0, %c0_i32, %c0_i32_0, %c0_i32_1 : i32, i32, i32, i32
  }
  func.func @transform_1(%arg0: i32) -> (i32, i32) {
    %c0_i32 = arith.constant 0 : i32
    %c0_i32_0 = arith.constant 0 : i32
    %c0_i32_1 = arith.constant 0 : i32
    return %c0_i32, %c0_i32_0 : i32, i32
  }
  func.func @transform_2(%arg0: i32) -> (i32, i32) {
    %c0_i32 = arith.constant 0 : i32
    %c0_i32_0 = arith.constant 0 : i32
    %c0_i32_1 = arith.constant 0 : i32
    return %c0_i32, %c0_i32_0 : i32, i32
  }
  func.func @transform_3(%arg0: i32) -> (i32, i32) {
    %c0_i32 = arith.constant 0 : i32
    %c0_i32_0 = arith.constant 0 : i32
    %c0_i32_1 = arith.constant 0 : i32
    return %c0_i32, %c0_i32_0 : i32, i32
  }
  func.func @transform_4(%arg0: i32) -> (i32, i32) {
    %c0_i32 = arith.constant 0 : i32
    %c0_i32_0 = arith.constant 0 : i32
    %c0_i32_1 = arith.constant 0 : i32
    return %c0_i32, %c0_i32_0 : i32, i32
  }
  func.func @transform_5(%arg0: i32) -> (i32, i32, i32, i32) {
    %c0_i32 = arith.constant 0 : i32
    %c0_i32_0 = arith.constant 0 : i32
    %c0_i32_1 = arith.constant 0 : i32
    %c0_i32_2 = arith.constant 0 : i32
    return %arg0, %c0_i32, %c0_i32_0, %c0_i32_1 : i32, i32, i32, i32
  }
  func.func @transform_6(%arg0: i32) -> (i32, i32, i32) {
    %c0_i32 = arith.constant 0 : i32
    %c0_i32_0 = arith.constant 0 : i32
    %c0_i32_1 = arith.constant 0 : i32
    return %arg0, %c0_i32, %c0_i32_0 : i32, i32, i32
  }
  func.func @transform_7(%arg0: i32) -> (i32, i32, i32) {
    %c0_i32 = arith.constant 0 : i32
    %c0_i32_0 = arith.constant 0 : i32
    %c0_i32_1 = arith.constant 0 : i32
    return %arg0, %c0_i32, %c0_i32_0 : i32, i32, i32
  }
}

</mosaic_0001>

<llo_original>
// kernel: tpu_custom_call.1
$region0: #{tpu_custom_call.1}
  #allocation0 [shape = 'u32[]', space=smem, size = 0x4, offset = 0x4, fixed_abs, tag = 'smem constant byte address 0x4 - core index']
  #allocation1 [shape = 'u32[144,128]{1,0:T(1,128)}', space=vmem, size = 0x12000, scoped, tag = 'internal scratch']
  #allocation2 [shape = 'bf16[18,18,128]{2,1,0:T(8,128)(2,1)}', space=vmem, size = 0x1b000, scoped, tag = 'scratch operand']
  %s0 = inlined_call_operand.hbm [shape: f32[2,16,16,128], index: 0, kind: input, shape index: {}]
  %s1 = inlined_call_operand.vmem [shape: f32[1,128], index: 1, kind: input, shape index: {}]
  %s2 = inlined_call_operand.vmem [shape: f32[1,128], index: 2, kind: input, shape index: {}]
  %s3 = inlined_call_operand.hbm [shape: bf16[1152,128], index: 3, kind: input, shape index: {}]
  %s4 = inlined_call_operand.hbm [shape: bf16[128,128], index: 4, kind: input, shape index: {}]
  %s5 = inlined_call_operand.hbm [shape: f32[2,16,16,128], index: 5, kind: output, shape index: {0}]
  %s6 = inlined_call_operand.hbm [shape: f32[2,1,128], index: 6, kind: output, shape index: {1}]
  %s7 = inlined_call_operand.hbm [shape: f32[2,1,128], index: 7, kind: output, shape index: {2}]
  %8 = xla_tuple %s5, %s6, %s7
  %s9 = sld [smem:[#allocation0]]
  $region81: #{tpu_custom_call.1} parent=0
    _
  %s11 = ssub.s32 1, %s9
  %s12 = scalar_select 0, %s11, %s9
  $region1: #{tpu_custom_call.1} parent=0
    #allocation3 [shape = 'u8[262144]{0}', space=vmem, size = 0x40000, scoped, tag = 'input window, operand 0']
    #allocation4 [shape = 's32[2]{0}', space=sflag, size = 0x8, scoped, tag = 'scoped memory for tpu_custom_call.1']
    #allocation5 [shape = 's32[2]{0}', space=sflag, size = 0x8, scoped, tag = 'scoped memory for tpu_custom_call.1']
    #allocation6 [shape = 'u8[294912]{0}', space=vmem, size = 0x48000, scoped, tag = 'input window, operand 3, single buffered']
    #allocation7 [shape = 's32[1]{0}', space=sflag, size = 0x4, scoped, tag = 'scoped memory for tpu_custom_call.1']
    #allocation8 [shape = 'u8[32768]{0}', space=vmem, size = 0x8000, scoped, tag = 'input window, operand 4, single buffered']
    #allocation9 [shape = 'u8[262144]{0}', space=vmem, size = 0x40000, scoped, tag = 'output window, operand 0']
    #allocation10 [shape = 'u8[1024]{0}', space=vmem, size = 0x400, scoped, tag = 'output window, operand 1']
    #allocation11 [shape = 's32[2]{0}', space=sflag, size = 0x8, scoped, tag = 'scoped memory for tpu_custom_call.1']
    #allocation12 [shape = 'u8[1024]{0}', space=vmem, size = 0x400, scoped, tag = 'output window, operand 2']
    %13 = vsyncpa [#allocation4], 0
    %s14 = scalar_lea.sflag [#allocation4], 1
    %15 = vsyncpa %s14, 0
    %16 = vsyncpa [#allocation7], 0
    %17 = vsyncpa [#allocation5], 0
    %s18 = scalar_lea.sflag [#allocation5], 1
    %19 = vsyncpa %s18, 0
    %20 = vsyncpa [#allocation11], 0
    %s21 = scalar_lea.sflag [#allocation11], 1
    %22 = vsyncpa %s21, 0
    loop: start=0, step=1, limit=4
    $region2: #{tpu_custom_call.1} parent=1 // loop_pre_header
      _
    $region3: #{tpu_custom_call.1} parent=1 // loop_header
      %s24 = sphi 0, %s28
      %p25 = scmp.ge.s32.totalorder %s24, 4
      %s34 = sphi 0, %s36
      %s37 = sphi 0, %s34
      %s38 = sphi 0, %s37
      %s54 = sphi 0, %s38
      %s58 = sphi 0, %s58
      %s60 = sphi 0, %s58
      %s61 = sphi 0, %s60
      %s75 = sphi 0, %s61
      %s79 = sphi 0, %s79
      %s81 = sphi 0, %s79
      %s82 = sphi 0, %s81
      %s96 = sphi 0, %s82
      %s100 = sphi 0, %s100
      %s102 = sphi 0, %s100
      %s103 = sphi 0, %s102
      %s117 = sphi 0, %s103
      %s121 = sphi 0, %s121
      %s123 = sphi 0, %s121
      %s124 = sphi 0, %s123
      %s138 = sphi 0, %s124
      %s144 = sphi 0, %s146
      %s147 = sphi 0, %s144
      %s148 = sphi 0, %s147
      %s164 = sphi 0, %s148
      %s170 = sphi 0, %s172
      %s173 = sphi 0, %s170
      %s174 = sphi 0, %s173
      %s190 = sphi 0, %s174
      %s196 = sphi 0, %s198
      %s199 = sphi 0, %s196
      %s200 = sphi 0, %s199
      %s216 = sphi 0, %s200
    $region4: #{tpu_custom_call.1} parent=1 // loop_header_branch
      %27 = sbr.rel (%p25) target = $region8
    $region5: #{tpu_custom_call.1} parent=1 // loop_body
      %s29 = ssub.s32 %s24, 1
      %s30 = ssub.s32 %s24, 2
      %s31 = sadd.s32 %s24, 1
      %s32 = ssub.s32 %s24, %s31
      %p33 = scmp.eq.s32.totalorder %s32, 0
      %s35 = sadd.s32 %s34, 1
      %s36 = scalar_select %p33, %s34, %s35
      %p39 = pneg %p33
      %p40 = scmp.eq.s32.totalorder %s24, 1
      %p41 = por %p39, %p40
      %p42 = scmp.ne.s32.totalorder %s34, %s37
      %p43 = scmp.eq.s32.totalorder %s24, 0
      %p44 = por %p42, %p43
      %p45 = scmp.ne.s32.totalorder %s34, %s37
      %p46 = scmp.eq.s32.totalorder %s29, 1
      %p47 = por %p45, %p46
      %p48 = scmp.ne.s32.totalorder %s37, %s38
      %p49 = scmp.eq.s32.totalorder %s29, 0
      %p50 = por %p48, %p49
      %p51 = scmp.ne.s32.totalorder %s37, %s38
      %p52 = scmp.eq.s32.totalorder %s30, 1
      %p53 = por %p51, %p52
      %p55 = scmp.ne.s32.totalorder %s38, %s54
      %p56 = scmp.eq.s32.totalorder %s30, 0
      %p57 = por %p55, %p56
      %s59 = sadd.s32 %s58, 1
      %p62 = scmp.eq.s32.totalorder %s24, 1
      %p63 = scmp.ne.s32.totalorder %s58, %s60
      %p64 = scmp.eq.s32.totalorder %s24, 0
      %p65 = por %p63, %p64
      %p66 = scmp.ne.s32.totalorder %s58, %s60
      %p67 = scmp.eq.s32.totalorder %s29, 1
      %p68 = por %p66, %p67
      %p69 = scmp.ne.s32.totalorder %s60, %s61
      %p70 = scmp.eq.s32.totalorder %s29, 0
      %p71 = por %p69, %p70
      %p72 = scmp.ne.s32.totalorder %s60, %s61
      %p73 = scmp.eq.s32.totalorder %s30, 1
      %p74 = por %p72, %p73
      %p76 = scmp.ne.s32.totalorder %s61, %s75
      %p77 = scmp.eq.s32.totalorder %s30, 0
      %p78 = por %p76, %p77
      %s80 = sadd.s32 %s79, 1
      %p83 = scmp.eq.s32.totalorder %s24, 1
      %p84 = scmp.ne.s32.totalorder %s79, %s81
      %p85 = scmp.eq.s32.totalorder %s24, 0
      %p86 = por %p84, %p85
      %p87 = scmp.ne.s32.totalorder %s79, %s81
      %p88 = scmp.eq.s32.totalorder %s29, 1
      %p89 = por %p87, %p88
      %p90 = scmp.ne.s32.totalorder %s81, %s82
      %p91 = scmp.eq.s32.totalorder %s29, 0
      %p92 = por %p90, %p91
      %p93 = scmp.ne.s32.totalorder %s81, %s82
      %p94 = scmp.eq.s32.totalorder %s30, 1
      %p95 = por %p93, %p94
      %p97 = scmp.ne.s32.totalorder %s82, %s96
      %p98 = scmp.eq.s32.totalorder %s30, 0
      %p99 = por %p97, %p98
      %s101 = sadd.s32 %s100, 1
      %p104 = scmp.eq.s32.totalorder %s24, 1
      %p105 = scmp.ne.s32.totalorder %s100, %s102
      %p106 = scmp.eq.s32.totalorder %s24, 0
      %p107 = por %p105, %p106
      %p108 = scmp.ne.s32.totalorder %s100, %s102
      %p109 = scmp.eq.s32.totalorder %s29, 1
      %p110 = por %p108, %p109
      %p111 = scmp.ne.s32.totalorder %s102, %s103
      %p112 = scmp.eq.s32.totalorder %s29, 0
      %p113 = por %p111, %p112
      %p114 = scmp.ne.s32.totalorder %s102, %s103
      %p115 = scmp.eq.s32.totalorder %s30, 1
      %p116 = por %p114, %p115
      %p118 = scmp.ne.s32.totalorder %s103, %s117
      %p119 = scmp.eq.s32.totalorder %s30, 0
      %p120 = por %p118, %p119
      %s122 = sadd.s32 %s121, 1
      %p125 = scmp.eq.s32.totalorder %s24, 1
      %p126 = scmp.ne.s32.totalorder %s121, %s123
      %p127 = scmp.eq.s32.totalorder %s24, 0
      %p128 = por %p126, %p127
      %p129 = scmp.ne.s32.totalorder %s121, %s123
      %p130 = scmp.eq.s32.totalorder %s29, 1
      %p131 = por %p129, %p130
      %p132 = scmp.ne.s32.totalorder %s123, %s124
      %p133 = scmp.eq.s32.totalorder %s29, 0
      %p134 = por %p132, %p133
      %p135 = scmp.ne.s32.totalorder %s123, %s124
      %p136 = scmp.eq.s32.totalorder %s30, 1
      %p137 = por %p135, %p136
      %p139 = scmp.ne.s32.totalorder %s124, %s138
      %p140 = scmp.eq.s32.totalorder %s30, 0
      %p141 = por %p139, %p140
      %s142 = ssub.s32 %s24, %s31
      %p143 = scmp.eq.s32.totalorder %s142, 0
      %s145 = sadd.s32 %s144, 1
      %s146 = scalar_select %p143, %s144, %s145
      %p149 = pneg %p143
      %p150 = scmp.eq.s32.totalorder %s24, 1
      %p151 = por %p149, %p150
      %p152 = scmp.ne.s32.totalorder %s144, %s147
      %p153 = scmp.eq.s32.totalorder %s24, 0
      %p154 = por %p152, %p153
      %p155 = scmp.ne.s32.totalorder %s144, %s147
      %p156 = scmp.eq.s32.totalorder %s29, 1
      %p157 = por %p155, %p156
      %p158 = scmp.ne.s32.totalorder %s147, %s148
      %p159 = scmp.eq.s32.totalorder %s29, 0
      %p160 = por %p158, %p159
      %p161 = scmp.ne.s32.totalorder %s147, %s148
      %p162 = scmp.eq.s32.totalorder %s30, 1
      %p163 = por %p161, %p162
      %p165 = scmp.ne.s32.totalorder %s148, %s164
      %p166 = scmp.eq.s32.totalorder %s30, 0
      %p167 = por %p165, %p166
      %s168 = ssub.s32 %s24, %s31
      %p169 = scmp.eq.s32.totalorder %s168, 0
      %s171 = sadd.s32 %s170, 1
      %s172 = scalar_select %p169, %s170, %s171
      %p175 = pneg %p169
      %p176 = scmp.eq.s32.totalorder %s24, 1
      %p177 = por %p175, %p176
      %p178 = scmp.ne.s32.totalorder %s170, %s173
      %p179 = scmp.eq.s32.totalorder %s24, 0
      %p180 = por %p178, %p179
      %p181 = scmp.ne.s32.totalorder %s170, %s173
      %p182 = scmp.eq.s32.totalorder %s29, 1
      %p183 = por %p181, %p182
      %p184 = scmp.ne.s32.totalorder %s173, %s174
      %p185 = scmp.eq.s32.totalorder %s29, 0
      %p186 = por %p184, %p185
      %p187 = scmp.ne.s32.totalorder %s173, %s174
      %p188 = scmp.eq.s32.totalorder %s30, 1
      %p189 = por %p187, %p188
      %p191 = scmp.ne.s32.totalorder %s174, %s190
      %p192 = scmp.eq.s32.totalorder %s30, 0
      %p193 = por %p191, %p192
      %s194 = ssub.s32 %s24, %s31
      %p195 = scmp.eq.s32.totalorder %s194, 0
      %s197 = sadd.s32 %s196, 1
      %s198 = scalar_select %p195, %s196, %s197
      %p201 = pneg %p195
      %p202 = scmp.eq.s32.totalorder %s24, 1
      %p203 = por %p201, %p202
      %p204 = scmp.ne.s32.totalorder %s196, %s199
      %p205 = scmp.eq.s32.totalorder %s24, 0
      %p206 = por %p204, %p205
      %p207 = scmp.ne.s32.totalorder %s196, %s199
      %p208 = scmp.eq.s32.totalorder %s29, 1
      %p209 = por %p207, %p208
      %p210 = scmp.ne.s32.totalorder %s199, %s200
      %p211 = scmp.eq.s32.totalorder %s29, 0
      %p212 = por %p210, %p211
      %p213 = scmp.ne.s32.totalorder %s199, %s200
      %p214 = scmp.eq.s32.totalorder %s30, 1
      %p215 = por %p213, %p214
      %p217 = scmp.ne.s32.totalorder %s200, %s216
      %p218 = scmp.eq.s32.totalorder %s30, 0
      %p219 = por %p217, %p218
      %p220 = scmp.le.s32.totalorder 1, %s24
      %p221 = scmp.lt.s32.totalorder %s24, 3
      %p222 = pnand %p220, %p221
      %p223 = pneg %p222
      // Predicated region
      $region9: #{tpu_custom_call.1} parent=5 // pred_check
        _
      $region10: #{tpu_custom_call.1} parent=5 // pred_check_branch
        %225 = sbr.rel (%p222) target = $region12
      $region11: #{tpu_custom_call.1} parent=5 // pred_region
        %s226 = ssub.s32 %s24, 1
        // Predicated region
        $region13: #{tpu_custom_call.1} parent=11 // pred_check
          %p227 = pneg %p71
        $region14: #{tpu_custom_call.1} parent=11 // pred_check_branch
          %229 = sbr.rel (%p227) target = $region16
        $region15: #{tpu_custom_call.1} parent=11 // pred_region
          _
        $region16: #{tpu_custom_call.1} parent=11 // pred_fallthru
          _
        // Predicated region
        $region17: #{tpu_custom_call.1} parent=11 // pred_check
          %p230 = pneg %p92
        $region18: #{tpu_custom_call.1} parent=11 // pred_check_branch
          %232 = sbr.rel (%p230) target = $region20
        $region19: #{tpu_custom_call.1} parent=11 // pred_region
          _
        $region20: #{tpu_custom_call.1} parent=11 // pred_fallthru
          _
        // Predicated region
        $region21: #{tpu_custom_call.1} parent=11 // pred_check
          %p233 = pneg %p113
        $region22: #{tpu_custom_call.1} parent=11 // pred_check_branch
          %235 = sbr.rel (%p233) target = $region24
        $region23: #{tpu_custom_call.1} parent=11 // pred_region
          %s237 = ssub.s32 9216, 9216
          %238 = vsyncadd [#allocation7], %s237
          %s239 = sshll.u32 [#allocation6], 4
          %s240 = int_to_ptr.vmem [resolvable:$true] %s239
          %245 = dma.hbm_to_vmem [thread:$0]  %s3, 9216, %s240, [#allocation7], 64, 64, 4
        $region24: #{tpu_custom_call.1} parent=11 // pred_fallthru
          _
        // Predicated region
        $region25: #{tpu_custom_call.1} parent=11 // pred_check
          %p246 = pneg %p134
        $region26: #{tpu_custom_call.1} parent=11 // pred_check_branch
          %248 = sbr.rel (%p246) target = $region28
        $region27: #{tpu_custom_call.1} parent=11 // pred_region
          %s250 = ssub.s32 1024, 1024
          %251 = vsyncadd [#allocation7], %s250
          %s252 = sshll.u32 [#allocation8], 4
          %s253 = int_to_ptr.vmem [resolvable:$true] %s252
          %258 = dma.hbm_to_vmem [thread:$0]  %s4, 1024, %s253, [#allocation7], 64, 64, 4
        $region28: #{tpu_custom_call.1} parent=11 // pred_fallthru
          _
      $region12: #{tpu_custom_call.1} parent=5 // pred_fallthru
        _
      %p259 = scmp.lt.s32.totalorder %s24, 2
      // Predicated region
      $region29: #{tpu_custom_call.1} parent=5 // pred_check
        %p260 = pneg %p259
      $region30: #{tpu_custom_call.1} parent=5 // pred_check_branch
        %262 = sbr.rel (%p260) target = $region32
      $region31: #{tpu_custom_call.1} parent=5 // pred_region
        // Predicated region
        $region33: #{tpu_custom_call.1} parent=31 // pred_check
          %p263 = pneg %p44
        $region34: #{tpu_custom_call.1} parent=31 // pred_check_branch
          %265 = sbr.rel (%p263) target = $region36
        $region35: #{tpu_custom_call.1} parent=31 // pred_region
          %s266 = sand.u32 %s34, 1
          %s267 = scalar_lea.sflag [#allocation4], %s266
          %s268 = sand.u32 %s34, 1
          %s269 = smul.addr %s268, 256
          %s270 = scalar_lea.vmem [#allocation3], %s269
          %s272 = ssub.s32 4096, 4096
          %273 = vsyncadd %s267, %s272
          %s274 = smul.addr %s24, 32
          %s275 = smul.addr %s274, 128
          %s276 = scalar_lea.hbm %s0, %s275
          %s277 = sshll.u32 %s270, 4
          %s278 = int_to_ptr.vmem [resolvable:$true] %s277
          %283 = dma.hbm_to_vmem [thread:$0]  %s276, 4096, %s278, %s267, 128, 128, 8
        $region36: #{tpu_custom_call.1} parent=31 // pred_fallthru
          _
      $region32: #{tpu_custom_call.1} parent=5 // pred_fallthru
        _
      %p284 = scmp.le.s32.totalorder 1, %s24
      %p285 = scmp.lt.s32.totalorder %s24, 3
      %p286 = pnand %p284, %p285
      %p287 = pneg %p286
      // Predicated region
      $region37: #{tpu_custom_call.1} parent=5 // pred_check
        _
      $region38: #{tpu_custom_call.1} parent=5 // pred_check_branch
        %289 = sbr.rel (%p286) target = $region40
      $region39: #{tpu_custom_call.1} parent=5 // pred_region
        %s290 = ssub.s32 %s24, 1
        %s291 = sand.u32 %s37, 1
        %s292 = scalar_lea.sflag [#allocation4], %s291
        %s293 = sand.u32 %s37, 1
        %s294 = smul.addr %s293, 256
        %s295 = scalar_lea.vmem [#allocation3], %s294
        // Predicated region
        $region41: #{tpu_custom_call.1} parent=39 // pred_check
          %p296 = pneg %p50
        $region42: #{tpu_custom_call.1} parent=39 // pred_check_branch
          %298 = sbr.rel (%p296) target = $region44
        $region43: #{tpu_custom_call.1} parent=39 // pred_region
          %299 = dma.done %s292, 4096
        $region44: #{tpu_custom_call.1} parent=39 // pred_fallthru
          _
        // Predicated region
        $region45: #{tpu_custom_call.1} parent=39 // pred_check
          %p300 = pneg %p113
        $region46: #{tpu_custom_call.1} parent=39 // pred_check_branch
          %302 = sbr.rel (%p300) target = $region48
        $region47: #{tpu_custom_call.1} parent=39 // pred_region
          %303 = dma.done [#allocation7], 9216
        $region48: #{tpu_custom_call.1} parent=39 // pred_fallthru
          _
        // Predicated region
        $region49: #{tpu_custom_call.1} parent=39 // pred_check
          %p304 = pneg %p134
        $region50: #{tpu_custom_call.1} parent=39 // pred_check_branch
          %306 = sbr.rel (%p304) target = $region52
        $region51: #{tpu_custom_call.1} parent=39 // pred_region
          %307 = dma.done [#allocation7], 1024
        $region52: #{tpu_custom_call.1} parent=39 // pred_fallthru
          _
        %s308 = sand.u32 %s37, 1
        %s309 = scalar_lea.sflag [#allocation4], %s308
        %s310 = sand.u32 %s37, 1
        %s311 = smul.addr %s310, 256
        %s312 = scalar_lea.vmem [#allocation3], %s311
        %p313 = pneg %p50
        %p314 = pneg %p47
        %p315 = pneg %p71
        %p316 = pneg %p68
        %p317 = pneg %p92
        %p318 = pneg %p89
        %p319 = pneg %p113
        %p320 = pneg %p110
        %p321 = pneg %p134
        %p322 = pneg %p131
        %p323 = pneg %p160
        %p324 = pneg %p157
        %s325 = sand.u32 %s147, 1
        %s326 = scalar_lea.sflag [#allocation5], %s325
        %s327 = sand.u32 %s147, 1
        %s328 = smul.addr %s327, 256
        %s329 = scalar_lea.vmem [#allocation9], %s328
        %p330 = pneg %p186
        %p331 = pneg %p183
        %s332 = sand.u32 %s29, 1
        %s333 = scalar_lea.sflag [#allocation11], %s332
        %s334 = sand.u32 %s173, 1
        %s335 = scalar_lea.vmem [#allocation10], %s334
        %p336 = pneg %p212
        %p337 = pneg %p209
        %s338 = sand.u32 %s29, 1
        %s339 = scalar_lea.sflag [#allocation11], %s338
        %s340 = sand.u32 %s199, 1
        %s341 = scalar_lea.vmem [#allocation12], %s340
        %v343 = vld [vmem:[%s295] sm:$0xff]
        %v344 = vld [vmem:[%s295 + $0x8] sm:$0xff]
        %v345 = vld [vmem:[%s295 + $0x10] sm:$0xff]
        %v346 = vld [vmem:[%s295 + $0x18] sm:$0xff]
        %v347 = vld [vmem:[%s295 + $0x20] sm:$0xff]
        %v348 = vld [vmem:[%s295 + $0x28] sm:$0xff]
        %v349 = vld [vmem:[%s295 + $0x30] sm:$0xff]
        %v350 = vld [vmem:[%s295 + $0x38] sm:$0xff]
        %v351 = vld [vmem:[%s295 + $0x40] sm:$0xff]
        %v352 = vld [vmem:[%s295 + $0x48] sm:$0xff]
        %v353 = vld [vmem:[%s295 + $0x50] sm:$0xff]
        %v354 = vld [vmem:[%s295 + $0x58] sm:$0xff]
        %v355 = vld [vmem:[%s295 + $0x60] sm:$0xff]
        %v356 = vld [vmem:[%s295 + $0x68] sm:$0xff]
        %v357 = vld [vmem:[%s295 + $0x70] sm:$0xff]
        %v358 = vld [vmem:[%s295 + $0x78] sm:$0xff]
        %v359 = vld [vmem:[%s295 + $0x80] sm:$0xff]
        %v360 = vld [vmem:[%s295 + $0x88] sm:$0xff]
        %v361 = vld [vmem:[%s295 + $0x90] sm:$0xff]
        %v362 = vld [vmem:[%s295 + $0x98] sm:$0xff]
        %v363 = vld [vmem:[%s295 + $0xa0] sm:$0xff]
        %v364 = vld [vmem:[%s295 + $0xa8] sm:$0xff]
        %v365 = vld [vmem:[%s295 + $0xb0] sm:$0xff]
        %v366 = vld [vmem:[%s295 + $0xb8] sm:$0xff]
        %v367 = vld [vmem:[%s295 + $0xc0] sm:$0xff]
        %v368 = vld [vmem:[%s295 + $0xc8] sm:$0xff]
        %v369 = vld [vmem:[%s295 + $0xd0] sm:$0xff]
        %v370 = vld [vmem:[%s295 + $0xd8] sm:$0xff]
        %v371 = vld [vmem:[%s295 + $0xe0] sm:$0xff]
        %v372 = vld [vmem:[%s295 + $0xe8] sm:$0xff]
        %v373 = vld [vmem:[%s295 + $0xf0] sm:$0xff]
        %v374 = vld [vmem:[%s295 + $0xf8] sm:$0xff]
        %v375 = vld [vmem:[%s1] sm:$0x1]
        %v377 = vlaneseq
        %v378 = vshrl.u32 %v377, 7
        %v379 = vsub.s32 0, %v378
        %v380 = vrot.slane %v375, %v379
        %v382 = vmul.f32 %v343, %v380
        %v383 = vmul.f32 %v344, %v380
        %v384 = vmul.f32 %v345, %v380
        %v385 = vmul.f32 %v346, %v380
        %v386 = vmul.f32 %v347, %v380
        %v387 = vmul.f32 %v348, %v380
        %v388 = vmul.f32 %v349, %v380
        %v389 = vmul.f32 %v350, %v380
        %v390 = vmul.f32 %v351, %v380
        %v391 = vmul.f32 %v352, %v380
        %v392 = vmul.f32 %v353, %v380
        %v393 = vmul.f32 %v354, %v380
        %v394 = vmul.f32 %v355, %v380
        %v395 = vmul.f32 %v356, %v380
        %v396 = vmul.f32 %v357, %v380
        %v397 = vmul.f32 %v358, %v380
        %v398 = vmul.f32 %v359, %v380
        %v399 = vmul.f32 %v360, %v380
        %v400 = vmul.f32 %v361, %v380
        %v401 = vmul.f32 %v362, %v380
        %v402 = vmul.f32 %v363, %v380
        %v403 = vmul.f32 %v364, %v380
        %v404 = vmul.f32 %v365, %v380
        %v405 = vmul.f32 %v366, %v380
        %v406 = vmul.f32 %v367, %v380
        %v407 = vmul.f32 %v368, %v380
        %v408 = vmul.f32 %v369, %v380
        %v409 = vmul.f32 %v370, %v380
        %v410 = vmul.f32 %v371, %v380
        %v411 = vmul.f32 %v372, %v380
        %v412 = vmul.f32 %v373, %v380
        %v413 = vmul.f32 %v374, %v380
        %v414 = vld [vmem:[%s2] sm:$0x1]
        %v416 = vlaneseq
        %v417 = vshrl.u32 %v416, 7
        %v418 = vsub.s32 0, %v417
        %v419 = vrot.slane %v414, %v418
        %v421 = vadd.f32 %v382, %v419
        %v422 = vadd.f32 %v383, %v419
        %v423 = vadd.f32 %v384, %v419
        %v424 = vadd.f32 %v385, %v419
        %v425 = vadd.f32 %v386, %v419
        %v426 = vadd.f32 %v387, %v419
        %v427 = vadd.f32 %v388, %v419
        %v428 = vadd.f32 %v389, %v419
        %v429 = vadd.f32 %v390, %v419
        %v430 = vadd.f32 %v391, %v419
        %v431 = vadd.f32 %v392, %v419
        %v432 = vadd.f32 %v393, %v419
        %v433 = vadd.f32 %v394, %v419
        %v434 = vadd.f32 %v395, %v419
        %v435 = vadd.f32 %v396, %v419
        %v436 = vadd.f32 %v397, %v419
        %v437 = vadd.f32 %v398, %v419
        %v438 = vadd.f32 %v399, %v419
        %v439 = vadd.f32 %v400, %v419
        %v440 = vadd.f32 %v401, %v419
        %v441 = vadd.f32 %v402, %v419
        %v442 = vadd.f32 %v403, %v419
        %v443 = vadd.f32 %v404, %v419
        %v444 = vadd.f32 %v405, %v419
        %v445 = vadd.f32 %v406, %v419
        %v446 = vadd.f32 %v407, %v419
        %v447 = vadd.f32 %v408, %v419
        %v448 = vadd.f32 %v409, %v419
        %v449 = vadd.f32 %v410, %v419
        %v450 = vadd.f32 %v411, %v419
        %v451 = vadd.f32 %v412, %v419
        %v452 = vadd.f32 %v413, %v419
        %v453 = vmax.f32 %v421, 0.0
        %v454 = vmax.f32 %v422, 0.0
        %v455 = vmax.f32 %v423, 0.0
        %v456 = vmax.f32 %v424, 0.0
        %v457 = vmax.f32 %v425, 0.0
        %v458 = vmax.f32 %v426, 0.0
        %v459 = vmax.f32 %v427, 0.0
        %v460 = vmax.f32 %v428, 0.0
        %v461 = vmax.f32 %v429, 0.0
        %v462 = vmax.f32 %v430, 0.0
        %v463 = vmax.f32 %v431, 0.0
        %v464 = vmax.f32 %v432, 0.0
        %v465 = vmax.f32 %v433, 0.0
        %v466 = vmax.f32 %v434, 0.0
        %v467 = vmax.f32 %v435, 0.0
        %v468 = vmax.f32 %v436, 0.0
        %v469 = vmax.f32 %v437, 0.0
        %v470 = vmax.f32 %v438, 0.0
        %v471 = vmax.f32 %v439, 0.0
        %v472 = vmax.f32 %v440, 0.0
        %v473 = vmax.f32 %v441, 0.0
        %v474 = vmax.f32 %v442, 0.0
        %v475 = vmax.f32 %v443, 0.0
        %v476 = vmax.f32 %v444, 0.0
        %v477 = vmax.f32 %v445, 0.0
        %v478 = vmax.f32 %v446, 0.0
        %v479 = vmax.f32 %v447, 0.0
        %v480 = vmax.f32 %v448, 0.0
        %v481 = vmax.f32 %v449, 0.0
        %v482 = vmax.f32 %v450, 0.0
        %v483 = vmax.f32 %v451, 0.0
        %v484 = vmax.f32 %v452, 0.0
        %v485 = vpack.c.bf16 %v454, %v453
        %v486 = vpack.c.bf16 %v456, %v455
        %v487 = vpack.c.bf16 %v458, %v457
        %v488 = vpack.c.bf16 %v460, %v459
        %v489 = vpack.c.bf16 %v462, %v461
        %v490 = vpack.c.bf16 %v464, %v463
        %v491 = vpack.c.bf16 %v466, %v465
        %v492 = vpack.c.bf16 %v468, %v467
        %v493 = vpack.c.bf16 %v470, %v469
        %v494 = vpack.c.bf16 %v472, %v471
        %v495 = vpack.c.bf16 %v474, %v473
        %v496 = vpack.c.bf16 %v476, %v475
        %v497 = vpack.c.bf16 %v478, %v477
        %v498 = vpack.c.bf16 %v480, %v479
        %v499 = vpack.c.bf16 %v482, %v481
        %v500 = vpack.c.bf16 %v484, %v483
        %501 = vst [vmem:[#allocation2] sm:$0xf] 0
        %502 = vst [vmem:[#allocation2 + $0x4] sm:$0xf] 0
        %503 = vst [vmem:[#allocation2 + $0x8] sm:$0x1] 0
        %s504 = scalar_lea.vmem [#allocation2], 204
        %505 = vst [vmem:[%s504] sm:$0xf] 0
        %506 = vst [vmem:[%s504 + $0x4] sm:$0xf] 0
        %507 = vst [vmem:[%s504 + $0x8] sm:$0x1] 0
        %vm508 = vcmask 1040384
        %vm509 = vsmask.f32 256
        %vm510 = vmand %vm508, %vm509
        %v511 = vld [vmem:[#allocation2] sm:$0x1]
        %v512 = vsel %vm510, 0, %v511
        %513 = vst [vmem:[#allocation2] sm:$0x1] %v512
        %v514 = vld [vmem:[#allocation2 + $0xc] sm:$0x1]
        %v515 = vsel %vm510, 0, %v514
        %516 = vst [vmem:[#allocation2 + $0xc] sm:$0x1] %v515
        %v517 = vld [vmem:[#allocation2 + $0x18] sm:$0x1]
        %v518 = vsel %vm510, 0, %v517
        %519 = vst [vmem:[#allocation2 + $0x18] sm:$0x1] %v518
        %v520 = vld [vmem:[#allocation2 + $0x24] sm:$0x1]
        %v521 = vsel %vm510, 0, %v520
        %522 = vst [vmem:[#allocation2 + $0x24] sm:$0x1] %v521
        %v523 = vld [vmem:[#allocation2 + $0x30] sm:$0x1]
        %v524 = vsel %vm510, 0, %v523
        %525 = vst [vmem:[#allocation2 + $0x30] sm:$0x1] %v524
        %v526 = vld [vmem:[#allocation2 + $0x3c] sm:$0x1]
        %v527 = vsel %vm510, 0, %v526
        %528 = vst [vmem:[#allocation2 + $0x3c] sm:$0x1] %v527
        %v529 = vld [vmem:[#allocation2 + $0x48] sm:$0x1]
        %v530 = vsel %vm510, 0, %v529
        %531 = vst [vmem:[#allocation2 + $0x48] sm:$0x1] %v530
        %v532 = vld [vmem:[#allocation2 + $0x54] sm:$0x1]
        %v533 = vsel %vm510, 0, %v532
        %534 = vst [vmem:[#allocation2 + $0x54] sm:$0x1] %v533
        %v535 = vld [vmem:[#allocation2 + $0x60] sm:$0x1]
        %v536 = vsel %vm510, 0, %v535
        %537 = vst [vmem:[#allocation2 + $0x60] sm:$0x1] %v536
        %v538 = vld [vmem:[#allocation2 + $0x6c] sm:$0x1]
        %v539 = vsel %vm510, 0, %v538
        %540 = vst [vmem:[#allocation2 + $0x6c] sm:$0x1] %v539
        %v541 = vld [vmem:[#allocation2 + $0x78] sm:$0x1]
        %v542 = vsel %vm510, 0, %v541
        %543 = vst [vmem:[#allocation2 + $0x78] sm:$0x1] %v542
        %v544 = vld [vmem:[#allocation2 + $0x84] sm:$0x1]
        %v545 = vsel %vm510, 0, %v544
        %546 = vst [vmem:[#allocation2 + $0x84] sm:$0x1] %v545
        %v547 = vld [vmem:[#allocation2 + $0x90] sm:$0x1]
        %v548 = vsel %vm510, 0, %v547
        %549 = vst [vmem:[#allocation2 + $0x90] sm:$0x1] %v548
        %v550 = vld [vmem:[#allocation2 + $0x9c] sm:$0x1]
        %v551 = vsel %vm510, 0, %v550
        %552 = vst [vmem:[#allocation2 + $0x9c] sm:$0x1] %v551
        %v553 = vld [vmem:[#allocation2 + $0xa8] sm:$0x1]
        %v554 = vsel %vm510, 0, %v553
        %555 = vst [vmem:[#allocation2 + $0xa8] sm:$0x1] %v554
        %v556 = vld [vmem:[#allocation2 + $0xb4] sm:$0x1]
        %v557 = vsel %vm510, 0, %v556
        %558 = vst [vmem:[#allocation2 + $0xb4] sm:$0x1] %v557
        %v559 = vld [vmem:[#allocation2 + $0xc0] sm:$0x1]
        %v560 = vsel %vm510, 0, %v559
        %561 = vst [vmem:[#allocation2 + $0xc0] sm:$0x1] %v560
        %v562 = vld [vmem:[#allocation2 + $0xcc] sm:$0x1]
        %v563 = vsel %vm510, 0, %v562
        %564 = vst [vmem:[#allocation2 + $0xcc] sm:$0x1] %v563
        %vm565 = vsmask.f32 7938
        %vm566 = vmand %vm508, %vm565
        %v567 = vld [vmem:[#allocation2 + $0x8] sm:$0x1]
        %v568 = vsel %vm566, 0, %v567
        %569 = vst [vmem:[#allocation2 + $0x8] sm:$0x1] %v568
        %v570 = vld [vmem:[#allocation2 + $0x14] sm:$0x1]
        %v571 = vsel %vm566, 0, %v570
        %572 = vst [vmem:[#allocation2 + $0x14] sm:$0x1] %v571
        %v573 = vld [vmem:[#allocation2 + $0x20] sm:$0x1]
        %v574 = vsel %vm566, 0, %v573
        %575 = vst [vmem:[#allocation2 + $0x20] sm:$0x1] %v574
        %v576 = vld [vmem:[#allocation2 + $0x2c] sm:$0x1]
        %v577 = vsel %vm566, 0, %v576
        %578 = vst [vmem:[#allocation2 + $0x2c] sm:$0x1] %v577
        %v579 = vld [vmem:[#allocation2 + $0x38] sm:$0x1]
        %v580 = vsel %vm566, 0, %v579
        %581 = vst [vmem:[#allocation2 + $0x38] sm:$0x1] %v580
        %v582 = vld [vmem:[#allocation2 + $0x44] sm:$0x1]
        %v583 = vsel %vm566, 0, %v582
        %584 = vst [vmem:[#allocation2 + $0x44] sm:$0x1] %v583
        %v585 = vld [vmem:[#allocation2 + $0x50] sm:$0x1]
        %v586 = vsel %vm566, 0, %v585
        %587 = vst [vmem:[#allocation2 + $0x50] sm:$0x1] %v586
        %v588 = vld [vmem:[#allocation2 + $0x5c] sm:$0x1]
        %v589 = vsel %vm566, 0, %v588
        %590 = vst [vmem:[#allocation2 + $0x5c] sm:$0x1] %v589
        %v591 = vld [vmem:[#allocation2 + $0x68] sm:$0x1]
        %v592 = vsel %vm566, 0, %v591
        %593 = vst [vmem:[#allocation2 + $0x68] sm:$0x1] %v592
        %v594 = vld [vmem:[#allocation2 + $0x74] sm:$0x1]
        %v595 = vsel %vm566, 0, %v594
        %596 = vst [vmem:[#allocation2 + $0x74] sm:$0x1] %v595
        %v597 = vld [vmem:[#allocation2 + $0x80] sm:$0x1]
        %v598 = vsel %vm566, 0, %v597
        %599 = vst [vmem:[#allocation2 + $0x80] sm:$0x1] %v598
        %v600 = vld [vmem:[#allocation2 + $0x8c] sm:$0x1]
        %v601 = vsel %vm566, 0, %v600
        %602 = vst [vmem:[#allocation2 + $0x8c] sm:$0x1] %v601
        %v603 = vld [vmem:[#allocation2 + $0x98] sm:$0x1]
        %v604 = vsel %vm566, 0, %v603
        %605 = vst [vmem:[#allocation2 + $0x98] sm:$0x1] %v604
        %v606 = vld [vmem:[#allocation2 + $0xa4] sm:$0x1]
        %v607 = vsel %vm566, 0, %v606
        %608 = vst [vmem:[#allocation2 + $0xa4] sm:$0x1] %v607
        %v609 = vld [vmem:[#allocation2 + $0xb0] sm:$0x1]
        %v610 = vsel %vm566, 0, %v609
        %611 = vst [vmem:[#allocation2 + $0xb0] sm:$0x1] %v610
        %v612 = vld [vmem:[#allocation2 + $0xbc] sm:$0x1]
        %v613 = vsel %vm566, 0, %v612
        %614 = vst [vmem:[#allocation2 + $0xbc] sm:$0x1] %v613
        %v615 = vld [vmem:[#allocation2 + $0xc8] sm:$0x1]
        %v616 = vsel %vm566, 0, %v615
        %617 = vst [vmem:[#allocation2 + $0xc8] sm:$0x1] %v616
        %v618 = vld [vmem:[#allocation2 + $0xd4] sm:$0x1]
        %v619 = vsel %vm566, 0, %v618
        %620 = vst [vmem:[#allocation2 + $0xd4] sm:$0x1] %v619
        %v637 = vunpack.c.l.b16 %v485
        %v638 = vunpack.c.h.b16 %v485
        %v639 = vunpack.c.l.b16 %v486
        %v640 = vunpack.c.h.b16 %v486
        %v641 = vunpack.c.l.b16 %v487
        %v642 = vunpack.c.h.b16 %v487
        %v643 = vunpack.c.l.b16 %v488
        %v644 = vunpack.c.h.b16 %v488
        %v645 = vunpack.c.l.b16 %v489
        %v646 = vunpack.c.h.b16 %v489
        %v647 = vunpack.c.l.b16 %v490
        %v648 = vunpack.c.h.b16 %v490
        %v649 = vunpack.c.l.b16 %v491
        %v650 = vunpack.c.h.b16 %v491
        %v651 = vunpack.c.l.b16 %v492
        %v652 = vunpack.c.h.b16 %v492
        %v653 = vunpack.c.l.b16 %v493
        %v654 = vunpack.c.h.b16 %v493
        %v655 = vunpack.c.l.b16 %v494
        %v656 = vunpack.c.h.b16 %v494
        %v657 = vunpack.c.l.b16 %v495
        %v658 = vunpack.c.h.b16 %v495
        %v659 = vunpack.c.l.b16 %v496
        %v660 = vunpack.c.h.b16 %v496
        %v661 = vunpack.c.l.b16 %v497
        %v662 = vunpack.c.h.b16 %v497
        %v663 = vunpack.c.l.b16 %v498
        %v664 = vunpack.c.h.b16 %v498
        %v665 = vunpack.c.l.b16 %v499
        %v666 = vunpack.c.h.b16 %v499
        %v667 = vunpack.c.l.b16 %v500
        %v668 = vunpack.c.h.b16 %v500
        %v669 = vpack.c.b16 %v637, %v637
        %v670 = vpack.c.b16 %v638, %v638
        %v671 = vpack.c.b16 %v639, %v639
        %v672 = vpack.c.b16 %v640, %v640
        %v673 = vpack.c.b16 %v641, %v641
        %v674 = vpack.c.b16 %v642, %v642
        %v675 = vpack.c.b16 %v643, %v643
        %v676 = vpack.c.b16 %v644, %v644
        %v677 = vpack.c.b16 %v645, %v645
        %v678 = vpack.c.b16 %v646, %v646
        %v679 = vpack.c.b16 %v647, %v647
        %v680 = vpack.c.b16 %v648, %v648
        %v681 = vpack.c.b16 %v649, %v649
        %v682 = vpack.c.b16 %v650, %v650
        %v683 = vpack.c.b16 %v651, %v651
        %v684 = vpack.c.b16 %v652, %v652
        %v685 = vpack.c.b16 %v653, %v653
        %v686 = vpack.c.b16 %v654, %v654
        %v687 = vpack.c.b16 %v655, %v655
        %v688 = vpack.c.b16 %v656, %v656
        %v689 = vpack.c.b16 %v657, %v657
        %v690 = vpack.c.b16 %v658, %v658
        %v691 = vpack.c.b16 %v659, %v659
        %v692 = vpack.c.b16 %v660, %v660
        %v693 = vpack.c.b16 %v661, %v661
        %v694 = vpack.c.b16 %v662, %v662
        %v695 = vpack.c.b16 %v663, %v663
        %v696 = vpack.c.b16 %v664, %v664
        %v697 = vpack.c.b16 %v665, %v665
        %v698 = vpack.c.b16 %v666, %v666
        %v699 = vpack.c.b16 %v667, %v667
        %v700 = vpack.c.b16 %v668, %v668
        %vm701 = vsmask.f32 4368
        %vm702 = vmor %vm509, %vm701
        %v704 = vshrl.u32 %v669, 16
        %v706 = vrot.slane %v704, 7
        %v707 = vshll.u32 %v669, 16
        %v709 = vor.u32 %v706, %v707
        %v710 = vrot.slane %v706, 4
        %v712 = vshrl.u32 %v670, 16
        %v714 = vrot.slane %v712, 7
        %v715 = vshll.u32 %v670, 16
        %v717 = vor.u32 %v714, %v715
        %v718 = vsel %vm702, %v710, %v717
        %v719 = vrot.slane %v714, 4
        %v721 = vshrl.u32 %v671, 16
        %v723 = vrot.slane %v721, 7
        %v724 = vshll.u32 %v671, 16
        %v726 = vor.u32 %v723, %v724
        %v727 = vrot.slane %v723, 4
        %v729 = vshrl.u32 %v672, 16
        %v731 = vrot.slane %v729, 7
        %v732 = vshll.u32 %v672, 16
        %v734 = vor.u32 %v731, %v732
        %v735 = vsel %vm702, %v727, %v734
        %v736 = vrot.slane %v731, 4
        %v738 = vshrl.u32 %v673, 16
        %v740 = vrot.slane %v738, 7
        %v741 = vshll.u32 %v673, 16
        %v743 = vor.u32 %v740, %v741
        %v744 = vrot.slane %v740, 4
        %v746 = vshrl.u32 %v674, 16
        %v748 = vrot.slane %v746, 7
        %v749 = vshll.u32 %v674, 16
        %v751 = vor.u32 %v748, %v749
        %v752 = vsel %vm702, %v744, %v751
        %v753 = vrot.slane %v748, 4
        %v755 = vshrl.u32 %v675, 16
        %v757 = vrot.slane %v755, 7
        %v758 = vshll.u32 %v675, 16
        %v760 = vor.u32 %v757, %v758
        %v761 = vrot.slane %v757, 4
        %v763 = vshrl.u32 %v676, 16
        %v765 = vrot.slane %v763, 7
        %v766 = vshll.u32 %v676, 16
        %v768 = vor.u32 %v765, %v766
        %v769 = vsel %vm702, %v761, %v768
        %v770 = vrot.slane %v765, 4
        %v772 = vshrl.u32 %v677, 16
        %v774 = vrot.slane %v772, 7
        %v775 = vshll.u32 %v677, 16
        %v777 = vor.u32 %v774, %v775
        %v778 = vrot.slane %v774, 4
        %v780 = vshrl.u32 %v678, 16
        %v782 = vrot.slane %v780, 7
        %v783 = vshll.u32 %v678, 16
        %v785 = vor.u32 %v782, %v783
        %v786 = vsel %vm702, %v778, %v785
        %v787 = vrot.slane %v782, 4
        %v789 = vshrl.u32 %v679, 16
        %v791 = vrot.slane %v789, 7
        %v792 = vshll.u32 %v679, 16
        %v794 = vor.u32 %v791, %v792
        %v795 = vrot.slane %v791, 4
        %v797 = vshrl.u32 %v680, 16
        %v799 = vrot.slane %v797, 7
        %v800 = vshll.u32 %v680, 16
        %v802 = vor.u32 %v799, %v800
        %v803 = vsel %vm702, %v795, %v802
        %v804 = vrot.slane %v799, 4
        %v806 = vshrl.u32 %v681, 16
        %v808 = vrot.slane %v806, 7
        %v809 = vshll.u32 %v681, 16
        %v811 = vor.u32 %v808, %v809
        %v812 = vrot.slane %v808, 4
        %v814 = vshrl.u32 %v682, 16
        %v816 = vrot.slane %v814, 7
        %v817 = vshll.u32 %v682, 16
        %v819 = vor.u32 %v816, %v817
        %v820 = vsel %vm702, %v812, %v819
        %v821 = vrot.slane %v816, 4
        %v823 = vshrl.u32 %v683, 16
        %v825 = vrot.slane %v823, 7
        %v826 = vshll.u32 %v683, 16
        %v828 = vor.u32 %v825, %v826
        %v829 = vrot.slane %v825, 4
        %v831 = vshrl.u32 %v684, 16
        %v833 = vrot.slane %v831, 7
        %v834 = vshll.u32 %v684, 16
        %v836 = vor.u32 %v833, %v834
        %v837 = vsel %vm702, %v829, %v836
        %v838 = vrot.slane %v833, 4
        %v840 = vshrl.u32 %v685, 16
        %v842 = vrot.slane %v840, 7
        %v843 = vshll.u32 %v685, 16
        %v845 = vor.u32 %v842, %v843
        %v846 = vrot.slane %v842, 4
        %v848 = vshrl.u32 %v686, 16
        %v850 = vrot.slane %v848, 7
        %v851 = vshll.u32 %v686, 16
        %v853 = vor.u32 %v850, %v851
        %v854 = vsel %vm702, %v846, %v853
        %v855 = vrot.slane %v850, 4
        %v857 = vshrl.u32 %v687, 16
        %v859 = vrot.slane %v857, 7
        %v860 = vshll.u32 %v687, 16
        %v862 = vor.u32 %v859, %v860
        %v863 = vrot.slane %v859, 4
        %v865 = vshrl.u32 %v688, 16
        %v867 = vrot.slane %v865, 7
        %v868 = vshll.u32 %v688, 16
        %v870 = vor.u32 %v867, %v868
        %v871 = vsel %vm702, %v863, %v870
        %v872 = vrot.slane %v867, 4
        %v874 = vshrl.u32 %v689, 16
        %v876 = vrot.slane %v874, 7
        %v877 = vshll.u32 %v689, 16
        %v879 = vor.u32 %v876, %v877
        %v880 = vrot.slane %v876, 4
        %v882 = vshrl.u32 %v690, 16
        %v884 = vrot.slane %v882, 7
        %v885 = vshll.u32 %v690, 16
        %v887 = vor.u32 %v884, %v885
        %v888 = vsel %vm702, %v880, %v887
        %v889 = vrot.slane %v884, 4
        %v891 = vshrl.u32 %v691, 16
        %v893 = vrot.slane %v891, 7
        %v894 = vshll.u32 %v691, 16
        %v896 = vor.u32 %v893, %v894
        %v897 = vrot.slane %v893, 4
        %v899 = vshrl.u32 %v692, 16
        %v901 = vrot.slane %v899, 7
        %v902 = vshll.u32 %v692, 16
        %v904 = vor.u32 %v901, %v902
        %v905 = vsel %vm702, %v897, %v904
        %v906 = vrot.slane %v901, 4
        %v908 = vshrl.u32 %v693, 16
        %v910 = vrot.slane %v908, 7
        %v911 = vshll.u32 %v693, 16
        %v913 = vor.u32 %v910, %v911
        %v914 = vrot.slane %v910, 4
        %v916 = vshrl.u32 %v694, 16
        %v918 = vrot.slane %v916, 7
        %v919 = vshll.u32 %v694, 16
        %v921 = vor.u32 %v918, %v919
        %v922 = vsel %vm702, %v914, %v921
        %v923 = vrot.slane %v918, 4
        %v925 = vshrl.u32 %v695, 16
        %v927 = vrot.slane %v925, 7
        %v928 = vshll.u32 %v695, 16
        %v930 = vor.u32 %v927, %v928
        %v931 = vrot.slane %v927, 4
        %v933 = vshrl.u32 %v696, 16
        %v935 = vrot.slane %v933, 7
        %v936 = vshll.u32 %v696, 16
        %v938 = vor.u32 %v935, %v936
        %v939 = vsel %vm702, %v931, %v938
        %v940 = vrot.slane %v935, 4
        %v942 = vshrl.u32 %v697, 16
        %v944 = vrot.slane %v942, 7
        %v945 = vshll.u32 %v697, 16
        %v947 = vor.u32 %v944, %v945
        %v948 = vrot.slane %v944, 4
        %v950 = vshrl.u32 %v698, 16
        %v952 = vrot.slane %v950, 7
        %v953 = vshll.u32 %v698, 16
        %v955 = vor.u32 %v952, %v953
        %v956 = vsel %vm702, %v948, %v955
        %v957 = vrot.slane %v952, 4
        %v959 = vshrl.u32 %v699, 16
        %v961 = vrot.slane %v959, 7
        %v962 = vshll.u32 %v699, 16
        %v964 = vor.u32 %v961, %v962
        %v965 = vrot.slane %v961, 4
        %v967 = vshrl.u32 %v700, 16
        %v969 = vrot.slane %v967, 7
        %v970 = vshll.u32 %v700, 16
        %v972 = vor.u32 %v969, %v970
        %v973 = vsel %vm702, %v965, %v972
        %v974 = vrot.slane %v969, 4
        %s1023 = scalar_lea.vmem [#allocation2], 12
        %vm1024 = vcmask 1043456
        %vm1025 = vmand %vm1024, %vm565
        %v1026 = vld [vmem:[%s1023] sm:$0xf]
        %v1027 = vsel %vm1025, %v709, %v1026
        %1028 = vst [vmem:[%s1023] sm:$0xf] %v1027
        %1029 = vst [vmem:[%s1023 + $0x4] sm:$0xf] %v718
        %v1030 = vld [vmem:[%s1023 + $0x8] sm:$0x1]
        %v1031 = vsel %vm510, %v719, %v1030
        %1032 = vst [vmem:[%s1023 + $0x8] sm:$0x1] %v1031
        %v1033 = vld [vmem:[%s1023 + $0xc] sm:$0xf]
        %v1034 = vsel %vm1025, %v726, %v1033
        %1035 = vst [vmem:[%s1023 + $0xc] sm:$0xf] %v1034
        %1036 = vst [vmem:[%s1023 + $0x10] sm:$0xf] %v735
        %v1037 = vld [vmem:[%s1023 + $0x14] sm:$0x1]
        %v1038 = vsel %vm510, %v736, %v1037
        %1039 = vst [vmem:[%s1023 + $0x14] sm:$0x1] %v1038
        %v1040 = vld [vmem:[%s1023 + $0x18] sm:$0xf]
        %v1041 = vsel %vm1025, %v743, %v1040
        %1042 = vst [vmem:[%s1023 + $0x18] sm:$0xf] %v1041
        %1043 = vst [vmem:[%s1023 + $0x1c] sm:$0xf] %v752
        %v1044 = vld [vmem:[%s1023 + $0x20] sm:$0x1]
        %v1045 = vsel %vm510, %v753, %v1044
        %1046 = vst [vmem:[%s1023 + $0x20] sm:$0x1] %v1045
        %v1047 = vld [vmem:[%s1023 + $0x24] sm:$0xf]
        %v1048 = vsel %vm1025, %v760, %v1047
        %1049 = vst [vmem:[%s1023 + $0x24] sm:$0xf] %v1048
        %1050 = vst [vmem:[%s1023 + $0x28] sm:$0xf] %v769
        %v1051 = vld [vmem:[%s1023 + $0x2c] sm:$0x1]
        %v1052 = vsel %vm510, %v770, %v1051
        %1053 = vst [vmem:[%s1023 + $0x2c] sm:$0x1] %v1052
        %v1054 = vld [vmem:[%s1023 + $0x30] sm:$0xf]
        %v1055 = vsel %vm1025, %v777, %v1054
        %1056 = vst [vmem:[%s1023 + $0x30] sm:$0xf] %v1055
        %1057 = vst [vmem:[%s1023 + $0x34] sm:$0xf] %v786
        %v1058 = vld [vmem:[%s1023 + $0x38] sm:$0x1]
        %v1059 = vsel %vm510, %v787, %v1058
        %1060 = vst [vmem:[%s1023 + $0x38] sm:$0x1] %v1059
        %v1061 = vld [vmem:[%s1023 + $0x3c] sm:$0xf]
        %v1062 = vsel %vm1025, %v794, %v1061
        %1063 = vst [vmem:[%s1023 + $0x3c] sm:$0xf] %v1062
        %1064 = vst [vmem:[%s1023 + $0x40] sm:$0xf] %v803
        %v1065 = vld [vmem:[%s1023 + $0x44] sm:$0x1]
        %v1066 = vsel %vm510, %v804, %v1065
        %1067 = vst [vmem:[%s1023 + $0x44] sm:$0x1] %v1066
        %v1068 = vld [vmem:[%s1023 + $0x48] sm:$0xf]
        %v1069 = vsel %vm1025, %v811, %v1068
        %1070 = vst [vmem:[%s1023 + $0x48] sm:$0xf] %v1069
        %1071 = vst [vmem:[%s1023 + $0x4c] sm:$0xf] %v820
        %v1072 = vld [vmem:[%s1023 + $0x50] sm:$0x1]
        %v1073 = vsel %vm510, %v821, %v1072
        %1074 = vst [vmem:[%s1023 + $0x50] sm:$0x1] %v1073
        %v1075 = vld [vmem:[%s1023 + $0x54] sm:$0xf]
        %v1076 = vsel %vm1025, %v828, %v1075
        %1077 = vst [vmem:[%s1023 + $0x54] sm:$0xf] %v1076
        %1078 = vst [vmem:[%s1023 + $0x58] sm:$0xf] %v837
        %v1079 = vld [vmem:[%s1023 + $0x5c] sm:$0x1]
        %v1080 = vsel %vm510, %v838, %v1079
        %1081 = vst [vmem:[%s1023 + $0x5c] sm:$0x1] %v1080
        %v1082 = vld [vmem:[%s1023 + $0x60] sm:$0xf]
        %v1083 = vsel %vm1025, %v845, %v1082
        %1084 = vst [vmem:[%s1023 + $0x60] sm:$0xf] %v1083
        %1085 = vst [vmem:[%s1023 + $0x64] sm:$0xf] %v854
        %v1086 = vld [vmem:[%s1023 + $0x68] sm:$0x1]
        %v1087 = vsel %vm510, %v855, %v1086
        %1088 = vst [vmem:[%s1023 + $0x68] sm:$0x1] %v1087
        %v1089 = vld [vmem:[%s1023 + $0x6c] sm:$0xf]
        %v1090 = vsel %vm1025, %v862, %v1089
        %1091 = vst [vmem:[%s1023 + $0x6c] sm:$0xf] %v1090
        %1092 = vst [vmem:[%s1023 + $0x70] sm:$0xf] %v871
        %v1093 = vld [vmem:[%s1023 + $0x74] sm:$0x1]
        %v1094 = vsel %vm510, %v872, %v1093
        %1095 = vst [vmem:[%s1023 + $0x74] sm:$0x1] %v1094
        %v1096 = vld [vmem:[%s1023 + $0x78] sm:$0xf]
        %v1097 = vsel %vm1025, %v879, %v1096
        %1098 = vst [vmem:[%s1023 + $0x78] sm:$0xf] %v1097
        %1099 = vst [vmem:[%s1023 + $0x7c] sm:$0xf] %v888
        %v1100 = vld [vmem:[%s1023 + $0x80] sm:$0x1]
        %v1101 = vsel %vm510, %v889, %v1100
        %1102 = vst [vmem:[%s1023 + $0x80] sm:$0x1] %v1101
        %v1103 = vld [vmem:[%s1023 + $0x84] sm:$0xf]
        %v1104 = vsel %vm1025, %v896, %v1103
        %1105 = vst [vmem:[%s1023 + $0x84] sm:$0xf] %v1104
        %1106 = vst [vmem:[%s1023 + $0x88] sm:$0xf] %v905
        %v1107 = vld [vmem:[%s1023 + $0x8c] sm:$0x1]
        %v1108 = vsel %vm510, %v906, %v1107
        %1109 = vst [vmem:[%s1023 + $0x8c] sm:$0x1] %v1108
        %v1110 = vld [vmem:[%s1023 + $0x90] sm:$0xf]
        %v1111 = vsel %vm1025, %v913, %v1110
        %1112 = vst [vmem:[%s1023 + $0x90] sm:$0xf] %v1111
        %1113 = vst [vmem:[%s1023 + $0x94] sm:$0xf] %v922
        %v1114 = vld [vmem:[%s1023 + $0x98] sm:$0x1]
        %v1115 = vsel %vm510, %v923, %v1114
        %1116 = vst [vmem:[%s1023 + $0x98] sm:$0x1] %v1115
        %v1117 = vld [vmem:[%s1023 + $0x9c] sm:$0xf]
        %v1118 = vsel %vm1025, %v930, %v1117
        %1119 = vst [vmem:[%s1023 + $0x9c] sm:$0xf] %v1118
        %1120 = vst [vmem:[%s1023 + $0xa0] sm:$0xf] %v939
        %v1121 = vld [vmem:[%s1023 + $0xa4] sm:$0x1]
        %v1122 = vsel %vm510, %v940, %v1121
        %1123 = vst [vmem:[%s1023 + $0xa4] sm:$0x1] %v1122
        %v1124 = vld [vmem:[%s1023 + $0xa8] sm:$0xf]
        %v1125 = vsel %vm1025, %v947, %v1124
        %1126 = vst [vmem:[%s1023 + $0xa8] sm:$0xf] %v1125
        %1127 = vst [vmem:[%s1023 + $0xac] sm:$0xf] %v956
        %v1128 = vld [vmem:[%s1023 + $0xb0] sm:$0x1]
        %v1129 = vsel %vm510, %v957, %v1128
        %1130 = vst [vmem:[%s1023 + $0xb0] sm:$0x1] %v1129
        %v1131 = vld [vmem:[%s1023 + $0xb4] sm:$0xf]
        %v1132 = vsel %vm1025, %v964, %v1131
        %1133 = vst [vmem:[%s1023 + $0xb4] sm:$0xf] %v1132
        %1134 = vst [vmem:[%s1023 + $0xb8] sm:$0xf] %v973
        %v1135 = vld [vmem:[%s1023 + $0xbc] sm:$0x1]
        %v1136 = vsel %vm510, %v974, %v1135
        %1137 = vst [vmem:[%s1023 + $0xbc] sm:$0x1] %v1136
        %v1138 = vld [vmem:[#allocation2] sm:$0xf]
        %v1139 = vld [vmem:[#allocation2 + $0x4] sm:$0xf]
        %v1140 = vld [vmem:[#allocation2 + $0x8] sm:$0x1]
        %v1141 = vld [vmem:[#allocation2 + $0xc] sm:$0xf]
        %v1142 = vld [vmem:[#allocation2 + $0x10] sm:$0xf]
        %v1143 = vld [vmem:[#allocation2 + $0x14] sm:$0x1]
        %v1144 = vld [vmem:[#allocation2 + $0x18] sm:$0xf]
        %v1145 = vld [vmem:[#allocation2 + $0x1c] sm:$0xf]
        %v1146 = vld [vmem:[#allocation2 + $0x20] sm:$0x1]
        %v1147 = vld [vmem:[#allocation2 + $0x24] sm:$0xf]
        %v1148 = vld [vmem:[#allocation2 + $0x28] sm:$0xf]
        %v1149 = vld [vmem:[#allocation2 + $0x2c] sm:$0x1]
        %v1150 = vld [vmem:[#allocation2 + $0x30] sm:$0xf]
        %v1151 = vld [vmem:[#allocation2 + $0x34] sm:$0xf]
        %v1152 = vld [vmem:[#allocation2 + $0x38] sm:$0x1]
        %v1153 = vld [vmem:[#allocation2 + $0x3c] sm:$0xf]
        %v1154 = vld [vmem:[#allocation2 + $0x40] sm:$0xf]
        %v1155 = vld [vmem:[#allocation2 + $0x44] sm:$0x1]
        %v1156 = vld [vmem:[#allocation2 + $0x48] sm:$0xf]
        %v1157 = vld [vmem:[#allocation2 + $0x4c] sm:$0xf]
        %v1158 = vld [vmem:[#allocation2 + $0x50] sm:$0x1]
        %v1159 = vld [vmem:[#allocation2 + $0x54] sm:$0xf]
        %v1160 = vld [vmem:[#allocation2 + $0x58] sm:$0xf]
        %v1161 = vld [vmem:[#allocation2 + $0x5c] sm:$0x1]
        %v1162 = vld [vmem:[#allocation2 + $0x60] sm:$0xf]
        %v1163 = vld [vmem:[#allocation2 + $0x64] sm:$0xf]
        %v1164 = vld [vmem:[#allocation2 + $0x68] sm:$0x1]
        %v1165 = vld [vmem:[#allocation2 + $0x6c] sm:$0xf]
        %v1166 = vld [vmem:[#allocation2 + $0x70] sm:$0xf]
        %v1167 = vld [vmem:[#allocation2 + $0x74] sm:$0x1]
        %v1168 = vld [vmem:[#allocation2 + $0x78] sm:$0xf]
        %v1169 = vld [vmem:[#allocation2 + $0x7c] sm:$0xf]
        %v1170 = vld [vmem:[#allocation2 + $0x80] sm:$0x1]
        %v1171 = vld [vmem:[#allocation2 + $0x84] sm:$0xf]
        %v1172 = vld [vmem:[#allocation2 + $0x88] sm:$0xf]
        %v1173 = vld [vmem:[#allocation2 + $0x8c] sm:$0x1]
        %v1174 = vld [vmem:[#allocation2 + $0x90] sm:$0xf]
        %v1175 = vld [vmem:[#allocation2 + $0x94] sm:$0xf]
        %v1176 = vld [vmem:[#allocation2 + $0x98] sm:$0x1]
        %v1177 = vld [vmem:[#allocation2 + $0x9c] sm:$0xf]
        %v1178 = vld [vmem:[#allocation2 + $0xa0] sm:$0xf]
        %v1179 = vld [vmem:[#allocation2 + $0xa4] sm:$0x1]
        %v1180 = vld [vmem:[#allocation2 + $0xa8] sm:$0xf]
        %v1181 = vld [vmem:[#allocation2 + $0xac] sm:$0xf]
        %v1182 = vld [vmem:[#allocation2 + $0xb0] sm:$0x1]
        %v1183 = vld [vmem:[#allocation2 + $0xb4] sm:$0xf]
        %v1184 = vld [vmem:[#allocation2 + $0xb8] sm:$0xf]
        %v1185 = vld [vmem:[#allocation2 + $0xbc] sm:$0x1]
        %v1186 = vld [vmem:[#allocation2 + $0xc0] sm:$0xf]
        %v1187 = vld [vmem:[#allocation2 + $0xc4] sm:$0xf]
        %v1188 = vld [vmem:[#allocation2 + $0xc8] sm:$0x1]
        %v1189 = vld [vmem:[#allocation2 + $0xcc] sm:$0xf]
        %v1190 = vld [vmem:[#allocation2 + $0xd0] sm:$0xf]
        %v1191 = vld [vmem:[#allocation2 + $0xd4] sm:$0x1]
        %v1224 = vunpack.c.l.b16 %v1138
        %v1225 = vunpack.c.l.b16 %v1139
        %v1226 = vunpack.c.l.b16 %v1141
        %v1227 = vunpack.c.l.b16 %v1142
        %v1228 = vunpack.c.l.b16 %v1144
        %v1229 = vunpack.c.l.b16 %v1145
        %v1230 = vunpack.c.l.b16 %v1147
        %v1231 = vunpack.c.l.b16 %v1148
        %v1232 = vunpack.c.l.b16 %v1150
        %v1233 = vunpack.c.l.b16 %v1151
        %v1234 = vunpack.c.l.b16 %v1153
        %v1235 = vunpack.c.l.b16 %v1154
        %v1236 = vunpack.c.l.b16 %v1156
        %v1237 = vunpack.c.l.b16 %v1157
        %v1238 = vunpack.c.l.b16 %v1159
        %v1239 = vunpack.c.l.b16 %v1160
        %v1240 = vunpack.c.l.b16 %v1162
        %v1241 = vunpack.c.l.b16 %v1163
        %v1242 = vunpack.c.l.b16 %v1165
        %v1243 = vunpack.c.l.b16 %v1166
        %v1244 = vunpack.c.l.b16 %v1168
        %v1245 = vunpack.c.l.b16 %v1169
        %v1246 = vunpack.c.l.b16 %v1171
        %v1247 = vunpack.c.l.b16 %v1172
        %v1248 = vunpack.c.l.b16 %v1174
        %v1249 = vunpack.c.l.b16 %v1175
        %v1250 = vunpack.c.l.b16 %v1177
        %v1251 = vunpack.c.l.b16 %v1178
        %v1252 = vunpack.c.l.b16 %v1180
        %v1253 = vunpack.c.l.b16 %v1181
        %v1254 = vunpack.c.l.b16 %v1183
        %v1255 = vunpack.c.l.b16 %v1184
        %v1256 = vpack.c.b16 %v1225, %v1224
        %v1257 = vpack.c.b16 %v1227, %v1226
        %v1258 = vpack.c.b16 %v1229, %v1228
        %v1259 = vpack.c.b16 %v1231, %v1230
        %v1260 = vpack.c.b16 %v1233, %v1232
        %v1261 = vpack.c.b16 %v1235, %v1234
        %v1262 = vpack.c.b16 %v1237, %v1236
        %v1263 = vpack.c.b16 %v1239, %v1238
        %v1264 = vpack.c.b16 %v1241, %v1240
        %v1265 = vpack.c.b16 %v1243, %v1242
        %v1266 = vpack.c.b16 %v1245, %v1244
        %v1267 = vpack.c.b16 %v1247, %v1246
        %v1268 = vpack.c.b16 %v1249, %v1248
        %v1269 = vpack.c.b16 %v1251, %v1250
        %v1270 = vpack.c.b16 %v1253, %v1252
        %v1271 = vpack.c.b16 %v1255, %v1254
        %v1304 = vunpack.c.l.b16 %v1140
        %v1305 = vunpack.c.l.b16 %v1143
        %v1306 = vunpack.c.l.b16 %v1146
        %v1307 = vunpack.c.l.b16 %v1149
        %v1308 = vunpack.c.l.b16 %v1152
        %v1309 = vunpack.c.l.b16 %v1155
        %v1310 = vunpack.c.l.b16 %v1158
        %v1311 = vunpack.c.l.b16 %v1161
        %v1312 = vunpack.c.l.b16 %v1164
        %v1313 = vunpack.c.l.b16 %v1167
        %v1314 = vunpack.c.l.b16 %v1170
        %v1315 = vunpack.c.l.b16 %v1173
        %v1316 = vunpack.c.l.b16 %v1176
        %v1317 = vunpack.c.l.b16 %v1179
        %v1318 = vunpack.c.l.b16 %v1182
        %v1319 = vunpack.c.l.b16 %v1185
        %v1320 = vpack.c.b16 %v1304, %v1304
        %v1321 = vpack.c.b16 %v1305, %v1305
        %v1322 = vpack.c.b16 %v1306, %v1306
        %v1323 = vpack.c.b16 %v1307, %v1307
        %v1324 = vpack.c.b16 %v1308, %v1308
        %v1325 = vpack.c.b16 %v1309, %v1309
        %v1326 = vpack.c.b16 %v1310, %v1310
        %v1327 = vpack.c.b16 %v1311, %v1311
        %v1328 = vpack.c.b16 %v1312, %v1312
        %v1329 = vpack.c.b16 %v1313, %v1313
        %v1330 = vpack.c.b16 %v1314, %v1314
        %v1331 = vpack.c.b16 %v1315, %v1315
        %v1332 = vpack.c.b16 %v1316, %v1316
        %v1333 = vpack.c.b16 %v1317, %v1317
        %v1334 = vpack.c.b16 %v1318, %v1318
        %v1335 = vpack.c.b16 %v1319, %v1319
        %vm1336 = vsmask.f32 7424
        %v1338 = vshrl.u32 %v1256, 16
        %v1340 = vshll.u32 %v1256, 16
        %v1342 = vrot.slane %v1340, 1
        %v1343 = vor.u32 %v1338, %v1342
        %v1345 = vshll.u32 %v1320, 16
        %v1347 = vrot.slane %v1345, 1
        %v1348 = vsel %vm1336, %v1343, %v1347
        %v1350 = vshrl.u32 %v1257, 16
        %v1352 = vshll.u32 %v1257, 16
        %v1354 = vrot.slane %v1352, 1
        %v1355 = vor.u32 %v1350, %v1354
        %v1357 = vshll.u32 %v1321, 16
        %v1359 = vrot.slane %v1357, 1
        %v1360 = vsel %vm1336, %v1355, %v1359
        %v1362 = vshrl.u32 %v1258, 16
        %v1364 = vshll.u32 %v1258, 16
        %v1366 = vrot.slane %v1364, 1
        %v1367 = vor.u32 %v1362, %v1366
        %v1369 = vshll.u32 %v1322, 16
        %v1371 = vrot.slane %v1369, 1
        %v1372 = vsel %vm1336, %v1367, %v1371
        %v1374 = vshrl.u32 %v1259, 16
        %v1376 = vshll.u32 %v1259, 16
        %v1378 = vrot.slane %v1376, 1
        %v1379 = vor.u32 %v1374, %v1378
        %v1381 = vshll.u32 %v1323, 16
        %v1383 = vrot.slane %v1381, 1
        %v1384 = vsel %vm1336, %v1379, %v1383
        %v1386 = vshrl.u32 %v1260, 16
        %v1388 = vshll.u32 %v1260, 16
        %v1390 = vrot.slane %v1388, 1
        %v1391 = vor.u32 %v1386, %v1390
        %v1393 = vshll.u32 %v1324, 16
        %v1395 = vrot.slane %v1393, 1
        %v1396 = vsel %vm1336, %v1391, %v1395
        %v1398 = vshrl.u32 %v1261, 16
        %v1400 = vshll.u32 %v1261, 16
        %v1402 = vrot.slane %v1400, 1
        %v1403 = vor.u32 %v1398, %v1402
        %v1405 = vshll.u32 %v1325, 16
        %v1407 = vrot.slane %v1405, 1
        %v1408 = vsel %vm1336, %v1403, %v1407
        %v1410 = vshrl.u32 %v1262, 16
        %v1412 = vshll.u32 %v1262, 16
        %v1414 = vrot.slane %v1412, 1
        %v1415 = vor.u32 %v1410, %v1414
        %v1417 = vshll.u32 %v1326, 16
        %v1419 = vrot.slane %v1417, 1
        %v1420 = vsel %vm1336, %v1415, %v1419
        %v1422 = vshrl.u32 %v1263, 16
        %v1424 = vshll.u32 %v1263, 16
        %v1426 = vrot.slane %v1424, 1
        %v1427 = vor.u32 %v1422, %v1426
        %v1429 = vshll.u32 %v1327, 16
        %v1431 = vrot.slane %v1429, 1
        %v1432 = vsel %vm1336, %v1427, %v1431
        %v1434 = vshrl.u32 %v1264, 16
        %v1436 = vshll.u32 %v1264, 16
        %v1438 = vrot.slane %v1436, 1
        %v1439 = vor.u32 %v1434, %v1438
        %v1441 = vshll.u32 %v1328, 16
        %v1443 = vrot.slane %v1441, 1
        %v1444 = vsel %vm1336, %v1439, %v1443
        %v1446 = vshrl.u32 %v1265, 16
        %v1448 = vshll.u32 %v1265, 16
        %v1450 = vrot.slane %v1448, 1
        %v1451 = vor.u32 %v1446, %v1450
        %v1453 = vshll.u32 %v1329, 16
        %v1455 = vrot.slane %v1453, 1
        %v1456 = vsel %vm1336, %v1451, %v1455
        %v1458 = vshrl.u32 %v1266, 16
        %v1460 = vshll.u32 %v1266, 16
        %v1462 = vrot.slane %v1460, 1
        %v1463 = vor.u32 %v1458, %v1462
        %v1465 = vshll.u32 %v1330, 16
        %v1467 = vrot.slane %v1465, 1
        %v1468 = vsel %vm1336, %v1463, %v1467
        %v1470 = vshrl.u32 %v1267, 16
        %v1472 = vshll.u32 %v1267, 16
        %v1474 = vrot.slane %v1472, 1
        %v1475 = vor.u32 %v1470, %v1474
        %v1477 = vshll.u32 %v1331, 16
        %v1479 = vrot.slane %v1477, 1
        %v1480 = vsel %vm1336, %v1475, %v1479
        %v1482 = vshrl.u32 %v1268, 16
        %v1484 = vshll.u32 %v1268, 16
        %v1486 = vrot.slane %v1484, 1
        %v1487 = vor.u32 %v1482, %v1486
        %v1489 = vshll.u32 %v1332, 16
        %v1491 = vrot.slane %v1489, 1
        %v1492 = vsel %vm1336, %v1487, %v1491
        %v1494 = vshrl.u32 %v1269, 16
        %v1496 = vshll.u32 %v1269, 16
        %v1498 = vrot.slane %v1496, 1
        %v1499 = vor.u32 %v1494, %v1498
        %v1501 = vshll.u32 %v1333, 16
        %v1503 = vrot.slane %v1501, 1
        %v1504 = vsel %vm1336, %v1499, %v1503
        %v1506 = vshrl.u32 %v1270, 16
        %v1508 = vshll.u32 %v1270, 16
        %v1510 = vrot.slane %v1508, 1
        %v1511 = vor.u32 %v1506, %v1510
        %v1513 = vshll.u32 %v1334, 16
        %v1515 = vrot.slane %v1513, 1
        %v1516 = vsel %vm1336, %v1511, %v1515
        %v1518 = vshrl.u32 %v1271, 16
        %v1520 = vshll.u32 %v1271, 16
        %v1522 = vrot.slane %v1520, 1
        %v1523 = vor.u32 %v1518, %v1522
        %v1525 = vshll.u32 %v1335, 16
        %v1527 = vrot.slane %v1525, 1
        %v1528 = vsel %vm1336, %v1523, %v1527
        %vm1545 = vcmask 1046528
        %v1546 = vrot.slane %v1256, 1
        %v1547 = vrot.slane %v1320, 1
        %v1548 = vsel %vm1545, %v1546, %v1547
        %v1549 = vrot.slane %v1257, 1
        %v1550 = vrot.slane %v1321, 1
        %v1551 = vsel %vm1545, %v1549, %v1550
        %v1552 = vrot.slane %v1258, 1
        %v1553 = vrot.slane %v1322, 1
        %v1554 = vsel %vm1545, %v1552, %v1553
        %v1555 = vrot.slane %v1259, 1
        %v1556 = vrot.slane %v1323, 1
        %v1557 = vsel %vm1545, %v1555, %v1556
        %v1558 = vrot.slane %v1260, 1
        %v1559 = vrot.slane %v1324, 1
        %v1560 = vsel %vm1545, %v1558, %v1559
        %v1561 = vrot.slane %v1261, 1
        %v1562 = vrot.slane %v1325, 1
        %v1563 = vsel %vm1545, %v1561, %v1562
        %v1564 = vrot.slane %v1262, 1
        %v1565 = vrot.slane %v1326, 1
        %v1566 = vsel %vm1545, %v1564, %v1565
        %v1567 = vrot.slane %v1263, 1
        %v1568 = vrot.slane %v1327, 1
        %v1569 = vsel %vm1545, %v1567, %v1568
        %v1570 = vrot.slane %v1264, 1
        %v1571 = vrot.slane %v1328, 1
        %v1572 = vsel %vm1545, %v1570, %v1571
        %v1573 = vrot.slane %v1265, 1
        %v1574 = vrot.slane %v1329, 1
        %v1575 = vsel %vm1545, %v1573, %v1574
        %v1576 = vrot.slane %v1266, 1
        %v1577 = vrot.slane %v1330, 1
        %v1578 = vsel %vm1545, %v1576, %v1577
        %v1579 = vrot.slane %v1267, 1
        %v1580 = vrot.slane %v1331, 1
        %v1581 = vsel %vm1545, %v1579, %v1580
        %v1582 = vrot.slane %v1268, 1
        %v1583 = vrot.slane %v1332, 1
        %v1584 = vsel %vm1545, %v1582, %v1583
        %v1585 = vrot.slane %v1269, 1
        %v1586 = vrot.slane %v1333, 1
        %v1587 = vsel %vm1545, %v1585, %v1586
        %v1588 = vrot.slane %v1270, 1
        %v1589 = vrot.slane %v1334, 1
        %v1590 = vsel %vm1545, %v1588, %v1589
        %v1591 = vrot.slane %v1271, 1
        %v1592 = vrot.slane %v1335, 1
        %v1593 = vsel %vm1545, %v1591, %v1592
        %v1612 = vunpack.c.l.b16 %v1186
        %v1613 = vunpack.c.l.b16 %v1187
        %v1614 = vpack.c.b16 %v1613, %v1612
        %v1617 = vunpack.c.l.b16 %v1188
        %v1618 = vpack.c.b16 %v1617, %v1617
        %v1620 = vshrl.u32 %v1614, 16
        %v1622 = vshll.u32 %v1614, 16
        %v1624 = vrot.slane %v1622, 1
        %v1625 = vor.u32 %v1620, %v1624
        %v1627 = vshll.u32 %v1618, 16
        %v1629 = vrot.slane %v1627, 1
        %v1630 = vsel %vm1336, %v1625, %v1629
        %v1632 = vrot.slane %v1614, 1
        %v1633 = vrot.slane %v1618, 1
        %v1634 = vsel %vm1545, %v1632, %v1633
        %v1638 = vunpack.c.l.b16 %v1189
        %v1639 = vunpack.c.l.b16 %v1190
        %v1640 = vpack.c.b16 %v1639, %v1638
        %v1643 = vunpack.c.l.b16 %v1191
        %v1644 = vpack.c.b16 %v1643, %v1643
        %v1646 = vshrl.u32 %v1640, 16
        %v1648 = vshll.u32 %v1640, 16
        %v1650 = vrot.slane %v1648, 1
        %v1651 = vor.u32 %v1646, %v1650
        %v1653 = vshll.u32 %v1644, 16
        %v1655 = vrot.slane %v1653, 1
        %v1656 = vsel %vm1336, %v1651, %v1655
        %v1658 = vrot.slane %v1640, 1
        %v1659 = vrot.slane %v1644, 1
        %v1660 = vsel %vm1545, %v1658, %v1659
        %v1662 = vld [vmem:[#allocation6] sm:$0xf]
        %v1663 = vld [vmem:[#allocation6 + $0x4] sm:$0xf]
        %v1664 = vld [vmem:[#allocation6 + $0x8] sm:$0xf]
        %v1665 = vld [vmem:[#allocation6 + $0xc] sm:$0xf]
        %v1666 = vld [vmem:[#allocation6 + $0x10] sm:$0xf]
        %v1667 = vld [vmem:[#allocation6 + $0x14] sm:$0xf]
        %v1668 = vld [vmem:[#allocation6 + $0x18] sm:$0xf]
        %v1669 = vld [vmem:[#allocation6 + $0x1c] sm:$0xf]
        %v1670 = vld [vmem:[#allocation6 + $0x20] sm:$0xf]
        %v1671 = vld [vmem:[#allocation6 + $0x24] sm:$0xf]
        %v1672 = vld [vmem:[#allocation6 + $0x28] sm:$0xf]
        %v1673 = vld [vmem:[#allocation6 + $0x2c] sm:$0xf]
        %v1674 = vld [vmem:[#allocation6 + $0x30] sm:$0xf]
        %v1675 = vld [vmem:[#allocation6 + $0x34] sm:$0xf]
        %v1676 = vld [vmem:[#allocation6 + $0x38] sm:$0xf]
        %v1677 = vld [vmem:[#allocation6 + $0x3c] sm:$0xf]
        %v1678 = vld [vmem:[#allocation6 + $0x40] sm:$0xf]
        %v1679 = vld [vmem:[#allocation6 + $0x44] sm:$0xf]
        %v1680 = vld [vmem:[#allocation6 + $0x48] sm:$0xf]
        %v1681 = vld [vmem:[#allocation6 + $0x4c] sm:$0xf]
        %v1682 = vld [vmem:[#allocation6 + $0x50] sm:$0xf]
        %v1683 = vld [vmem:[#allocation6 + $0x54] sm:$0xf]
        %v1684 = vld [vmem:[#allocation6 + $0x58] sm:$0xf]
        %v1685 = vld [vmem:[#allocation6 + $0x5c] sm:$0xf]
        %v1686 = vld [vmem:[#allocation6 + $0x60] sm:$0xf]
        %v1687 = vld [vmem:[#allocation6 + $0x64] sm:$0xf]
        %v1688 = vld [vmem:[#allocation6 + $0x68] sm:$0xf]
        %v1689 = vld [vmem:[#allocation6 + $0x6c] sm:$0xf]
        %v1690 = vld [vmem:[#allocation6 + $0x70] sm:$0xf]
        %v1691 = vld [vmem:[#allocation6 + $0x74] sm:$0xf]
        %v1692 = vld [vmem:[#allocation6 + $0x78] sm:$0xf]
        %v1693 = vld [vmem:[#allocation6 + $0x7c] sm:$0xf]
        %v1694 = vld [vmem:[#allocation6 + $0x80] sm:$0xf]
        %v1695 = vld [vmem:[#allocation6 + $0x84] sm:$0xf]
        %v1696 = vld [vmem:[#allocation6 + $0x88] sm:$0xf]
        %v1697 = vld [vmem:[#allocation6 + $0x8c] sm:$0xf]
        %v1698 = vld [vmem:[#allocation6 + $0x90] sm:$0xf]
        %v1699 = vld [vmem:[#allocation6 + $0x94] sm:$0xf]
        %v1700 = vld [vmem:[#allocation6 + $0x98] sm:$0xf]
        %v1701 = vld [vmem:[#allocation6 + $0x9c] sm:$0xf]
        %v1702 = vld [vmem:[#allocation6 + $0xa0] sm:$0xf]
        %v1703 = vld [vmem:[#allocation6 + $0xa4] sm:$0xf]
        %v1704 = vld [vmem:[#allocation6 + $0xa8] sm:$0xf]
        %v1705 = vld [vmem:[#allocation6 + $0xac] sm:$0xf]
        %v1706 = vld [vmem:[#allocation6 + $0xb0] sm:$0xf]
        %v1707 = vld [vmem:[#allocation6 + $0xb4] sm:$0xf]
        %v1708 = vld [vmem:[#allocation6 + $0xb8] sm:$0xf]
        %v1709 = vld [vmem:[#allocation6 + $0xbc] sm:$0xf]
        %v1710 = vld [vmem:[#allocation6 + $0xc0] sm:$0xf]
        %v1711 = vld [vmem:[#allocation6 + $0xc4] sm:$0xf]
        %v1712 = vld [vmem:[#allocation6 + $0xc8] sm:$0xf]
        %v1713 = vld [vmem:[#allocation6 + $0xcc] sm:$0xf]
        %v1714 = vld [vmem:[#allocation6 + $0xd0] sm:$0xf]
        %v1715 = vld [vmem:[#allocation6 + $0xd4] sm:$0xf]
        %v1716 = vld [vmem:[#allocation6 + $0xd8] sm:$0xf]
        %v1717 = vld [vmem:[#allocation6 + $0xdc] sm:$0xf]
        %v1718 = vld [vmem:[#allocation6 + $0xe0] sm:$0xf]
        %v1719 = vld [vmem:[#allocation6 + $0xe4] sm:$0xf]
        %v1720 = vld [vmem:[#allocation6 + $0xe8] sm:$0xf]
        %v1721 = vld [vmem:[#allocation6 + $0xec] sm:$0xf]
        %v1722 = vld [vmem:[#allocation6 + $0xf0] sm:$0xf]
        %v1723 = vld [vmem:[#allocation6 + $0xf4] sm:$0xf]
        %v1724 = vld [vmem:[#allocation6 + $0xf8] sm:$0xf]
        %v1725 = vld [vmem:[#allocation6 + $0xfc] sm:$0xf]
        %v1726 = vld [vmem:[#allocation6 + $0x100] sm:$0xf]
        %v1727 = vld [vmem:[#allocation6 + $0x104] sm:$0xf]
        %v1728 = vld [vmem:[#allocation6 + $0x108] sm:$0xf]
        %v1729 = vld [vmem:[#allocation6 + $0x10c] sm:$0xf]
        %v1730 = vld [vmem:[#allocation6 + $0x110] sm:$0xf]
        %v1731 = vld [vmem:[#allocation6 + $0x114] sm:$0xf]
        %v1732 = vld [vmem:[#allocation6 + $0x118] sm:$0xf]
        %v1733 = vld [vmem:[#allocation6 + $0x11c] sm:$0xf]
        %v1734 = vld [vmem:[#allocation6 + $0x120] sm:$0xf]
        %v1735 = vld [vmem:[#allocation6 + $0x124] sm:$0xf]
        %v1736 = vld [vmem:[#allocation6 + $0x128] sm:$0xf]
        %v1737 = vld [vmem:[#allocation6 + $0x12c] sm:$0xf]
        %v1738 = vld [vmem:[#allocation6 + $0x130] sm:$0xf]
        %v1739 = vld [vmem:[#allocation6 + $0x134] sm:$0xf]
        %v1740 = vld [vmem:[#allocation6 + $0x138] sm:$0xf]
        %v1741 = vld [vmem:[#allocation6 + $0x13c] sm:$0xf]
        %v1742 = vld [vmem:[#allocation6 + $0x140] sm:$0xf]
        %v1743 = vld [vmem:[#allocation6 + $0x144] sm:$0xf]
        %v1744 = vld [vmem:[#allocation6 + $0x148] sm:$0xf]
        %v1745 = vld [vmem:[#allocation6 + $0x14c] sm:$0xf]
        %v1746 = vld [vmem:[#allocation6 + $0x150] sm:$0xf]
        %v1747 = vld [vmem:[#allocation6 + $0x154] sm:$0xf]
        %v1748 = vld [vmem:[#allocation6 + $0x158] sm:$0xf]
        %v1749 = vld [vmem:[#allocation6 + $0x15c] sm:$0xf]
        %v1750 = vld [vmem:[#allocation6 + $0x160] sm:$0xf]
        %v1751 = vld [vmem:[#allocation6 + $0x164] sm:$0xf]
        %v1752 = vld [vmem:[#allocation6 + $0x168] sm:$0xf]
        %v1753 = vld [vmem:[#allocation6 + $0x16c] sm:$0xf]
        %v1754 = vld [vmem:[#allocation6 + $0x170] sm:$0xf]
        %v1755 = vld [vmem:[#allocation6 + $0x174] sm:$0xf]
        %v1756 = vld [vmem:[#allocation6 + $0x178] sm:$0xf]
        %v1757 = vld [vmem:[#allocation6 + $0x17c] sm:$0xf]
        %v1758 = vld [vmem:[#allocation6 + $0x180] sm:$0xf]
        %v1759 = vld [vmem:[#allocation6 + $0x184] sm:$0xf]
        %v1760 = vld [vmem:[#allocation6 + $0x188] sm:$0xf]
        %v1761 = vld [vmem:[#allocation6 + $0x18c] sm:$0xf]
        %v1762 = vld [vmem:[#allocation6 + $0x190] sm:$0xf]
        %v1763 = vld [vmem:[#allocation6 + $0x194] sm:$0xf]
        %v1764 = vld [vmem:[#allocation6 + $0x198] sm:$0xf]
        %v1765 = vld [vmem:[#allocation6 + $0x19c] sm:$0xf]
        %v1766 = vld [vmem:[#allocation6 + $0x1a0] sm:$0xf]
        %v1767 = vld [vmem:[#allocation6 + $0x1a4] sm:$0xf]
        %v1768 = vld [vmem:[#allocation6 + $0x1a8] sm:$0xf]
        %v1769 = vld [vmem:[#allocation6 + $0x1ac] sm:$0xf]
        %v1770 = vld [vmem:[#allocation6 + $0x1b0] sm:$0xf]
        %v1771 = vld [vmem:[#allocation6 + $0x1b4] sm:$0xf]
        %v1772 = vld [vmem:[#allocation6 + $0x1b8] sm:$0xf]
        %v1773 = vld [vmem:[#allocation6 + $0x1bc] sm:$0xf]
        %v1774 = vld [vmem:[#allocation6 + $0x1c0] sm:$0xf]
        %v1775 = vld [vmem:[#allocation6 + $0x1c4] sm:$0xf]
        %v1776 = vld [vmem:[#allocation6 + $0x1c8] sm:$0xf]
        %v1777 = vld [vmem:[#allocation6 + $0x1cc] sm:$0xf]
        %v1778 = vld [vmem:[#allocation6 + $0x1d0] sm:$0xf]
        %v1779 = vld [vmem:[#allocation6 + $0x1d4] sm:$0xf]
        %v1780 = vld [vmem:[#allocation6 + $0x1d8] sm:$0xf]
        %v1781 = vld [vmem:[#allocation6 + $0x1dc] sm:$0xf]
        %v1782 = vld [vmem:[#allocation6 + $0x1e0] sm:$0xf]
        %v1783 = vld [vmem:[#allocation6 + $0x1e4] sm:$0xf]
        %v1784 = vld [vmem:[#allocation6 + $0x1e8] sm:$0xf]
        %v1785 = vld [vmem:[#allocation6 + $0x1ec] sm:$0xf]
        %v1786 = vld [vmem:[#allocation6 + $0x1f0] sm:$0xf]
        %v1787 = vld [vmem:[#allocation6 + $0x1f4] sm:$0xf]
        %v1788 = vld [vmem:[#allocation6 + $0x1f8] sm:$0xf]
        %v1789 = vld [vmem:[#allocation6 + $0x1fc] sm:$0xf]
        %v1790 = vld [vmem:[#allocation6 + $0x200] sm:$0xf]
        %v1791 = vld [vmem:[#allocation6 + $0x204] sm:$0xf]
        %v1792 = vld [vmem:[#allocation6 + $0x208] sm:$0xf]
        %v1793 = vld [vmem:[#allocation6 + $0x20c] sm:$0xf]
        %v1794 = vld [vmem:[#allocation6 + $0x210] sm:$0xf]
        %v1795 = vld [vmem:[#allocation6 + $0x214] sm:$0xf]
        %v1796 = vld [vmem:[#allocation6 + $0x218] sm:$0xf]
        %v1797 = vld [vmem:[#allocation6 + $0x21c] sm:$0xf]
        %v1798 = vld [vmem:[#allocation6 + $0x220] sm:$0xf]
        %v1799 = vld [vmem:[#allocation6 + $0x224] sm:$0xf]
        %v1800 = vld [vmem:[#allocation6 + $0x228] sm:$0xf]
        %v1801 = vld [vmem:[#allocation6 + $0x22c] sm:$0xf]
        %v1802 = vld [vmem:[#allocation6 + $0x230] sm:$0xf]
        %v1803 = vld [vmem:[#allocation6 + $0x234] sm:$0xf]
        %v1804 = vld [vmem:[#allocation6 + $0x238] sm:$0xf]
        %v1805 = vld [vmem:[#allocation6 + $0x23c] sm:$0xf]
        %v1950 = vunpack.c.l.b16 %v1662
        %v1951 = vunpack.c.l.b16 %v1663
        %v1952 = vunpack.c.l.b16 %v1664
        %v1953 = vunpack.c.l.b16 %v1665
        %v1954 = vunpack.c.l.b16 %v1666
        %v1955 = vunpack.c.l.b16 %v1667
        %v1956 = vunpack.c.l.b16 %v1668
        %v1957 = vunpack.c.l.b16 %v1669
        %v1958 = vunpack.c.l.b16 %v1670
        %v1959 = vunpack.c.l.b16 %v1671
        %v1960 = vunpack.c.l.b16 %v1672
        %v1961 = vunpack.c.l.b16 %v1673
        %v1962 = vunpack.c.l.b16 %v1674
        %v1963 = vunpack.c.l.b16 %v1675
        %v1964 = vunpack.c.l.b16 %v1676
        %v1965 = vunpack.c.l.b16 %v1677
        %v1966 = vunpack.c.l.b16 %v1678
        %v1967 = vunpack.c.l.b16 %v1679
        %v1968 = vunpack.c.l.b16 %v1680
        %v1969 = vunpack.c.l.b16 %v1681
        %v1970 = vunpack.c.l.b16 %v1682
        %v1971 = vunpack.c.l.b16 %v1683
        %v1972 = vunpack.c.l.b16 %v1684
        %v1973 = vunpack.c.l.b16 %v1685
        %v1974 = vunpack.c.l.b16 %v1686
        %v1975 = vunpack.c.l.b16 %v1687
        %v1976 = vunpack.c.l.b16 %v1688
        %v1977 = vunpack.c.l.b16 %v1689
        %v1978 = vunpack.c.l.b16 %v1690
        %v1979 = vunpack.c.l.b16 %v1691
        %v1980 = vunpack.c.l.b16 %v1692
        %v1981 = vunpack.c.l.b16 %v1693
        %v1982 = vunpack.c.l.b16 %v1694
        %v1983 = vunpack.c.l.b16 %v1695
        %v1984 = vunpack.c.l.b16 %v1696
        %v1985 = vunpack.c.l.b16 %v1697
        %v1986 = vunpack.c.l.b16 %v1698
        %v1987 = vunpack.c.l.b16 %v1699
        %v1988 = vunpack.c.l.b16 %v1700
        %v1989 = vunpack.c.l.b16 %v1701
        %v1990 = vunpack.c.l.b16 %v1702
        %v1991 = vunpack.c.l.b16 %v1703
        %v1992 = vunpack.c.l.b16 %v1704
        %v1993 = vunpack.c.l.b16 %v1705
        %v1994 = vunpack.c.l.b16 %v1706
        %v1995 = vunpack.c.l.b16 %v1707
        %v1996 = vunpack.c.l.b16 %v1708
        %v1997 = vunpack.c.l.b16 %v1709
        %v1998 = vunpack.c.l.b16 %v1710
        %v1999 = vunpack.c.l.b16 %v1711
        %v2000 = vunpack.c.l.b16 %v1712
        %v2001 = vunpack.c.l.b16 %v1713
        %v2002 = vunpack.c.l.b16 %v1714
        %v2003 = vunpack.c.l.b16 %v1715
        %v2004 = vunpack.c.l.b16 %v1716
        %v2005 = vunpack.c.l.b16 %v1717
        %v2006 = vunpack.c.l.b16 %v1718
        %v2007 = vunpack.c.l.b16 %v1719
        %v2008 = vunpack.c.l.b16 %v1720
        %v2009 = vunpack.c.l.b16 %v1721
        %v2010 = vunpack.c.l.b16 %v1722
        %v2011 = vunpack.c.l.b16 %v1723
        %v2012 = vunpack.c.l.b16 %v1724
        %v2013 = vunpack.c.l.b16 %v1725
        %v2014 = vunpack.c.l.b16 %v1726
        %v2015 = vunpack.c.l.b16 %v1727
        %v2016 = vunpack.c.l.b16 %v1728
        %v2017 = vunpack.c.l.b16 %v1729
        %v2018 = vunpack.c.l.b16 %v1730
        %v2019 = vunpack.c.l.b16 %v1731
        %v2020 = vunpack.c.l.b16 %v1732
        %v2021 = vunpack.c.l.b16 %v1733
        %v2022 = vunpack.c.l.b16 %v1734
        %v2023 = vunpack.c.l.b16 %v1735
        %v2024 = vunpack.c.l.b16 %v1736
        %v2025 = vunpack.c.l.b16 %v1737
        %v2026 = vunpack.c.l.b16 %v1738
        %v2027 = vunpack.c.l.b16 %v1739
        %v2028 = vunpack.c.l.b16 %v1740
        %v2029 = vunpack.c.l.b16 %v1741
        %v2030 = vunpack.c.l.b16 %v1742
        %v2031 = vunpack.c.l.b16 %v1743
        %v2032 = vunpack.c.l.b16 %v1744
        %v2033 = vunpack.c.l.b16 %v1745
        %v2034 = vunpack.c.l.b16 %v1746
        %v2035 = vunpack.c.l.b16 %v1747
        %v2036 = vunpack.c.l.b16 %v1748
        %v2037 = vunpack.c.l.b16 %v1749
        %v2038 = vunpack.c.l.b16 %v1750
        %v2039 = vunpack.c.l.b16 %v1751
        %v2040 = vunpack.c.l.b16 %v1752
        %v2041 = vunpack.c.l.b16 %v1753
        %v2042 = vunpack.c.l.b16 %v1754
        %v2043 = vunpack.c.l.b16 %v1755
        %v2044 = vunpack.c.l.b16 %v1756
        %v2045 = vunpack.c.l.b16 %v1757
        %v2046 = vunpack.c.l.b16 %v1758
        %v2047 = vunpack.c.l.b16 %v1759
        %v2048 = vunpack.c.l.b16 %v1760
        %v2049 = vunpack.c.l.b16 %v1761
        %v2050 = vunpack.c.l.b16 %v1762
        %v2051 = vunpack.c.l.b16 %v1763
        %v2052 = vunpack.c.l.b16 %v1764
        %v2053 = vunpack.c.l.b16 %v1765
        %v2054 = vunpack.c.l.b16 %v1766
        %v2055 = vunpack.c.l.b16 %v1767
        %v2056 = vunpack.c.l.b16 %v1768
        %v2057 = vunpack.c.l.b16 %v1769
        %v2058 = vunpack.c.l.b16 %v1770
        %v2059 = vunpack.c.l.b16 %v1771
        %v2060 = vunpack.c.l.b16 %v1772
        %v2061 = vunpack.c.l.b16 %v1773
        %v2062 = vunpack.c.l.b16 %v1774
        %v2063 = vunpack.c.l.b16 %v1775
        %v2064 = vunpack.c.l.b16 %v1776
        %v2065 = vunpack.c.l.b16 %v1777
        %v2066 = vunpack.c.l.b16 %v1778
        %v2067 = vunpack.c.l.b16 %v1779
        %v2068 = vunpack.c.l.b16 %v1780
        %v2069 = vunpack.c.l.b16 %v1781
        %v2070 = vunpack.c.l.b16 %v1782
        %v2071 = vunpack.c.l.b16 %v1783
        %v2072 = vunpack.c.l.b16 %v1784
        %v2073 = vunpack.c.l.b16 %v1785
        %v2074 = vunpack.c.l.b16 %v1786
        %v2075 = vunpack.c.l.b16 %v1787
        %v2076 = vunpack.c.l.b16 %v1788
        %v2077 = vunpack.c.l.b16 %v1789
        %v2078 = vunpack.c.l.b16 %v1790
        %v2079 = vunpack.c.l.b16 %v1791
        %v2080 = vunpack.c.l.b16 %v1792
        %v2081 = vunpack.c.l.b16 %v1793
        %v2082 = vunpack.c.l.b16 %v1794
        %v2083 = vunpack.c.l.b16 %v1795
        %v2084 = vunpack.c.l.b16 %v1796
        %v2085 = vunpack.c.l.b16 %v1797
        %v2086 = vunpack.c.l.b16 %v1798
        %v2087 = vunpack.c.l.b16 %v1799
        %v2088 = vunpack.c.l.b16 %v1800
        %v2089 = vunpack.c.l.b16 %v1801
        %v2090 = vunpack.c.l.b16 %v1802
        %v2091 = vunpack.c.l.b16 %v1803
        %v2092 = vunpack.c.l.b16 %v1804
        %v2093 = vunpack.c.l.b16 %v1805
        %v2094 = vpack.c.b16 %v1951, %v1950
        %v2095 = vpack.c.b16 %v1953, %v1952
        %v2096 = vpack.c.b16 %v1955, %v1954
        %v2097 = vpack.c.b16 %v1957, %v1956
        %v2098 = vpack.c.b16 %v1959, %v1958
        %v2099 = vpack.c.b16 %v1961, %v1960
        %v2100 = vpack.c.b16 %v1963, %v1962
        %v2101 = vpack.c.b16 %v1965, %v1964
        %v2102 = vpack.c.b16 %v1967, %v1966
        %v2103 = vpack.c.b16 %v1969, %v1968
        %v2104 = vpack.c.b16 %v1971, %v1970
        %v2105 = vpack.c.b16 %v1973, %v1972
        %v2106 = vpack.c.b16 %v1975, %v1974
        %v2107 = vpack.c.b16 %v1977, %v1976
        %v2108 = vpack.c.b16 %v1979, %v1978
        %v2109 = vpack.c.b16 %v1981, %v1980
        %v2110 = vpack.c.b16 %v1983, %v1982
        %v2111 = vpack.c.b16 %v1985, %v1984
        %v2112 = vpack.c.b16 %v1987, %v1986
        %v2113 = vpack.c.b16 %v1989, %v1988
        %v2114 = vpack.c.b16 %v1991, %v1990
        %v2115 = vpack.c.b16 %v1993, %v1992
        %v2116 = vpack.c.b16 %v1995, %v1994
        %v2117 = vpack.c.b16 %v1997, %v1996
        %v2118 = vpack.c.b16 %v1999, %v1998
        %v2119 = vpack.c.b16 %v2001, %v2000
        %v2120 = vpack.c.b16 %v2003, %v2002
        %v2121 = vpack.c.b16 %v2005, %v2004
        %v2122 = vpack.c.b16 %v2007, %v2006
        %v2123 = vpack.c.b16 %v2009, %v2008
        %v2124 = vpack.c.b16 %v2011, %v2010
        %v2125 = vpack.c.b16 %v2013, %v2012
        %v2126 = vpack.c.b16 %v2015, %v2014
        %v2127 = vpack.c.b16 %v2017, %v2016
        %v2128 = vpack.c.b16 %v2019, %v2018
        %v2129 = vpack.c.b16 %v2021, %v2020
        %v2130 = vpack.c.b16 %v2023, %v2022
        %v2131 = vpack.c.b16 %v2025, %v2024
        %v2132 = vpack.c.b16 %v2027, %v2026
        %v2133 = vpack.c.b16 %v2029, %v2028
        %v2134 = vpack.c.b16 %v2031, %v2030
        %v2135 = vpack.c.b16 %v2033, %v2032
        %v2136 = vpack.c.b16 %v2035, %v2034
        %v2137 = vpack.c.b16 %v2037, %v2036
        %v2138 = vpack.c.b16 %v2039, %v2038
        %v2139 = vpack.c.b16 %v2041, %v2040
        %v2140 = vpack.c.b16 %v2043, %v2042
        %v2141 = vpack.c.b16 %v2045, %v2044
        %v2142 = vpack.c.b16 %v2047, %v2046
        %v2143 = vpack.c.b16 %v2049, %v2048
        %v2144 = vpack.c.b16 %v2051, %v2050
        %v2145 = vpack.c.b16 %v2053, %v2052
        %v2146 = vpack.c.b16 %v2055, %v2054
        %v2147 = vpack.c.b16 %v2057, %v2056
        %v2148 = vpack.c.b16 %v2059, %v2058
        %v2149 = vpack.c.b16 %v2061, %v2060
        %v2150 = vpack.c.b16 %v2063, %v2062
        %v2151 = vpack.c.b16 %v2065, %v2064
        %v2152 = vpack.c.b16 %v2067, %v2066
        %v2153 = vpack.c.b16 %v2069, %v2068
        %v2154 = vpack.c.b16 %v2071, %v2070
        %v2155 = vpack.c.b16 %v2073, %v2072
        %v2156 = vpack.c.b16 %v2075, %v2074
        %v2157 = vpack.c.b16 %v2077, %v2076
        %v2158 = vpack.c.b16 %v2079, %v2078
        %v2159 = vpack.c.b16 %v2081, %v2080
        %v2160 = vpack.c.b16 %v2083, %v2082
        %v2161 = vpack.c.b16 %v2085, %v2084
        %v2162 = vpack.c.b16 %v2087, %v2086
        %v2163 = vpack.c.b16 %v2089, %v2088
        %v2164 = vpack.c.b16 %v2091, %v2090
        %v2165 = vpack.c.b16 %v2093, %v2092
        %2238 = vmatprep.subr.bf16.mxu0 0
        %2239 = vmatpush1.bf16.msra.mxu0 %v2094
        %2240 = vmatprep.subr.bf16.mxu0 0
        %2241 = vmatpush1.bf16.msra.mxu0 %v2095
        %2242 = vmatprep.subr.bf16.mxu0 0
        %2243 = vmatpush1.bf16.msra.mxu0 %v2096
        %2244 = vmatprep.subr.bf16.mxu0 0
        %2245 = vmatpush1.bf16.msra.mxu0 %v2097
        %2246 = vmatprep.subr.bf16.mxu0 0
        %2247 = vmatpush1.bf16.msra.mxu0 %v2098
        %2248 = vmatprep.subr.bf16.mxu0 0
        %2249 = vmatpush1.bf16.msra.mxu0 %v2099
        %2250 = vmatprep.subr.bf16.mxu0 0
        %2251 = vmatpush1.bf16.msra.mxu0 %v2100
        %2252 = vmatprep.subr.bf16.mxu0 0
        %2253 = vmatpush1.bf16.msra.mxu0 %v2101
        %2254 = vmatprep.subr.bf16.mxu0 0
        %2255 = vmatpush1.bf16.msra.mxu0 %v2102
        %2256 = vmatprep.subr.bf16.mxu0 0
        %2257 = vmatpush1.bf16.msra.mxu0 %v2103
        %2258 = vmatprep.subr.bf16.mxu0 0
        %2259 = vmatpush1.bf16.msra.mxu0 %v2104
        %2260 = vmatprep.subr.bf16.mxu0 0
        %2261 = vmatpush1.bf16.msra.mxu0 %v2105
        %2262 = vmatprep.subr.bf16.mxu0 0
        %2263 = vmatpush1.bf16.msra.mxu0 %v2106
        %2264 = vmatprep.subr.bf16.mxu0 0
        %2265 = vmatpush1.bf16.msra.mxu0 %v2107
        %2266 = vmatprep.subr.bf16.mxu0 0
        %2267 = vmatpush1.bf16.msra.mxu0 %v2108
        %2268 = vmatprep.subr.bf16.mxu0 0
        %2269 = vmatpush1.bf16.msra.mxu0 %v2109
        %2270 = vmatprep.mubr.bf16.mxu0 %v1348
        %2271 = vmatmul.mubr.bf16.gmra.mrb[0].mxu0 %v1256
        %v2272 = vpop.f32.mrb[0].mxu0
        %v2273 = vadd.f32 0.0, %v2272
        %v2274 = vpop.f32.mrb[0].mxu0
        %v2275 = vpop.f32.mrb[0].mxu0
        %v2276 = vadd.f32 0.0, %v2275
        %v2277 = vpop.f32.mrb[0].mxu0
        %2278 = vmatprep.mubr.bf16.mxu0 %v1360
        %2279 = vmatmul.mubr.bf16.gmra.mrb[0].mxu0 %v1257
        %v2280 = vpop.f32.mrb[0].mxu0
        %v2281 = vadd.f32 0.0, %v2280
        %v2282 = vpop.f32.mrb[0].mxu0
        %v2283 = vpop.f32.mrb[0].mxu0
        %v2284 = vadd.f32 0.0, %v2283
        %v2285 = vpop.f32.mrb[0].mxu0
        %2286 = vmatprep.mubr.bf16.mxu0 %v1372
        %2287 = vmatmul.mubr.bf16.gmra.mrb[0].mxu0 %v1258
        %v2288 = vpop.f32.mrb[0].mxu0
        %v2289 = vadd.f32 0.0, %v2288
        %v2290 = vpop.f32.mrb[0].mxu0
        %v2291 = vpop.f32.mrb[0].mxu0
        %v2292 = vadd.f32 0.0, %v2291
        %v2293 = vpop.f32.mrb[0].mxu0
        %2294 = vmatprep.mubr.bf16.mxu0 %v1384
        %2295 = vmatmul.mubr.bf16.gmra.mrb[0].mxu0 %v1259
        %v2296 = vpop.f32.mrb[0].mxu0
        %v2297 = vadd.f32 0.0, %v2296
        %v2298 = vpop.f32.mrb[0].mxu0
        %v2299 = vpop.f32.mrb[0].mxu0
        %v2300 = vadd.f32 0.0, %v2299
        %v2301 = vpop.f32.mrb[0].mxu0
        %2302 = vmatprep.mubr.bf16.mxu0 %v1396
        %2303 = vmatmul.mubr.bf16.gmra.mrb[0].mxu0 %v1260
        %v2304 = vpop.f32.mrb[0].mxu0
        %v2305 = vadd.f32 0.0, %v2304
        %v2306 = vpop.f32.mrb[0].mxu0
        %v2307 = vpop.f32.mrb[0].mxu0
        %v2308 = vadd.f32 0.0, %v2307
        %v2309 = vpop.f32.mrb[0].mxu0
        %2310 = vmatprep.mubr.bf16.mxu0 %v1408
        %2311 = vmatmul.mubr.bf16.gmra.mrb[0].mxu0 %v1261
        %v2312 = vpop.f32.mrb[0].mxu0
        %v2313 = vadd.f32 0.0, %v2312
        %v2314 = vpop.f32.mrb[0].mxu0
        %v2315 = vpop.f32.mrb[0].mxu0
        %v2316 = vadd.f32 0.0, %v2315
        %v2317 = vpop.f32.mrb[0].mxu0
        %2318 = vmatprep.mubr.bf16.mxu0 %v1420
        %2319 = vmatmul.mubr.bf16.gmra.mrb[0].mxu0 %v1262
        %v2320 = vpop.f32.mrb[0].mxu0
        %v2321 = vadd.f32 0.0, %v2320
        %v2322 = vpop.f32.mrb[0].mxu0
        %v2323 = vpop.f32.mrb[0].mxu0
        %v2324 = vadd.f32 0.0, %v2323
        %v2325 = vpop.f32.mrb[0].mxu0
        %2326 = vmatprep.mubr.bf16.mxu0 %v1432
        %2327 = vmatmul.mubr.bf16.gmra.mrb[0].mxu0 %v1263
        %v2328 = vpop.f32.mrb[0].mxu0
        %v2329 = vadd.f32 0.0, %v2328
        %v2330 = vpop.f32.mrb[0].mxu0
        %v2331 = vpop.f32.mrb[0].mxu0
        %v2332 = vadd.f32 0.0, %v2331
        %v2333 = vpop.f32.mrb[0].mxu0
        %2334 = vmatprep.mubr.bf16.mxu0 %v1444
        %2335 = vmatmul.mubr.bf16.gmra.mrb[0].mxu0 %v1264
        %v2336 = vpop.f32.mrb[0].mxu0
        %v2337 = vadd.f32 0.0, %v2336
        %v2338 = vpop.f32.mrb[0].mxu0
        %v2339 = vpop.f32.mrb[0].mxu0
        %v2340 = vadd.f32 0.0, %v2339
        %v2341 = vpop.f32.mrb[0].mxu0
        %2342 = vmatprep.mubr.bf16.mxu0 %v1456
        %2343 = vmatmul.mubr.bf16.gmra.mrb[0].mxu0 %v1265
        %v2344 = vpop.f32.mrb[0].mxu0
        %v2345 = vadd.f32 0.0, %v2344
        %v2346 = vpop.f32.mrb[0].mxu0
        %v2347 = vpop.f32.mrb[0].mxu0
        %v2348 = vadd.f32 0.0, %v2347
        %v2349 = vpop.f32.mrb[0].mxu0
        %2350 = vmatprep.mubr.bf16.mxu0 %v1468
        %2351 = vmatmul.mubr.bf16.gmra.mrb[0].mxu0 %v1266
        %v2352 = vpop.f32.mrb[0].mxu0
        %v2353 = vadd.f32 0.0, %v2352
        %v2354 = vpop.f32.mrb[0].mxu0
        %v2355 = vpop.f32.mrb[0].mxu0
        %v2356 = vadd.f32 0.0, %v2355
        %v2357 = vpop.f32.mrb[0].mxu0
        %2358 = vmatprep.mubr.bf16.mxu0 %v1480
        %2359 = vmatmul.mubr.bf16.gmra.mrb[0].mxu0 %v1267
        %v2360 = vpop.f32.mrb[0].mxu0
        %v2361 = vadd.f32 0.0, %v2360
        %v2362 = vpop.f32.mrb[0].mxu0
        %v2363 = vpop.f32.mrb[0].mxu0
        %v2364 = vadd.f32 0.0, %v2363
        %v2365 = vpop.f32.mrb[0].mxu0
        %2366 = vmatprep.mubr.bf16.mxu0 %v1492
        %2367 = vmatmul.mubr.bf16.gmra.mrb[0].mxu0 %v1268
        %v2368 = vpop.f32.mrb[0].mxu0
        %v2369 = vadd.f32 0.0, %v2368
        %v2370 = vpop.f32.mrb[0].mxu0
        %v2371 = vpop.f32.mrb[0].mxu0
        %v2372 = vadd.f32 0.0, %v2371
        %v2373 = vpop.f32.mrb[0].mxu0
        %2374 = vmatprep.mubr.bf16.mxu0 %v1504
        %2375 = vmatmul.mubr.bf16.gmra.mrb[0].mxu0 %v1269
        %v2376 = vpop.f32.mrb[0].mxu0
        %v2377 = vadd.f32 0.0, %v2376
        %v2378 = vpop.f32.mrb[0].mxu0
        %v2379 = vpop.f32.mrb[0].mxu0
        %v2380 = vadd.f32 0.0, %v2379
        %v2381 = vpop.f32.mrb[0].mxu0
        %2382 = vmatprep.mubr.bf16.mxu0 %v1516
        %2383 = vmatmul.mubr.bf16.gmra.mrb[0].mxu0 %v1270
        %v2384 = vpop.f32.mrb[0].mxu0
        %v2385 = vadd.f32 0.0, %v2384
        %v2386 = vpop.f32.mrb[0].mxu0
        %v2387 = vpop.f32.mrb[0].mxu0
        %v2388 = vadd.f32 0.0, %v2387
        %v2389 = vpop.f32.mrb[0].mxu0
        %2390 = vmatprep.mubr.bf16.mxu0 %v1528
        %2391 = vmatmul.mubr.bf16.gmra.mrb[0].mxu0 %v1271
        %v2392 = vpop.f32.mrb[0].mxu0
        %v2393 = vadd.f32 0.0, %v2392
        %v2394 = vpop.f32.mrb[0].mxu0
        %v2395 = vpop.f32.mrb[0].mxu0
        %v2396 = vadd.f32 0.0, %v2395
        %v2397 = vpop.f32.mrb[0].mxu0
        %2398 = vdwg.mxu0
        %2399 = vmatprep.subr.bf16.mxu0 0
        %2400 = vmatpush1.bf16.msra.mxu0 %v2110
        %2401 = vmatprep.subr.bf16.mxu0 0
        %2402 = vmatpush1.bf16.msra.mxu0 %v2111
        %2403 = vmatprep.subr.bf16.mxu0 0
        %2404 = vmatpush1.bf16.msra.mxu0 %v2112
        %2405 = vmatprep.subr.bf16.mxu0 0
        %2406 = vmatpush1.bf16.msra.mxu0 %v2113
        %2407 = vmatprep.subr.bf16.mxu0 0
        %2408 = vmatpush1.bf16.msra.mxu0 %v2114
        %2409 = vmatprep.subr.bf16.mxu0 0
        %2410 = vmatpush1.bf16.msra.mxu0 %v2115
        %2411 = vmatprep.subr.bf16.mxu0 0
        %2412 = vmatpush1.bf16.msra.mxu0 %v2116
        %2413 = vmatprep.subr.bf16.mxu0 0
        %2414 = vmatpush1.bf16.msra.mxu0 %v2117
        %2415 = vmatprep.subr.bf16.mxu0 0
        %2416 = vmatpush1.bf16.msra.mxu0 %v2118
        %2417 = vmatprep.subr.bf16.mxu0 0
        %2418 = vmatpush1.bf16.msra.mxu0 %v2119
        %2419 = vmatprep.subr.bf16.mxu0 0
        %2420 = vmatpush1.bf16.msra.mxu0 %v2120
        %2421 = vmatprep.subr.bf16.mxu0 0
        %2422 = vmatpush1.bf16.msra.mxu0 %v2121
        %2423 = vmatprep.subr.bf16.mxu0 0
        %2424 = vmatpush1.bf16.msra.mxu0 %v2122
        %2425 = vmatprep.subr.bf16.mxu0 0
        %2426 = vmatpush1.bf16.msra.mxu0 %v2123
        %2427 = vmatprep.subr.bf16.mxu0 0
        %2428 = vmatpush1.bf16.msra.mxu0 %v2124
        %2429 = vmatprep.subr.bf16.mxu0 0
        %2430 = vmatpush1.bf16.msra.mxu0 %v2125
        %2431 = vmatprep.mubr.bf16.mxu0 %v1257
        %2432 = vmatmul.mubr.bf16.gmra.mrb[0].mxu0 %v1548
        %v2433 = vpop.f32.mrb[0].mxu0
        %v2434 = vadd.f32 %v2273, %v2433
        %v2435 = vpop.f32.mrb[0].mxu0
        %v2436 = vpop.f32.mrb[0].mxu0
        %v2437 = vadd.f32 %v2276, %v2436
        %v2438 = vpop.f32.mrb[0].mxu0
        %2439 = vmatprep.mubr.bf16.mxu0 %v1258
        %2440 = vmatmul.mubr.bf16.gmra.mrb[0].mxu0 %v1551
        %v2441 = vpop.f32.mrb[0].mxu0
        %v2442 = vadd.f32 %v2281, %v2441
        %v2443 = vpop.f32.mrb[0].mxu0
        %v2444 = vpop.f32.mrb[0].mxu0
        %v2445 = vadd.f32 %v2284, %v2444
        %v2446 = vpop.f32.mrb[0].mxu0
        %2447 = vmatprep.mubr.bf16.mxu0 %v1259
        %2448 = vmatmul.mubr.bf16.gmra.mrb[0].mxu0 %v1554
        %v2449 = vpop.f32.mrb[0].mxu0
        %v2450 = vadd.f32 %v2289, %v2449
        %v2451 = vpop.f32.mrb[0].mxu0
        %v2452 = vpop.f32.mrb[0].mxu0
        %v2453 = vadd.f32 %v2292, %v2452
        %v2454 = vpop.f32.mrb[0].mxu0
        %2455 = vmatprep.mubr.bf16.mxu0 %v1260
        %2456 = vmatmul.mubr.bf16.gmra.mrb[0].mxu0 %v1557
        %v2457 = vpop.f32.mrb[0].mxu0
        %v2458 = vadd.f32 %v2297, %v2457
        %v2459 = vpop.f32.mrb[0].mxu0
        %v2460 = vpop.f32.mrb[0].mxu0
        %v2461 = vadd.f32 %v2300, %v2460
        %v2462 = vpop.f32.mrb[0].mxu0
        %2463 = vmatprep.mubr.bf16.mxu0 %v1261
        %2464 = vmatmul.mubr.bf16.gmra.mrb[0].mxu0 %v1560
        %v2465 = vpop.f32.mrb[0].mxu0
        %v2466 = vadd.f32 %v2305, %v2465
        %v2467 = vpop.f32.mrb[0].mxu0
        %v2468 = vpop.f32.mrb[0].mxu0
        %v2469 = vadd.f32 %v2308, %v2468
        %v2470 = vpop.f32.mrb[0].mxu0
        %2471 = vmatprep.mubr.bf16.mxu0 %v1262
        %2472 = vmatmul.mubr.bf16.gmra.mrb[0].mxu0 %v1563
        %v2473 = vpop.f32.mrb[0].mxu0
        %v2474 = vadd.f32 %v2313, %v2473
        %v2475 = vpop.f32.mrb[0].mxu0
        %v2476 = vpop.f32.mrb[0].mxu0
        %v2477 = vadd.f32 %v2316, %v2476
        %v2478 = vpop.f32.mrb[0].mxu0
        %2479 = vmatprep.mubr.bf16.mxu0 %v1263
        %2480 = vmatmul.mubr.bf16.gmra.mrb[0].mxu0 %v1566
        %v2481 = vpop.f32.mrb[0].mxu0
        %v2482 = vadd.f32 %v2321, %v2481
        %v2483 = vpop.f32.mrb[0].mxu0
        %v2484 = vpop.f32.mrb[0].mxu0
        %v2485 = vadd.f32 %v2324, %v2484
        %v2486 = vpop.f32.mrb[0].mxu0
        %2487 = vmatprep.mubr.bf16.mxu0 %v1264
        %2488 = vmatmul.mubr.bf16.gmra.mrb[0].mxu0 %v1569
        %v2489 = vpop.f32.mrb[0].mxu0
        %v2490 = vadd.f32 %v2329, %v2489
        %v2491 = vpop.f32.mrb[0].mxu0
        %v2492 = vpop.f32.mrb[0].mxu0
        %v2493 = vadd.f32 %v2332, %v2492
        %v2494 = vpop.f32.mrb[0].mxu0
        %2495 = vmatprep.mubr.bf16.mxu0 %v1265
        %2496 = vmatmul.mubr.bf16.gmra.mrb[0].mxu0 %v1572
        %v2497 = vpop.f32.mrb[0].mxu0
        %v2498 = vadd.f32 %v2337, %v2497
        %v2499 = vpop.f32.mrb[0].mxu0
        %v2500 = vpop.f32.mrb[0].mxu0
        %v2501 = vadd.f32 %v2340, %v2500
        %v2502 = vpop.f32.mrb[0].mxu0
        %2503 = vmatprep.mubr.bf16.mxu0 %v1266
        %2504 = vmatmul.mubr.bf16.gmra.mrb[0].mxu0 %v1575
        %v2505 = vpop.f32.mrb[0].mxu0
        %v2506 = vadd.f32 %v2345, %v2505
        %v2507 = vpop.f32.mrb[0].mxu0
        %v2508 = vpop.f32.mrb[0].mxu0
        %v2509 = vadd.f32 %v2348, %v2508
        %v2510 = vpop.f32.mrb[0].mxu0
        %2511 = vmatprep.mubr.bf16.mxu0 %v1267
        %2512 = vmatmul.mubr.bf16.gmra.mrb[0].mxu0 %v1578
        %v2513 = vpop.f32.mrb[0].mxu0
        %v2514 = vadd.f32 %v2353, %v2513
        %v2515 = vpop.f32.mrb[0].mxu0
        %v2516 = vpop.f32.mrb[0].mxu0
        %v2517 = vadd.f32 %v2356, %v2516
        %v2518 = vpop.f32.mrb[0].mxu0
        %2519 = vmatprep.mubr.bf16.mxu0 %v1268
        %2520 = vmatmul.mubr.bf16.gmra.mrb[0].mxu0 %v1581
        %v2521 = vpop.f32.mrb[0].mxu0
        %v2522 = vadd.f32 %v2361, %v2521
        %v2523 = vpop.f32.mrb[0].mxu0
        %v2524 = vpop.f32.mrb[0].mxu0
        %v2525 = vadd.f32 %v2364, %v2524
        %v2526 = vpop.f32.mrb[0].mxu0
        %2527 = vmatprep.mubr.bf16.mxu0 %v1269
        %2528 = vmatmul.mubr.bf16.gmra.mrb[0].mxu0 %v1584
        %v2529 = vpop.f32.mrb[0].mxu0
        %v2530 = vadd.f32 %v2369, %v2529
        %v2531 = vpop.f32.mrb[0].mxu0
        %v2532 = vpop.f32.mrb[0].mxu0
        %v2533 = vadd.f32 %v2372, %v2532
        %v2534 = vpop.f32.mrb[0].mxu0
        %2535 = vmatprep.mubr.bf16.mxu0 %v1270
        %2536 = vmatmul.mubr.bf16.gmra.mrb[0].mxu0 %v1587
        %v2537 = vpop.f32.mrb[0].mxu0
        %v2538 = vadd.f32 %v2377, %v2537
        %v2539 = vpop.f32.mrb[0].mxu0
        %v2540 = vpop.f32.mrb[0].mxu0
        %v2541 = vadd.f32 %v2380, %v2540
        %v2542 = vpop.f32.mrb[0].mxu0
        %2543 = vmatprep.mubr.bf16.mxu0 %v1271
        %2544 = vmatmul.mubr.bf16.gmra.mrb[0].mxu0 %v1590
        %v2545 = vpop.f32.mrb[0].mxu0
        %v2546 = vadd.f32 %v2385, %v2545
        %v2547 = vpop.f32.mrb[0].mxu0
        %v2548 = vpop.f32.mrb[0].mxu0
        %v2549 = vadd.f32 %v2388, %v2548
        %v2550 = vpop.f32.mrb[0].mxu0
        %2551 = vmatprep.mubr.bf16.mxu0 %v1614
        %2552 = vmatmul.mubr.bf16.gmra.mrb[0].mxu0 %v1593
        %v2553 = vpop.f32.mrb[0].mxu0
        %v2554 = vadd.f32 %v2393, %v2553
        %v2555 = vpop.f32.mrb[0].mxu0
        %v2556 = vpop.f32.mrb[0].mxu0
        %v2557 = vadd.f32 %v2396, %v2556
        %v2558 = vpop.f32.mrb[0].mxu0
        %2559 = vdwg.mxu0
        %2560 = vmatprep.subr.bf16.mxu0 0
        %2561 = vmatpush1.bf16.msra.mxu0 %v2126
        %2562 = vmatprep.subr.bf16.mxu0 0
        %2563 = vmatpush1.bf16.msra.mxu0 %v2127
        %2564 = vmatprep.subr.bf16.mxu0 0
        %2565 = vmatpush1.bf16.msra.mxu0 %v2128
        %2566 = vmatprep.subr.bf16.mxu0 0
        %2567 = vmatpush1.bf16.msra.mxu0 %v2129
        %2568 = vmatprep.subr.bf16.mxu0 0
        %2569 = vmatpush1.bf16.msra.mxu0 %v2130
        %2570 = vmatprep.subr.bf16.mxu0 0
        %2571 = vmatpush1.bf16.msra.mxu0 %v2131
        %2572 = vmatprep.subr.bf16.mxu0 0
        %2573 = vmatpush1.bf16.msra.mxu0 %v2132
        %2574 = vmatprep.subr.bf16.mxu0 0
        %2575 = vmatpush1.bf16.msra.mxu0 %v2133
        %2576 = vmatprep.subr.bf16.mxu0 0
        %2577 = vmatpush1.bf16.msra.mxu0 %v2134
        %2578 = vmatprep.subr.bf16.mxu0 0
        %2579 = vmatpush1.bf16.msra.mxu0 %v2135
        %2580 = vmatprep.subr.bf16.mxu0 0
        %2581 = vmatpush1.bf16.msra.mxu0 %v2136
        %2582 = vmatprep.subr.bf16.mxu0 0
        %2583 = vmatpush1.bf16.msra.mxu0 %v2137
        %2584 = vmatprep.subr.bf16.mxu0 0
        %2585 = vmatpush1.bf16.msra.mxu0 %v2138
        %2586 = vmatprep.subr.bf16.mxu0 0
        %2587 = vmatpush1.bf16.msra.mxu0 %v2139
        %2588 = vmatprep.subr.bf16.mxu0 0
        %2589 = vmatpush1.bf16.msra.mxu0 %v2140
        %2590 = vmatprep.subr.bf16.mxu0 0
        %2591 = vmatpush1.bf16.msra.mxu0 %v2141
        %2592 = vmatprep.mubr.bf16.mxu0 %v1551
        %2593 = vmatmul.mubr.bf16.gmra.mrb[0].mxu0 %v1360
        %v2594 = vpop.f32.mrb[0].mxu0
        %v2595 = vadd.f32 %v2434, %v2594
        %v2596 = vpop.f32.mrb[0].mxu0
        %v2597 = vpop.f32.mrb[0].mxu0
        %v2598 = vadd.f32 %v2437, %v2597
        %v2599 = vpop.f32.mrb[0].mxu0
        %2600 = vmatprep.mubr.bf16.mxu0 %v1554
        %2601 = vmatmul.mubr.bf16.gmra.mrb[0].mxu0 %v1372
        %v2602 = vpop.f32.mrb[0].mxu0
        %v2603 = vadd.f32 %v2442, %v2602
        %v2604 = vpop.f32.mrb[0].mxu0
        %v2605 = vpop.f32.mrb[0].mxu0
        %v2606 = vadd.f32 %v2445, %v2605
        %v2607 = vpop.f32.mrb[0].mxu0
        %2608 = vmatprep.mubr.bf16.mxu0 %v1557
        %2609 = vmatmul.mubr.bf16.gmra.mrb[0].mxu0 %v1384
        %v2610 = vpop.f32.mrb[0].mxu0
        %v2611 = vadd.f32 %v2450, %v2610
        %v2612 = vpop.f32.mrb[0].mxu0
        %v2613 = vpop.f32.mrb[0].mxu0
        %v2614 = vadd.f32 %v2453, %v2613
        %v2615 = vpop.f32.mrb[0].mxu0
        %2616 = vmatprep.mubr.bf16.mxu0 %v1560
        %2617 = vmatmul.mubr.bf16.gmra.mrb[0].mxu0 %v1396
        %v2618 = vpop.f32.mrb[0].mxu0
        %v2619 = vadd.f32 %v2458, %v2618
        %v2620 = vpop.f32.mrb[0].mxu0
        %v2621 = vpop.f32.mrb[0].mxu0
        %v2622 = vadd.f32 %v2461, %v2621
        %v2623 = vpop.f32.mrb[0].mxu0
        %2624 = vmatprep.mubr.bf16.mxu0 %v1563
        %2625 = vmatmul.mubr.bf16.gmra.mrb[0].mxu0 %v1408
        %v2626 = vpop.f32.mrb[0].mxu0
        %v2627 = vadd.f32 %v2466, %v2626
        %v2628 = vpop.f32.mrb[0].mxu0
        %v2629 = vpop.f32.mrb[0].mxu0
        %v2630 = vadd.f32 %v2469, %v2629
        %v2631 = vpop.f32.mrb[0].mxu0
        %2632 = vmatprep.mubr.bf16.mxu0 %v1566
        %2633 = vmatmul.mubr.bf16.gmra.mrb[0].mxu0 %v1420
        %v2634 = vpop.f32.mrb[0].mxu0
        %v2635 = vadd.f32 %v2474, %v2634
        %v2636 = vpop.f32.mrb[0].mxu0
        %v2637 = vpop.f32.mrb[0].mxu0
        %v2638 = vadd.f32 %v2477, %v2637
        %v2639 = vpop.f32.mrb[0].mxu0
        %2640 = vmatprep.mubr.bf16.mxu0 %v1569
        %2641 = vmatmul.mubr.bf16.gmra.mrb[0].mxu0 %v1432
        %v2642 = vpop.f32.mrb[0].mxu0
        %v2643 = vadd.f32 %v2482, %v2642
        %v2644 = vpop.f32.mrb[0].mxu0
        %v2645 = vpop.f32.mrb[0].mxu0
        %v2646 = vadd.f32 %v2485, %v2645
        %v2647 = vpop.f32.mrb[0].mxu0
        %2648 = vmatprep.mubr.bf16.mxu0 %v1572
        %2649 = vmatmul.mubr.bf16.gmra.mrb[0].mxu0 %v1444
        %v2650 = vpop.f32.mrb[0].mxu0
        %v2651 = vadd.f32 %v2490, %v2650
        %v2652 = vpop.f32.mrb[0].mxu0
        %v2653 = vpop.f32.mrb[0].mxu0
        %v2654 = vadd.f32 %v2493, %v2653
        %v2655 = vpop.f32.mrb[0].mxu0
        %2656 = vmatprep.mubr.bf16.mxu0 %v1575
        %2657 = vmatmul.mubr.bf16.gmra.mrb[0].mxu0 %v1456
        %v2658 = vpop.f32.mrb[0].mxu0
        %v2659 = vadd.f32 %v2498, %v2658
        %v2660 = vpop.f32.mrb[0].mxu0
        %v2661 = vpop.f32.mrb[0].mxu0
        %v2662 = vadd.f32 %v2501, %v2661
        %v2663 = vpop.f32.mrb[0].mxu0
        %2664 = vmatprep.mubr.bf16.mxu0 %v1578
        %2665 = vmatmul.mubr.bf16.gmra.mrb[0].mxu0 %v1468
        %v2666 = vpop.f32.mrb[0].mxu0
        %v2667 = vadd.f32 %v2506, %v2666
        %v2668 = vpop.f32.mrb[0].mxu0
        %v2669 = vpop.f32.mrb[0].mxu0
        %v2670 = vadd.f32 %v2509, %v2669
        %v2671 = vpop.f32.mrb[0].mxu0
        %2672 = vmatprep.mubr.bf16.mxu0 %v1581
        %2673 = vmatmul.mubr.bf16.gmra.mrb[0].mxu0 %v1480
        %v2674 = vpop.f32.mrb[0].mxu0
        %v2675 = vadd.f32 %v2514, %v2674
        %v2676 = vpop.f32.mrb[0].mxu0
        %v2677 = vpop.f32.mrb[0].mxu0
        %v2678 = vadd.f32 %v2517, %v2677
        %v2679 = vpop.f32.mrb[0].mxu0
        %2680 = vmatprep.mubr.bf16.mxu0 %v1584
        %2681 = vmatmul.mubr.bf16.gmra.mrb[0].mxu0 %v1492
        %v2682 = vpop.f32.mrb[0].mxu0
        %v2683 = vadd.f32 %v2522, %v2682
        %v2684 = vpop.f32.mrb[0].mxu0
        %v2685 = vpop.f32.mrb[0].mxu0
        %v2686 = vadd.f32 %v2525, %v2685
        %v2687 = vpop.f32.mrb[0].mxu0
        %2688 = vmatprep.mubr.bf16.mxu0 %v1587
        %2689 = vmatmul.mubr.bf16.gmra.mrb[0].mxu0 %v1504
        %v2690 = vpop.f32.mrb[0].mxu0
        %v2691 = vadd.f32 %v2530, %v2690
        %v2692 = vpop.f32.mrb[0].mxu0
        %v2693 = vpop.f32.mrb[0].mxu0
        %v2694 = vadd.f32 %v2533, %v2693
        %v2695 = vpop.f32.mrb[0].mxu0
        %2696 = vmatprep.mubr.bf16.mxu0 %v1590
        %2697 = vmatmul.mubr.bf16.gmra.mrb[0].mxu0 %v1516
        %v2698 = vpop.f32.mrb[0].mxu0
        %v2699 = vadd.f32 %v2538, %v2698
        %v2700 = vpop.f32.mrb[0].mxu0
        %v2701 = vpop.f32.mrb[0].mxu0
        %v2702 = vadd.f32 %v2541, %v2701
        %v2703 = vpop.f32.mrb[0].mxu0
        %2704 = vmatprep.mubr.bf16.mxu0 %v1593
        %2705 = vmatmul.mubr.bf16.gmra.mrb[0].mxu0 %v1528
        %v2706 = vpop.f32.mrb[0].mxu0
        %v2707 = vadd.f32 %v2546, %v2706
        %v2708 = vpop.f32.mrb[0].mxu0
        %v2709 = vpop.f32.mrb[0].mxu0
        %v2710 = vadd.f32 %v2549, %v2709
        %v2711 = vpop.f32.mrb[0].mxu0
        %2712 = vmatprep.mubr.bf16.mxu0 %v1634
        %2713 = vmatmul.mubr.bf16.gmra.mrb[0].mxu0 %v1630
        %v2714 = vpop.f32.mrb[0].mxu0
        %v2715 = vadd.f32 %v2554, %v2714
        %v2716 = vpop.f32.mrb[0].mxu0
        %v2717 = vpop.f32.mrb[0].mxu0
        %v2718 = vadd.f32 %v2557, %v2717
        %v2719 = vpop.f32.mrb[0].mxu0
        %2720 = vdwg.mxu0
        %2721 = vmatprep.subr.bf16.mxu0 0
        %2722 = vmatpush1.bf16.msra.mxu0 %v2142
        %2723 = vmatprep.subr.bf16.mxu0 0
        %2724 = vmatpush1.bf16.msra.mxu0 %v2143
        %2725 = vmatprep.subr.bf16.mxu0 0
        %2726 = vmatpush1.bf16.msra.mxu0 %v2144
        %2727 = vmatprep.subr.bf16.mxu0 0
        %2728 = vmatpush1.bf16.msra.mxu0 %v2145
        %2729 = vmatprep.subr.bf16.mxu0 0
        %2730 = vmatpush1.bf16.msra.mxu0 %v2146
        %2731 = vmatprep.subr.bf16.mxu0 0
        %2732 = vmatpush1.bf16.msra.mxu0 %v2147
        %2733 = vmatprep.subr.bf16.mxu0 0
        %2734 = vmatpush1.bf16.msra.mxu0 %v2148
        %2735 = vmatprep.subr.bf16.mxu0 0
        %2736 = vmatpush1.bf16.msra.mxu0 %v2149
        %2737 = vmatprep.subr.bf16.mxu0 0
        %2738 = vmatpush1.bf16.msra.mxu0 %v2150
        %2739 = vmatprep.subr.bf16.mxu0 0
        %2740 = vmatpush1.bf16.msra.mxu0 %v2151
        %2741 = vmatprep.subr.bf16.mxu0 0
        %2742 = vmatpush1.bf16.msra.mxu0 %v2152
        %2743 = vmatprep.subr.bf16.mxu0 0
        %2744 = vmatpush1.bf16.msra.mxu0 %v2153
        %2745 = vmatprep.subr.bf16.mxu0 0
        %2746 = vmatpush1.bf16.msra.mxu0 %v2154
        %2747 = vmatprep.subr.bf16.mxu0 0
        %2748 = vmatpush1.bf16.msra.mxu0 %v2155
        %2749 = vmatprep.subr.bf16.mxu0 0
        %2750 = vmatpush1.bf16.msra.mxu0 %v2156
        %2751 = vmatprep.subr.bf16.mxu0 0
        %2752 = vmatpush1.bf16.msra.mxu0 %v2157
        %2753 = vmatprep.mubr.bf16.mxu0 %v1372
        %2754 = vmatmul.mubr.bf16.gmra.mrb[0].mxu0 %v1258
        %v2755 = vpop.f32.mrb[0].mxu0
        %v2756 = vadd.f32 %v2595, %v2755
        %v2757 = vpop.f32.mrb[0].mxu0
        %v2758 = vpop.f32.mrb[0].mxu0
        %v2759 = vadd.f32 %v2598, %v2758
        %v2760 = vpop.f32.mrb[0].mxu0
        %2761 = vmatprep.mubr.bf16.mxu0 %v1384
        %2762 = vmatmul.mubr.bf16.gmra.mrb[0].mxu0 %v1259
        %v2763 = vpop.f32.mrb[0].mxu0
        %v2764 = vadd.f32 %v2603, %v2763
        %v2765 = vpop.f32.mrb[0].mxu0
        %v2766 = vpop.f32.mrb[0].mxu0
        %v2767 = vadd.f32 %v2606, %v2766
        %v2768 = vpop.f32.mrb[0].mxu0
        %2769 = vmatprep.mubr.bf16.mxu0 %v1396
        %2770 = vmatmul.mubr.bf16.gmra.mrb[0].mxu0 %v1260
        %v2771 = vpop.f32.mrb[0].mxu0
        %v2772 = vadd.f32 %v2611, %v2771
        %v2773 = vpop.f32.mrb[0].mxu0
        %v2774 = vpop.f32.mrb[0].mxu0
        %v2775 = vadd.f32 %v2614, %v2774
        %v2776 = vpop.f32.mrb[0].mxu0
        %2777 = vmatprep.mubr.bf16.mxu0 %v1408
        %2778 = vmatmul.mubr.bf16.gmra.mrb[0].mxu0 %v1261
        %v2779 = vpop.f32.mrb[0].mxu0
        %v2780 = vadd.f32 %v2619, %v2779
        %v2781 = vpop.f32.mrb[0].mxu0
        %v2782 = vpop.f32.mrb[0].mxu0
        %v2783 = vadd.f32 %v2622, %v2782
        %v2784 = vpop.f32.mrb[0].mxu0
        %2785 = vmatprep.mubr.bf16.mxu0 %v1420
        %2786 = vmatmul.mubr.bf16.gmra.mrb[0].mxu0 %v1262
        %v2787 = vpop.f32.mrb[0].mxu0
        %v2788 = vadd.f32 %v2627, %v2787
        %v2789 = vpop.f32.mrb[0].mxu0
        %v2790 = vpop.f32.mrb[0].mxu0
        %v2791 = vadd.f32 %v2630, %v2790
        %v2792 = vpop.f32.mrb[0].mxu0
        %2793 = vmatprep.mubr.bf16.mxu0 %v1432
        %2794 = vmatmul.mubr.bf16.gmra.mrb[0].mxu0 %v1263
        %v2795 = vpop.f32.mrb[0].mxu0
        %v2796 = vadd.f32 %v2635, %v2795
        %v2797 = vpop.f32.mrb[0].mxu0
        %v2798 = vpop.f32.mrb[0].mxu0
        %v2799 = vadd.f32 %v2638, %v2798
        %v2800 = vpop.f32.mrb[0].mxu0
        %2801 = vmatprep.mubr.bf16.mxu0 %v1444
        %2802 = vmatmul.mubr.bf16.gmra.mrb[0].mxu0 %v1264
        %v2803 = vpop.f32.mrb[0].mxu0
        %v2804 = vadd.f32 %v2643, %v2803
        %v2805 = vpop.f32.mrb[0].mxu0
        %v2806 = vpop.f32.mrb[0].mxu0
        %v2807 = vadd.f32 %v2646, %v2806
        %v2808 = vpop.f32.mrb[0].mxu0
        %2809 = vmatprep.mubr.bf16.mxu0 %v1456
        %2810 = vmatmul.mubr.bf16.gmra.mrb[0].mxu0 %v1265
        %v2811 = vpop.f32.mrb[0].mxu0
        %v2812 = vadd.f32 %v2651, %v2811
        %v2813 = vpop.f32.mrb[0].mxu0
        %v2814 = vpop.f32.mrb[0].mxu0
        %v2815 = vadd.f32 %v2654, %v2814
        %v2816 = vpop.f32.mrb[0].mxu0
        %2817 = vmatprep.mubr.bf16.mxu0 %v1468
        %2818 = vmatmul.mubr.bf16.gmra.mrb[0].mxu0 %v1266
        %v2819 = vpop.f32.mrb[0].mxu0
        %v2820 = vadd.f32 %v2659, %v2819
        %v2821 = vpop.f32.mrb[0].mxu0
        %v2822 = vpop.f32.mrb[0].mxu0
        %v2823 = vadd.f32 %v2662, %v2822
        %v2824 = vpop.f32.mrb[0].mxu0
        %2825 = vmatprep.mubr.bf16.mxu0 %v1480
        %2826 = vmatmul.mubr.bf16.gmra.mrb[0].mxu0 %v1267
        %v2827 = vpop.f32.mrb[0].mxu0
        %v2828 = vadd.f32 %v2667, %v2827
        %v2829 = vpop.f32.mrb[0].mxu0
        %v2830 = vpop.f32.mrb[0].mxu0
        %v2831 = vadd.f32 %v2670, %v2830
        %v2832 = vpop.f32.mrb[0].mxu0
        %2833 = vmatprep.mubr.bf16.mxu0 %v1492
        %2834 = vmatmul.mubr.bf16.gmra.mrb[0].mxu0 %v1268
        %v2835 = vpop.f32.mrb[0].mxu0
        %v2836 = vadd.f32 %v2675, %v2835
        %v2837 = vpop.f32.mrb[0].mxu0
        %v2838 = vpop.f32.mrb[0].mxu0
        %v2839 = vadd.f32 %v2678, %v2838
        %v2840 = vpop.f32.mrb[0].mxu0
        %2841 = vmatprep.mubr.bf16.mxu0 %v1504
        %2842 = vmatmul.mubr.bf16.gmra.mrb[0].mxu0 %v1269
        %v2843 = vpop.f32.mrb[0].mxu0
        %v2844 = vadd.f32 %v2683, %v2843
        %v2845 = vpop.f32.mrb[0].mxu0
        %v2846 = vpop.f32.mrb[0].mxu0
        %v2847 = vadd.f32 %v2686, %v2846
        %v2848 = vpop.f32.mrb[0].mxu0
        %2849 = vmatprep.mubr.bf16.mxu0 %v1516
        %2850 = vmatmul.mubr.bf16.gmra.mrb[0].mxu0 %v1270
        %v2851 = vpop.f32.mrb[0].mxu0
        %v2852 = vadd.f32 %v2691, %v2851
        %v2853 = vpop.f32.mrb[0].mxu0
        %v2854 = vpop.f32.mrb[0].mxu0
        %v2855 = vadd.f32 %v2694, %v2854
        %v2856 = vpop.f32.mrb[0].mxu0
        %2857 = vmatprep.mubr.bf16.mxu0 %v1528
        %2858 = vmatmul.mubr.bf16.gmra.mrb[0].mxu0 %v1271
        %v2859 = vpop.f32.mrb[0].mxu0
        %v2860 = vadd.f32 %v2699, %v2859
        %v2861 = vpop.f32.mrb[0].mxu0
        %v2862 = vpop.f32.mrb[0].mxu0
        %v2863 = vadd.f32 %v2702, %v2862
        %v2864 = vpop.f32.mrb[0].mxu0
        %2865 = vmatprep.mubr.bf16.mxu0 %v1630
        %2866 = vmatmul.mubr.bf16.gmra.mrb[0].mxu0 %v1614
        %v2867 = vpop.f32.mrb[0].mxu0
        %v2868 = vadd.f32 %v2707, %v2867
        %v2869 = vpop.f32.mrb[0].mxu0
        %v2870 = vpop.f32.mrb[0].mxu0
        %v2871 = vadd.f32 %v2710, %v2870
        %v2872 = vpop.f32.mrb[0].mxu0
        %2873 = vmatprep.mubr.bf16.mxu0 %v1656
        %2874 = vmatmul.mubr.bf16.gmra.mrb[0].mxu0 %v1640
        %v2875 = vpop.f32.mrb[0].mxu0
        %v2876 = vadd.f32 %v2715, %v2875
        %v2877 = vpop.f32.mrb[0].mxu0
        %v2878 = vpop.f32.mrb[0].mxu0
        %v2879 = vadd.f32 %v2718, %v2878
        %v2880 = vpop.f32.mrb[0].mxu0
        %2881 = vdwg.mxu0
        %2882 = vmatprep.subr.bf16.mxu0 0
        %2883 = vmatpush1.bf16.msra.mxu0 %v2158
        %2884 = vmatprep.subr.bf16.mxu0 0
        %2885 = vmatpush1.bf16.msra.mxu0 %v2159
        %2886 = vmatprep.subr.bf16.mxu0 0
        %2887 = vmatpush1.bf16.msra.mxu0 %v2160
        %2888 = vmatprep.subr.bf16.mxu0 0
        %2889 = vmatpush1.bf16.msra.mxu0 %v2161
        %2890 = vmatprep.subr.bf16.mxu0 0
        %2891 = vmatpush1.bf16.msra.mxu0 %v2162
        %2892 = vmatprep.subr.bf16.mxu0 0
        %2893 = vmatpush1.bf16.msra.mxu0 %v2163
        %2894 = vmatprep.subr.bf16.mxu0 0
        %2895 = vmatpush1.bf16.msra.mxu0 %v2164
        %2896 = vmatprep.subr.bf16.mxu0 0
        %2897 = vmatpush1.bf16.msra.mxu0 %v2165
        %2898 = vmatprep.subr.bf16.mxu0 0
        %2899 = vmatpush1.bf16.msra.mxu0 0
        %2900 = vmatprep.subr.bf16.mxu0 0
        %2901 = vmatpush1.bf16.msra.mxu0 0
        %2902 = vmatprep.subr.bf16.mxu0 0
        %2903 = vmatpush1.bf16.msra.mxu0 0
        %2904 = vmatprep.subr.bf16.mxu0 0
        %2905 = vmatpush1.bf16.msra.mxu0 0
        %2906 = vmatprep.subr.bf16.mxu0 0
        %2907 = vmatpush1.bf16.msra.mxu0 0
        %2908 = vmatprep.subr.bf16.mxu0 0
        %2909 = vmatpush1.bf16.msra.mxu0 0
        %2910 = vmatprep.subr.bf16.mxu0 0
        %2911 = vmatpush1.bf16.msra.mxu0 0
        %2912 = vmatprep.subr.bf16.mxu0 0
        %2913 = vmatpush1.bf16.msra.mxu0 0
        %2914 = vmatprep.mubr.bf16.mxu0 0
        %2915 = vmatmul.mubr.bf16.gmra.mrb[0].mxu0 %v1554
        %v2916 = vpop.f32.mrb[0].mxu0
        %v2917 = vadd.f32 %v2756, %v2916
        %v2918 = vpop.f32.mrb[0].mxu0
        %v2919 = vpop.f32.mrb[0].mxu0
        %v2920 = vadd.f32 %v2759, %v2919
        %v2921 = vpop.f32.mrb[0].mxu0
        %2922 = vmatprep.mubr.bf16.mxu0 0
        %2923 = vmatmul.mubr.bf16.gmra.mrb[0].mxu0 %v1557
        %v2924 = vpop.f32.mrb[0].mxu0
        %v2925 = vadd.f32 %v2764, %v2924
        %v2926 = vpop.f32.mrb[0].mxu0
        %v2927 = vpop.f32.mrb[0].mxu0
        %v2928 = vadd.f32 %v2767, %v2927
        %v2929 = vpop.f32.mrb[0].mxu0
        %2930 = vmatprep.mubr.bf16.mxu0 0
        %2931 = vmatmul.mubr.bf16.gmra.mrb[0].mxu0 %v1560
        %v2932 = vpop.f32.mrb[0].mxu0
        %v2933 = vadd.f32 %v2772, %v2932
        %v2934 = vpop.f32.mrb[0].mxu0
        %v2935 = vpop.f32.mrb[0].mxu0
        %v2936 = vadd.f32 %v2775, %v2935
        %v2937 = vpop.f32.mrb[0].mxu0
        %2938 = vmatprep.mubr.bf16.mxu0 0
        %2939 = vmatmul.mubr.bf16.gmra.mrb[0].mxu0 %v1563
        %v2940 = vpop.f32.mrb[0].mxu0
        %v2941 = vadd.f32 %v2780, %v2940
        %v2942 = vpop.f32.mrb[0].mxu0
        %v2943 = vpop.f32.mrb[0].mxu0
        %v2944 = vadd.f32 %v2783, %v2943
        %v2945 = vpop.f32.mrb[0].mxu0
        %2946 = vmatprep.mubr.bf16.mxu0 0
        %2947 = vmatmul.mubr.bf16.gmra.mrb[0].mxu0 %v1566
        %v2948 = vpop.f32.mrb[0].mxu0
        %v2949 = vadd.f32 %v2788, %v2948
        %v2950 = vpop.f32.mrb[0].mxu0
        %v2951 = vpop.f32.mrb[0].mxu0
        %v2952 = vadd.f32 %v2791, %v2951
        %v2953 = vpop.f32.mrb[0].mxu0
        %2954 = vmatprep.mubr.bf16.mxu0 0
        %2955 = vmatmul.mubr.bf16.gmra.mrb[0].mxu0 %v1569
        %v2956 = vpop.f32.mrb[0].mxu0
        %v2957 = vadd.f32 %v2796, %v2956
        %v2958 = vpop.f32.mrb[0].mxu0
        %v2959 = vpop.f32.mrb[0].mxu0
        %v2960 = vadd.f32 %v2799, %v2959
        %v2961 = vpop.f32.mrb[0].mxu0
        %2962 = vmatprep.mubr.bf16.mxu0 0
        %2963 = vmatmul.mubr.bf16.gmra.mrb[0].mxu0 %v1572
        %v2964 = vpop.f32.mrb[0].mxu0
        %v2965 = vadd.f32 %v2804, %v2964
        %v2966 = vpop.f32.mrb[0].mxu0
        %v2967 = vpop.f32.mrb[0].mxu0
        %v2968 = vadd.f32 %v2807, %v2967
        %v2969 = vpop.f32.mrb[0].mxu0
        %2970 = vmatprep.mubr.bf16.mxu0 0
        %2971 = vmatmul.mubr.bf16.gmra.mrb[0].mxu0 %v1575
        %v2972 = vpop.f32.mrb[0].mxu0
        %v2973 = vadd.f32 %v2812, %v2972
        %v2974 = vpop.f32.mrb[0].mxu0
        %v2975 = vpop.f32.mrb[0].mxu0
        %v2976 = vadd.f32 %v2815, %v2975
        %v2977 = vpop.f32.mrb[0].mxu0
        %2978 = vmatprep.mubr.bf16.mxu0 0
        %2979 = vmatmul.mubr.bf16.gmra.mrb[0].mxu0 %v1578
        %v2980 = vpop.f32.mrb[0].mxu0
        %v2981 = vadd.f32 %v2820, %v2980
        %v2982 = vpop.f32.mrb[0].mxu0
        %v2983 = vpop.f32.mrb[0].mxu0
        %v2984 = vadd.f32 %v2823, %v2983
        %v2985 = vpop.f32.mrb[0].mxu0
        %2986 = vmatprep.mubr.bf16.mxu0 0
        %2987 = vmatmul.mubr.bf16.gmra.mrb[0].mxu0 %v1581
        %v2988 = vpop.f32.mrb[0].mxu0
        %v2989 = vadd.f32 %v2828, %v2988
        %v2990 = vpop.f32.mrb[0].mxu0
        %v2991 = vpop.f32.mrb[0].mxu0
        %v2992 = vadd.f32 %v2831, %v2991
        %v2993 = vpop.f32.mrb[0].mxu0
        %2994 = vmatprep.mubr.bf16.mxu0 0
        %2995 = vmatmul.mubr.bf16.gmra.mrb[0].mxu0 %v1584
        %v2996 = vpop.f32.mrb[0].mxu0
        %v2997 = vadd.f32 %v2836, %v2996
        %v2998 = vpop.f32.mrb[0].mxu0
        %v2999 = vpop.f32.mrb[0].mxu0
        %v3000 = vadd.f32 %v2839, %v2999
        %v3001 = vpop.f32.mrb[0].mxu0
        %3002 = vmatprep.mubr.bf16.mxu0 0
        %3003 = vmatmul.mubr.bf16.gmra.mrb[0].mxu0 %v1587
        %v3004 = vpop.f32.mrb[0].mxu0
        %v3005 = vadd.f32 %v2844, %v3004
        %v3006 = vpop.f32.mrb[0].mxu0
        %v3007 = vpop.f32.mrb[0].mxu0
        %v3008 = vadd.f32 %v2847, %v3007
        %v3009 = vpop.f32.mrb[0].mxu0
        %3010 = vmatprep.mubr.bf16.mxu0 0
        %3011 = vmatmul.mubr.bf16.gmra.mrb[0].mxu0 %v1590
        %v3012 = vpop.f32.mrb[0].mxu0
        %v3013 = vadd.f32 %v2852, %v3012
        %v3014 = vpop.f32.mrb[0].mxu0
        %v3015 = vpop.f32.mrb[0].mxu0
        %v3016 = vadd.f32 %v2855, %v3015
        %v3017 = vpop.f32.mrb[0].mxu0
        %3018 = vmatprep.mubr.bf16.mxu0 0
        %3019 = vmatmul.mubr.bf16.gmra.mrb[0].mxu0 %v1593
        %v3020 = vpop.f32.mrb[0].mxu0
        %v3021 = vadd.f32 %v2860, %v3020
        %v3022 = vpop.f32.mrb[0].mxu0
        %v3023 = vpop.f32.mrb[0].mxu0
        %v3024 = vadd.f32 %v2863, %v3023
        %v3025 = vpop.f32.mrb[0].mxu0
        %3026 = vmatprep.mubr.bf16.mxu0 0
        %3027 = vmatmul.mubr.bf16.gmra.mrb[0].mxu0 %v1634
        %v3028 = vpop.f32.mrb[0].mxu0
        %v3029 = vadd.f32 %v2868, %v3028
        %v3030 = vpop.f32.mrb[0].mxu0
        %v3031 = vpop.f32.mrb[0].mxu0
        %v3032 = vadd.f32 %v2871, %v3031
        %v3033 = vpop.f32.mrb[0].mxu0
        %3034 = vmatprep.mubr.bf16.mxu0 0
        %3035 = vmatmul.mubr.bf16.gmra.mrb[0].mxu0 %v1660
        %v3036 = vpop.f32.mrb[0].mxu0
        %v3037 = vadd.f32 %v2876, %v3036
        %v3038 = vpop.f32.mrb[0].mxu0
        %v3039 = vpop.f32.mrb[0].mxu0
        %v3040 = vadd.f32 %v2879, %v3039
        %v3041 = vpop.f32.mrb[0].mxu0
        %3042 = vdwg.mxu0
        %v3043 = vadd.f32 %v2917, %v2920
        %v3044 = vadd.f32 %v3043, %v2925
        %v3045 = vadd.f32 %v3044, %v2928
        %v3046 = vadd.f32 %v3045, %v2933
        %v3047 = vadd.f32 %v3046, %v2936
        %v3048 = vadd.f32 %v3047, %v2941
        %v3049 = vadd.f32 %v3048, %v2944
        %v3050 = vadd.f32 %v3049, %v2949
        %v3051 = vadd.f32 %v3050, %v2952
        %v3052 = vadd.f32 %v3051, %v2957
        %v3053 = vadd.f32 %v3052, %v2960
        %v3054 = vadd.f32 %v3053, %v2965
        %v3055 = vadd.f32 %v3054, %v2968
        %v3056 = vadd.f32 %v3055, %v2973
        %v3057 = vadd.f32 %v3056, %v2976
        %v3058 = vadd.f32 %v3057, %v2981
        %v3059 = vadd.f32 %v3058, %v2984
        %v3060 = vadd.f32 %v3059, %v2989
        %v3061 = vadd.f32 %v3060, %v2992
        %v3062 = vadd.f32 %v3061, %v2997
        %v3063 = vadd.f32 %v3062, %v3000
        %v3064 = vadd.f32 %v3063, %v3005
        %v3065 = vadd.f32 %v3064, %v3008
        %v3066 = vadd.f32 %v3065, %v3013
        %v3067 = vadd.f32 %v3066, %v3016
        %v3068 = vadd.f32 %v3067, %v3021
        %v3069 = vadd.f32 %v3068, %v3024
        %v3070 = vadd.f32 %v3069, %v3029
        %v3071 = vadd.f32 %v3070, %v3032
        %v3072 = vadd.f32 %v3071, %v3037
        %v3073 = vadd.f32 %v3072, %v3040
        %v3074 = vrot.slane %v3073, 4
        %v3075 = vadd.f32 %v3073, %v3074
        %v3076 = vrot.slane %v3075, 2
        %v3077 = vadd.f32 %v3075, %v3076
        %v3078 = vrot.slane %v3077, 1
        %v3079 = vadd.f32 %v3077, %v3078
        %3080 = vst [vmem:[%s335] sm:$0x1] %v3079
        %v3081 = vmul.f32 %v2917, %v2917
        %v3082 = vmul.f32 %v2920, %v2920
        %v3083 = vmul.f32 %v2925, %v2925
        %v3084 = vmul.f32 %v2928, %v2928
        %v3085 = vmul.f32 %v2933, %v2933
        %v3086 = vmul.f32 %v2936, %v2936
        %v3087 = vmul.f32 %v2941, %v2941
        %v3088 = vmul.f32 %v2944, %v2944
        %v3089 = vmul.f32 %v2949, %v2949
        %v3090 = vmul.f32 %v2952, %v2952
        %v3091 = vmul.f32 %v2957, %v2957
        %v3092 = vmul.f32 %v2960, %v2960
        %v3093 = vmul.f32 %v2965, %v2965
        %v3094 = vmul.f32 %v2968, %v2968
        %v3095 = vmul.f32 %v2973, %v2973
        %v3096 = vmul.f32 %v2976, %v2976
        %v3097 = vmul.f32 %v2981, %v2981
        %v3098 = vmul.f32 %v2984, %v2984
        %v3099 = vmul.f32 %v2989, %v2989
        %v3100 = vmul.f32 %v2992, %v2992
        %v3101 = vmul.f32 %v2997, %v2997
        %v3102 = vmul.f32 %v3000, %v3000
        %v3103 = vmul.f32 %v3005, %v3005
        %v3104 = vmul.f32 %v3008, %v3008
        %v3105 = vmul.f32 %v3013, %v3013
        %v3106 = vmul.f32 %v3016, %v3016
        %v3107 = vmul.f32 %v3021, %v3021
        %v3108 = vmul.f32 %v3024, %v3024
        %v3109 = vmul.f32 %v3029, %v3029
        %v3110 = vmul.f32 %v3032, %v3032
        %v3111 = vmul.f32 %v3037, %v3037
        %v3112 = vmul.f32 %v3040, %v3040
        %v3113 = vadd.f32 %v3081, %v3082
        %v3114 = vadd.f32 %v3113, %v3083
        %v3115 = vadd.f32 %v3114, %v3084
        %v3116 = vadd.f32 %v3115, %v3085
        %v3117 = vadd.f32 %v3116, %v3086
        %v3118 = vadd.f32 %v3117, %v3087
        %v3119 = vadd.f32 %v3118, %v3088
        %v3120 = vadd.f32 %v3119, %v3089
        %v3121 = vadd.f32 %v3120, %v3090
        %v3122 = vadd.f32 %v3121, %v3091
        %v3123 = vadd.f32 %v3122, %v3092
        %v3124 = vadd.f32 %v3123, %v3093
        %v3125 = vadd.f32 %v3124, %v3094
        %v3126 = vadd.f32 %v3125, %v3095
        %v3127 = vadd.f32 %v3126, %v3096
        %v3128 = vadd.f32 %v3127, %v3097
        %v3129 = vadd.f32 %v3128, %v3098
        %v3130 = vadd.f32 %v3129, %v3099
        %v3131 = vadd.f32 %v3130, %v3100
        %v3132 = vadd.f32 %v3131, %v3101
        %v3133 = vadd.f32 %v3132, %v3102
        %v3134 = vadd.f32 %v3133, %v3103
        %v3135 = vadd.f32 %v3134, %v3104
        %v3136 = vadd.f32 %v3135, %v3105
        %v3137 = vadd.f32 %v3136, %v3106
        %v3138 = vadd.f32 %v3137, %v3107
        %v3139 = vadd.f32 %v3138, %v3108
        %v3140 = vadd.f32 %v3139, %v3109
        %v3141 = vadd.f32 %v3140, %v3110
        %v3142 = vadd.f32 %v3141, %v3111
        %v3143 = vadd.f32 %v3142, %v3112
        %v3144 = vrot.slane %v3143, 4
        %v3145 = vadd.f32 %v3143, %v3144
        %v3146 = vrot.slane %v3145, 2
        %v3147 = vadd.f32 %v3145, %v3146
        %v3148 = vrot.slane %v3147, 1
        %v3149 = vadd.f32 %v3147, %v3148
        %3150 = vst [vmem:[%s341] sm:$0x1] %v3149
        %3151 = vst [vmem:[%s329] sm:$0xff] %v2917
        %3152 = vst [vmem:[%s329 + $0x8] sm:$0xff] %v2920
        %3153 = vst [vmem:[%s329 + $0x10] sm:$0xff] %v2925
        %3154 = vst [vmem:[%s329 + $0x18] sm:$0xff] %v2928
        %3155 = vst [vmem:[%s329 + $0x20] sm:$0xff] %v2933
        %3156 = vst [vmem:[%s329 + $0x28] sm:$0xff] %v2936
        %3157 = vst [vmem:[%s329 + $0x30] sm:$0xff] %v2941
        %3158 = vst [vmem:[%s329 + $0x38] sm:$0xff] %v2944
        %3159 = vst [vmem:[%s329 + $0x40] sm:$0xff] %v2949
        %3160 = vst [vmem:[%s329 + $0x48] sm:$0xff] %v2952
        %3161 = vst [vmem:[%s329 + $0x50] sm:$0xff] %v2957
        %3162 = vst [vmem:[%s329 + $0x58] sm:$0xff] %v2960
        %3163 = vst [vmem:[%s329 + $0x60] sm:$0xff] %v2965
        %3164 = vst [vmem:[%s329 + $0x68] sm:$0xff] %v2968
        %3165 = vst [vmem:[%s329 + $0x70] sm:$0xff] %v2973
        %3166 = vst [vmem:[%s329 + $0x78] sm:$0xff] %v2976
        %3167 = vst [vmem:[%s329 + $0x80] sm:$0xff] %v2981
        %3168 = vst [vmem:[%s329 + $0x88] sm:$0xff] %v2984
        %3169 = vst [vmem:[%s329 + $0x90] sm:$0xff] %v2989
        %3170 = vst [vmem:[%s329 + $0x98] sm:$0xff] %v2992
        %3171 = vst [vmem:[%s329 + $0xa0] sm:$0xff] %v2997
        %3172 = vst [vmem:[%s329 + $0xa8] sm:$0xff] %v3000
        %3173 = vst [vmem:[%s329 + $0xb0] sm:$0xff] %v3005
        %3174 = vst [vmem:[%s329 + $0xb8] sm:$0xff] %v3008
        %3175 = vst [vmem:[%s329 + $0xc0] sm:$0xff] %v3013
        %3176 = vst [vmem:[%s329 + $0xc8] sm:$0xff] %v3016
        %3177 = vst [vmem:[%s329 + $0xd0] sm:$0xff] %v3021
        %3178 = vst [vmem:[%s329 + $0xd8] sm:$0xff] %v3024
        %3179 = vst [vmem:[%s329 + $0xe0] sm:$0xff] %v3029
        %3180 = vst [vmem:[%s329 + $0xe8] sm:$0xff] %v3032
        %3181 = vst [vmem:[%s329 + $0xf0] sm:$0xff] %v3037
        %3182 = vst [vmem:[%s329 + $0xf8] sm:$0xff] %v3040
        %s3183 = sand.u32 %s147, 1
        %s3184 = scalar_lea.sflag [#allocation5], %s3183
        %s3185 = sand.u32 %s147, 1
        %s3186 = smul.addr %s3185, 256
        %s3187 = scalar_lea.vmem [#allocation9], %s3186
        %s3188 = sand.u32 %s29, 1
        %s3189 = scalar_lea.sflag [#allocation11], %s3188
        %s3190 = sand.u32 %s173, 1
        %s3191 = scalar_lea.vmem [#allocation10], %s3190
        %s3192 = sand.u32 %s29, 1
        %s3193 = scalar_lea.sflag [#allocation11], %s3192
        %s3194 = sand.u32 %s199, 1
        %s3195 = scalar_lea.vmem [#allocation12], %s3194
        // Predicated region
        $region53: #{tpu_custom_call.1} parent=39 // pred_check
          %p3196 = pneg %p157
        $region54: #{tpu_custom_call.1} parent=39 // pred_check_branch
          %3198 = sbr.rel (%p3196) target = $region56
        $region55: #{tpu_custom_call.1} parent=39 // pred_region
          %s3200 = ssub.s32 4096, 4096
          %3201 = vsyncadd %s3184, %s3200
          %s3202 = smul.addr %s29, 32
          %s3203 = smul.addr %s3202, 128
          %s3204 = scalar_lea.hbm %s5, %s3203
          %s3205 = sshll.u32 %s3187, 4
          %s3206 = int_to_ptr.vmem [resolvable:$true] %s3205
          %3211 = dma.vmem_to_hbm [thread:$0]  %s3206, 4096, %s3204, %s3184, 128, 128, 8
        $region56: #{tpu_custom_call.1} parent=39 // pred_fallthru
          _
        // Predicated region
        $region57: #{tpu_custom_call.1} parent=39 // pred_check
          %p3212 = pneg %p183
        $region58: #{tpu_custom_call.1} parent=39 // pred_check_branch
          %3214 = sbr.rel (%p3212) target = $region60
        $region59: #{tpu_custom_call.1} parent=39 // pred_region
          %s3216 = ssub.s32 16, 16
          %3217 = vsyncadd %s3189, %s3216
          %s3218 = smul.addr %s29, 16
          %s3219 = scalar_lea.hbm %s6, %s3218
          %s3221 = sshll.u32 %s3191, 4
          %s3222 = int_to_ptr.vmem [resolvable:$true] %s3221
          %3224 = dma.vmem_to_hbm [thread:$0]  %s3222, 16, %s3219, %s3189
        $region60: #{tpu_custom_call.1} parent=39 // pred_fallthru
          _
        // Predicated region
        $region61: #{tpu_custom_call.1} parent=39 // pred_check
          %p3225 = pneg %p209
        $region62: #{tpu_custom_call.1} parent=39 // pred_check_branch
          %3227 = sbr.rel (%p3225) target = $region64
        $region63: #{tpu_custom_call.1} parent=39 // pred_region
          %s3229 = ssub.s32 16, 16
          %3230 = vsyncadd %s3193, %s3229
          %s3231 = smul.addr %s29, 16
          %s3232 = scalar_lea.hbm %s7, %s3231
          %s3234 = sshll.u32 %s3195, 4
          %s3235 = int_to_ptr.vmem [resolvable:$true] %s3234
          %3237 = dma.vmem_to_hbm [thread:$0]  %s3235, 16, %s3232, %s3193
        $region64: #{tpu_custom_call.1} parent=39 // pred_fallthru
          _
      $region40: #{tpu_custom_call.1} parent=5 // pred_fallthru
        _
      %p3238 = scmp.le.s32.totalorder 2, %s24
      // Predicated region
      $region65: #{tpu_custom_call.1} parent=5 // pred_check
        %p3239 = pneg %p3238
      $region66: #{tpu_custom_call.1} parent=5 // pred_check_branch
        %3241 = sbr.rel (%p3239) target = $region68
      $region67: #{tpu_custom_call.1} parent=5 // pred_region
        %s3242 = ssub.s32 %s24, 2
        // Predicated region
        $region69: #{tpu_custom_call.1} parent=67 // pred_check
          %p3243 = pneg %p163
        $region70: #{tpu_custom_call.1} parent=67 // pred_check_branch
          %3245 = sbr.rel (%p3243) target = $region72
        $region71: #{tpu_custom_call.1} parent=67 // pred_region
          %s3246 = sand.u32 %s148, 1
          %s3247 = scalar_lea.sflag [#allocation5], %s3246
          %s3248 = sand.u32 %s148, 1
          %s3249 = smul.addr %s3248, 256
          %s3250 = scalar_lea.vmem [#allocation9], %s3249
          %3251 = dma.done %s3247, 4096
        $region72: #{tpu_custom_call.1} parent=67 // pred_fallthru
          _
        // Predicated region
        $region73: #{tpu_custom_call.1} parent=67 // pred_check
          %p3252 = pneg %p189
        $region74: #{tpu_custom_call.1} parent=67 // pred_check_branch
          %3254 = sbr.rel (%p3252) target = $region76
        $region75: #{tpu_custom_call.1} parent=67 // pred_region
          %s3255 = sand.u32 %s30, 1
          %s3256 = scalar_lea.sflag [#allocation11], %s3255
          %s3257 = sand.u32 %s174, 1
          %s3258 = scalar_lea.vmem [#allocation10], %s3257
          %3259 = dma.done %s3256, 16
        $region76: #{tpu_custom_call.1} parent=67 // pred_fallthru
          _
        // Predicated region
        $region77: #{tpu_custom_call.1} parent=67 // pred_check
          %p3260 = pneg %p215
        $region78: #{tpu_custom_call.1} parent=67 // pred_check_branch
          %3262 = sbr.rel (%p3260) target = $region80
        $region79: #{tpu_custom_call.1} parent=67 // pred_region
          %s3263 = sand.u32 %s30, 1
          %s3264 = scalar_lea.sflag [#allocation11], %s3263
          %s3265 = sand.u32 %s200, 1
          %s3266 = scalar_lea.vmem [#allocation12], %s3265
          %3267 = dma.done %s3264, 16
        $region80: #{tpu_custom_call.1} parent=67 // pred_fallthru
          _
      $region68: #{tpu_custom_call.1} parent=5 // pred_fallthru
        _
    $region6: #{tpu_custom_call.1} parent=1 // loop_footer
      %s28 = sadd.s32 1, %s24
    $region7: #{tpu_custom_call.1} parent=1 // loop_footer_branch
      %23 = sbr.rel target = $region3
    $region8: #{tpu_custom_call.1} parent=1 // loop_exit
      _
    %3268 = vsyncpa [#allocation4], 1
    %s3269 = scalar_lea.sflag [#allocation4], 1
    %3270 = vsyncpa %s3269, 1
    %3271 = vsyncpa [#allocation7], 1
    %3272 = vsyncpa [#allocation5], 1
    %s3273 = scalar_lea.sflag [#allocation5], 1
    %3274 = vsyncpa %s3273, 1
    %3275 = vsyncpa [#allocation11], 1
    %s3276 = scalar_lea.sflag [#allocation11], 1
    %3277 = vsyncpa %s3276, 1

</llo_original>
